<compile_context>
chip_gen: v5e
topology: v5e:2x2
jax: 0.10.0
libtpu: 0.0.40
codegen_flags: <defaults>
</compile_context>

<pallas_src>
import math
from functools import lru_cache, partial

import jax
import jax.numpy as jnp
import numpy as np
from jax.experimental import pallas as pl
from jax.experimental.pallas import tpu as pltpu

LANE = 128
VMEM_LIMIT_BYTES = 48 * 1024 * 1024   # explicit scoped-VMEM limit (< v7x 64 MiB)

# Tile caps sized so 2*(tm*tk)+2*(tk*tn)+2*(tm*tn) bf16 + f32 acc stays << 48 MiB.
TM_CAP = 512     # multiple of 8
TN_CAP = 256     # multiple of 128 (one/two MXU widths)
TK_CAP = 512     # multiple of 128


def _round_up(x, m):
    return ((x + m - 1) // m) * m


def _pad_last(x, target):
    pad = target - x.shape[-1]
    if pad == 0:
        return x
    cfg = [(0, 0)] * (x.ndim - 1) + [(0, pad)]
    return jnp.pad(x, cfg)


# ----------------------------------------------------------------------------
# Kernel 1: batched fused matmul + per-column affine (+ optional ReLU)
#           out[b] = relu?( A[b] @ B[b] * col_scale + col_bias )
# ----------------------------------------------------------------------------
def _fused_matmul_kernel(a_ref, b_ref, s_ref, c_ref, o_ref, acc_ref, *, apply_relu):
    @pl.when(pl.program_id(3) == 0)
    def _init():
        acc_ref[...] = jnp.zeros_like(acc_ref)

    acc_ref[...] += jnp.dot(a_ref[...], b_ref[...],
                            preferred_element_type=jnp.float32)

    @pl.when(pl.program_id(3) == pl.num_programs(3) - 1)
    def _epilogue():
        y = acc_ref[...] * s_ref[...] + c_ref[...]
        if apply_relu:
            y = jnp.maximum(y, 0.0)
        o_ref[...] = y.astype(o_ref.dtype)


def _pick_k_tile(K, cap):
    """K tile must divide K exactly (garbage K padding would corrupt results)."""
    if K <= cap:
        return K
    t = (cap // LANE) * LANE
    while t >= LANE:
        if K % t == 0:
            return t
        t -= LANE
    return K


def fused_matmul(a, b, col_scale, col_bias, *, apply_relu,
                 out_dtype=jnp.float32):
    """a: (Ba, M, K), b: (Bb, K, N) with Ba/Bb in {1, B} (broadcast over batch)."""
    Ba, M, K = a.shape
    Bb, K2, N = b.shape
    assert K == K2
    B = max(Ba, Bb)
    assert Ba in (1, B) and Bb in (1, B)

    tm = M if M <= TM_CAP else TM_CAP
    tn = N if N <= TN_CAP else TN_CAP
    tk = _pick_k_tile(K, TK_CAP)

    if a.dtype != jnp.bfloat16:
        a = a.astype(jnp.bfloat16)
    if b.dtype != jnp.bfloat16:
        b = b.astype(jnp.bfloat16)
    s2 = col_scale.reshape(1, N).astype(jnp.float32)
    c2 = col_bias.reshape(1, N).astype(jnp.float32)

    grid = (B, pl.cdiv(M, tm), pl.cdiv(N, tn), K // tk)

    if Ba > 1:
        a_idx = lambda bb, i, j, k: (bb, i, k)
    else:
        a_idx = lambda bb, i, j, k: (0, i, k)
    if Bb > 1:
        b_idx = lambda bb, i, j, k: (bb, k, j)
    else:
        b_idx = lambda bb, i, j, k: (0, k, j)

    out = pl.pallas_call(
        partial(_fused_matmul_kernel, apply_relu=apply_relu),
        out_shape=jax.ShapeDtypeStruct((B, M, N), out_dtype),
        grid_spec=pltpu.PrefetchScalarGridSpec(
            num_scalar_prefetch=0,
            grid=grid,
            in_specs=[
                pl.BlockSpec((None, tm, tk), a_idx),
                pl.BlockSpec((None, tk, tn), b_idx),
                pl.BlockSpec((1, tn), lambda bb, i, j, k: (0, j)),
                pl.BlockSpec((1, tn), lambda bb, i, j, k: (0, j)),
            ],
            out_specs=pl.BlockSpec((None, tm, tn), lambda bb, i, j, k: (bb, i, j)),
            scratch_shapes=[pltpu.VMEM((tm, tn), jnp.float32)],
        ),
        compiler_params=pltpu.CompilerParams(
            dimension_semantics=("parallel", "parallel", "parallel", "arbitrary"),
            vmem_limit_bytes=VMEM_LIMIT_BYTES,
        ),
    )(a, b, s2, c2)
    return out


# ----------------------------------------------------------------------------
# Kernel 2: in-VMEM 3x3 conv (padding=1) + BN + ReLU on the (A, R) hough map.
# The map is kept flattened (A*R rows, channels on lanes); the 9 taps are
# shifted slices of a zero-halo-padded copy, with row masks for the R-wrap.
# ----------------------------------------------------------------------------
def _conv3x3_kernel(x_ref, w_ref, s_ref, c_ref, o_ref, *, A, R, apply_relu):
    # x_ref: (A*R + 2R + 2, C)   zero-padded flattened hough map (bf16)
    # w_ref: (9, C, Cout)        tap-major (kh, kw) weights (bf16)
    # s_ref, c_ref: (1, Cout)    folded BN scale / bias (f32)
    # o_ref: (A*R, Cout)
    AR = A * R
    Cout = o_ref.shape[-1]
    xv = x_ref[...].astype(jnp.float32)          # single aligned block load
    r_idx = jax.lax.broadcasted_iota(jnp.int32, (AR, 1), 0) % R

    acc = jnp.zeros((AR, Cout), jnp.float32)
    tap = 0
    for dy in (-1, 0, 1):
        for dx in (-1, 0, 1):
            start = (R + 1) + dy * R + dx        # static offset into padded map
            patch = xv[start:start + AR, :]
            if dx == -1:                         # mask rows that wrapped a row
                patch = jnp.where(r_idx >= 1, patch, 0.0)
            elif dx == 1:
                patch = jnp.where(r_idx <= R - 2, patch, 0.0)
            acc = acc + jnp.dot(patch.astype(jnp.bfloat16), w_ref[tap],
                                preferred_element_type=jnp.float32)
            tap += 1

    y = acc * s_ref[...] + c_ref[...]
    if apply_relu:
        y = jnp.maximum(y, 0.0)
    o_ref[...] = y.astype(o_ref.dtype)


def conv3x3_bn_relu(h, wmat, col_scale, col_bias, *, A, R,
                    apply_relu=True, out_dtype=jnp.bfloat16):
    """h: (B, A*R, C) channel-last flattened hough map; wmat: (9, C, Cout)."""
    B, AR, C = h.shape
    assert AR == A * R
    Cout = wmat.shape[-1]
    if h.dtype != jnp.bfloat16:
        h = h.astype(jnp.bfloat16)
    wmat = wmat.astype(jnp.bfloat16)

    hp = jnp.pad(h, ((0, 0), (R + 1, R + 1), (0, 0)))   # flat zero halo
    Lp = AR + 2 * R + 2
    s2 = col_scale.reshape(1, Cout).astype(jnp.float32)
    c2 = col_bias.reshape(1, Cout).astype(jnp.float32)

    return pl.pallas_call(
        partial(_conv3x3_kernel, A=A, R=R, apply_relu=apply_relu),
        out_shape=jax.ShapeDtypeStruct((B, AR, Cout), out_dtype),
        grid=(B,),
        in_specs=[
            pl.BlockSpec((None, Lp, C), lambda b: (b, 0, 0)),
            pl.BlockSpec((9, C, Cout), lambda b: (0, 0, 0)),
            pl.BlockSpec((1, Cout), lambda b: (0, 0)),
            pl.BlockSpec((1, Cout), lambda b: (0, 0)),
        ],
        out_specs=pl.BlockSpec((None, AR, Cout), lambda b: (b, 0, 0)),
        compiler_params=pltpu.CompilerParams(
            dimension_semantics=("parallel",),
            vmem_limit_bytes=VMEM_LIMIT_BYTES,
        ),
    )(hp, wmat, s2, c2)


# ----------------------------------------------------------------------------
# Deep Hough Transform mapping matrix (transposed): (A*R, H*W) 0/1, cached.
# Same semantics as the CUDA line_accum_forward kernel:
#   rho = round((x - W/2) cosθ + (y - H/2) sinθ) / irho, shifted by numRho//2.
# ----------------------------------------------------------------------------
@lru_cache(maxsize=None)
def _dht_mapping_matrix_T(H, W, num_angle, num_rho):
    irho = float(int(math.sqrt(H * H + W * W) + 1)) / float(num_rho - 1)
    itheta = math.pi / num_angle
    angles = np.arange(num_angle, dtype=np.float32) * itheta
    tab_cos = np.cos(angles) / irho
    tab_sin = np.sin(angles) / irho
    xs = np.arange(W, dtype=np.float32) - W // 2
    ys = np.arange(H, dtype=np.float32) - H // 2
    val = (xs[None, None, :] * tab_cos[:, None, None]
           + ys[None, :, None] * tab_sin[:, None, None])         # (A, H, W)
    r = np.sign(val) * np.floor(np.abs(val) + 0.5)                # C roundf
    r = r.astype(np.int32) + num_rho // 2
    rho = np.arange(num_rho, dtype=np.int32)
    mt = (r.reshape(num_angle, 1, H * W) == rho.reshape(1, num_rho, 1))
    # 0/1 values -> exact in bf16; halves HBM footprint of the map.
    return jnp.asarray(mt.reshape(num_angle * num_rho, H * W), dtype=jnp.bfloat16)


# ----------------------------------------------------------------------------
# Parameter init (deterministic, synthetic) and BN folding (eval semantics)
# ----------------------------------------------------------------------------
def fold_bn(conv_bias, gamma, beta, run_mean, run_var, eps=1e-5):
    scale = gamma / jnp.sqrt(run_var + eps)
    bias = (conv_bias - run_mean) * scale + beta
    return scale, bias


def init_params(key, input_dim, dim):
    ks = jax.random.split(key, 12)
    p = {}
    p["w1"] = 0.1 * jax.random.normal(ks[0], (dim, input_dim, 1, 1), jnp.float32)
    p["b1"] = 0.1 * jax.random.normal(ks[1], (dim,), jnp.float32)
    p["g1"] = 1.0 + 0.1 * jax.random.normal(ks[2], (dim,), jnp.float32)
    p["be1"] = 0.1 * jax.random.normal(ks[3], (dim,), jnp.float32)

    p["w2"] = 0.1 * jax.random.normal(ks[4], (dim, dim, 3, 3), jnp.float32)
    p["b2"] = 0.1 * jax.random.normal(ks[5], (dim,), jnp.float32)
    p["g2"] = 1.0 + 0.1 * jax.random.normal(ks[6], (dim,), jnp.float32)
    p["be2"] = 0.1 * jax.random.normal(ks[7], (dim,), jnp.float32)

    p["w3"] = 0.1 * jax.random.normal(ks[8], (dim, dim, 3, 3), jnp.float32)
    p["b3"] = 0.1 * jax.random.normal(ks[9], (dim,), jnp.float32)
    p["g3"] = 1.0 + 0.1 * jax.random.normal(ks[10], (dim,), jnp.float32)
    p["be3"] = 0.1 * jax.random.normal(ks[11], (dim,), jnp.float32)

    zeros = jnp.zeros((dim,), jnp.float32)
    ones = jnp.ones((dim,), jnp.float32)
    for i in (1, 2, 3):
        p[f"rm{i}"] = zeros
        p[f"rv{i}"] = ones
    return p


# ----------------------------------------------------------------------------
# RT_Layer forward
# ----------------------------------------------------------------------------
def rt_layer_forward(x_nchw, params, *, dim, num_angle, num_rho):
    Nb, Cin, H, W = x_nchw.shape
    dimp = _round_up(dim, LANE)     # lane-dense channel dim (pad lanes stay 0)

    # ---- first_conv: 1x1 conv + BN + ReLU  (channel matmul) ----------------
    a = x_nchw.transpose(0, 2, 3, 1).reshape(1, Nb * H * W, Cin)
    w1 = _pad_last(params["w1"].reshape(dim, Cin).T, dimp)          # (Cin, dimp)
    s1, c1 = fold_bn(params["b1"], params["g1"], params["be1"],
                     params["rm1"], params["rv1"])
    s1 = _pad_last(s1, dimp)
    c1 = _pad_last(c1, dimp)
    y = fused_matmul(a, w1[None], s1, c1, apply_relu=True,
                     out_dtype=jnp.bfloat16)                        # (1, NbHW, dimp)
    y = y.reshape(Nb, H * W, dimp)                                  # channel-last

    # ---- RT (C_dht): hough accumulation = MmapT @ feat (per batch) ---------
    MmapT = _dht_mapping_matrix_T(H, W, num_angle, num_rho)         # (A*R, H*W)
    ones = jnp.ones((dimp,), jnp.float32)
    zeros = jnp.zeros((dimp,), jnp.float32)
    h = fused_matmul(MmapT[None], y, ones, zeros, apply_relu=False,
                     out_dtype=jnp.bfloat16)                        # (Nb, A*R, dimp)

    # ---- convs: 2x (3x3 conv + BN + ReLU) on the (A, R) hough map ----------
    for i, out_dtype in ((2, jnp.bfloat16), (3, jnp.float32)):
        w = params[f"w{i}"]                                         # (out, in, 3, 3)
        wmat = w.transpose(2, 3, 1, 0).reshape(9, dim, dim)         # (tap, in, out)
        wmat = jnp.pad(wmat, ((0, 0), (0, dimp - dim), (0, dimp - dim)))
        s, c = fold_bn(params[f"b{i}"], params[f"g{i}"], params[f"be{i}"],
                       params[f"rm{i}"], params[f"rv{i}"])
        s = _pad_last(s, dimp)
        c = _pad_last(c, dimp)
        h = conv3x3_bn_relu(h, wmat, s, c, A=num_angle, R=num_rho,
                            apply_relu=True, out_dtype=out_dtype)

    out = h[:, :, :dim].reshape(Nb, num_angle, num_rho, dim)
    return out.transpose(0, 3, 1, 2)                                # (N, dim, A, R)


# ----------------------------------------------------------------------------
if __name__ == "__main__":
    input_dim, dim = 4, 8
    num_angle, num_rho = 8, 8
    N, H, W = 2, 16, 16

    key = jax.random.PRNGKey(0)
    kx, kp = jax.random.split(key)
    x = jax.random.normal(kx, (N, input_dim, H, W), jnp.float32)
    params = init_params(kp, input_dim, dim)

    fwd = jax.jit(partial(rt_layer_forward, dim=dim,
                          num_angle=num_angle, num_rho=num_rho))
    out = fwd(x, params)
    out = jax.block_until_ready(out)
    assert out.shape == (N, dim, num_angle, num_rho), out.shape
    assert bool(jnp.all(jnp.isfinite(out)))
    print("KERNEL_OK")
</pallas_src>

<mosaic_0001>
module attributes {stable_mosaic.version = 11 : i64} {
  func.func @_fused_matmul_kernel(%arg0: i32, %arg1: i32, %arg2: i32, %arg3: i32, %arg4: memref<1x512x4xbf16, #tpu.memory_space<vmem>>, %arg5: memref<1x4x128xbf16, #tpu.memory_space<vmem>>, %arg6: memref<1x128xf32, #tpu.memory_space<vmem>>, %arg7: memref<1x128xf32, #tpu.memory_space<vmem>>, %arg8: memref<1x512x128xbf16, #tpu.memory_space<vmem>>, %arg9: memref<512x128xf32, #tpu.memory_space<vmem>>) attributes {dimension_semantics = [#tpu.dimension_semantics<parallel>, #tpu.dimension_semantics<parallel>, #tpu.dimension_semantics<parallel>, #tpu.dimension_semantics<arbitrary>], iteration_bounds = array<i64: 1, 1, 1, 1>, scalar_prefetch = 0 : i64, scratch_operands = 1 : i64, tpu.core_type = #tpu.core_type<tc>, window_params = [{transform_indices = @transform_0, window_bounds = array<i64: 1, 512, 4>}, {transform_indices = @transform_1, window_bounds = array<i64: 1, 4, 128>}, {transform_indices = @transform_2, window_bounds = array<i64: 1, 128>}, {transform_indices = @transform_3, window_bounds = array<i64: 1, 128>}, {transform_indices = @transform_4, window_bounds = array<i64: 1, 512, 128>}]} {
    %c0_i32 = arith.constant 0 : i32
    %0 = arith.cmpi eq, %arg3, %c0_i32 : i32
    %1 = arith.extui %0 : i1 to i32
    %c0_i32_0 = arith.constant 0 : i32
    %2 = arith.cmpi ne, %1, %c0_i32_0 : i32
    scf.if %2 {
      %cst_12 = arith.constant 0.000000e+00 : f32
      %14 = vector.broadcast %cst_12 : f32 to vector<512x128xf32>
      %c0_13 = arith.constant 0 : index
      %c0_14 = arith.constant 0 : index
      %15 = vector.load %arg9[%c0_13, %c0_14] : memref<512x128xf32, #tpu.memory_space<vmem>>, vector<512x128xf32>
      tpu.vector_store %arg9[%c0_13, %c0_14], %14 {strides = array<i32>} : memref<512x128xf32, #tpu.memory_space<vmem>>, vector<512x128xf32>,
    } else {
    }
    %c0 = arith.constant 0 : index
    %c0_1 = arith.constant 0 : index
    %3 = vector.load %arg9[%c0, %c0_1] : memref<512x128xf32, #tpu.memory_space<vmem>>, vector<512x128xf32>
    %c0_2 = arith.constant 0 : index
    %c0_3 = arith.constant 0 : index
    %c0_4 = arith.constant 0 : index
    %4 = vector.load %arg4[%c0_2, %c0_3, %c0_4] : memref<1x512x4xbf16, #tpu.memory_space<vmem>>, vector<1x512x4xbf16>
    %5 = vector.shape_cast %4 : vector<1x512x4xbf16> to vector<512x4xbf16>
    %c0_5 = arith.constant 0 : index
    %c0_6 = arith.constant 0 : index
    %c0_7 = arith.constant 0 : index
    %6 = vector.load %arg5[%c0_5, %c0_6, %c0_7] : memref<1x4x128xbf16, #tpu.memory_space<vmem>>, vector<1x4x128xbf16>
    %7 = vector.shape_cast %6 : vector<1x4x128xbf16> to vector<4x128xbf16>
    %cst = arith.constant dense<0.000000e+00> : vector<512x128xf32>
    %8 = tpu.matmul %5, %7, %cst {dimension_numbers = #tpu.dot_dimension_numbers<[1], [0], [0], [1], [0, 0, 1, 1], [], []>} : vector<512x4xbf16>, vector<4x128xbf16>, vector<512x128xf32> -> vector<512x128xf32>
    %9 = arith.addf %3, %8 : vector<512x128xf32>
    %c0_8 = arith.constant 0 : index
    %c0_9 = arith.constant 0 : index
    %10 = vector.load %arg9[%c0_8, %c0_9] : memref<512x128xf32, #tpu.memory_space<vmem>>, vector<512x128xf32>
    tpu.vector_store %arg9[%c0_8, %c0_9], %9 {strides = array<i32>} : memref<512x128xf32, #tpu.memory_space<vmem>>, vector<512x128xf32>,
    %c0_i32_10 = arith.constant 0 : i32
    %11 = arith.cmpi eq, %arg3, %c0_i32_10 : i32
    %12 = arith.extui %11 : i1 to i32
    %c0_i32_11 = arith.constant 0 : i32
    %13 = arith.cmpi ne, %12, %c0_i32_11 : i32
    scf.if %13 {
      %c0_12 = arith.constant 0 : index
      %c0_13 = arith.constant 0 : index
      %14 = vector.load %arg9[%c0_12, %c0_13] : memref<512x128xf32, #tpu.memory_space<vmem>>, vector<512x128xf32>
      %c0_14 = arith.constant 0 : index
      %c0_15 = arith.constant 0 : index
      %15 = vector.load %arg6[%c0_14, %c0_15] : memref<1x128xf32, #tpu.memory_space<vmem>>, vector<1x128xf32>
      %16 = vector.broadcast %15 : vector<1x128xf32> to vector<512x128xf32>
      %17 = arith.mulf %14, %16 : vector<512x128xf32>
      %c0_16 = arith.constant 0 : index
      %c0_17 = arith.constant 0 : index
      %18 = vector.load %arg7[%c0_16, %c0_17] : memref<1x128xf32, #tpu.memory_space<vmem>>, vector<1x128xf32>
      %19 = vector.broadcast %18 : vector<1x128xf32> to vector<512x128xf32>
      %20 = arith.addf %17, %19 : vector<512x128xf32>
      %cst_18 = arith.constant 0.000000e+00 : f32
      %21 = vector.broadcast %cst_18 : f32 to vector<512x128xf32>
      %22 = arith.maximumf %20, %21 : vector<512x128xf32>
      %23 = arith.truncf %22 : vector<512x128xf32> to vector<512x128xbf16>
      %c0_19 = arith.constant 0 : index
      %c0_20 = arith.constant 0 : index
      %c0_21 = arith.constant 0 : index
      %24 = vector.load %arg8[%c0_19, %c0_20, %c0_21] : memref<1x512x128xbf16, #tpu.memory_space<vmem>>, vector<1x512x128xbf16>
      %25 = vector.shape_cast %24 : vector<1x512x128xbf16> to vector<512x128xbf16>
      %26 = vector.shape_cast %23 : vector<512x128xbf16> to vector<1x512x128xbf16>
      tpu.vector_store %arg8[%c0_19, %c0_20, %c0_21], %26 {strides = array<i32>} : memref<1x512x128xbf16, #tpu.memory_space<vmem>>, vector<1x512x128xbf16>,
    } else {
    }
    return
  }
  func.func @transform_0(%arg0: i32, %arg1: i32, %arg2: i32, %arg3: i32) -> (i32, i32, i32) {
    %c0_i32 = arith.constant 0 : i32
    %c0_i32_0 = arith.constant 0 : i32
    return %c0_i32, %arg1, %arg3 : i32, i32, i32
  }
  func.func @transform_1(%arg0: i32, %arg1: i32, %arg2: i32, %arg3: i32) -> (i32, i32, i32) {
    %c0_i32 = arith.constant 0 : i32
    %c0_i32_0 = arith.constant 0 : i32
    return %c0_i32, %arg3, %arg2 : i32, i32, i32
  }
  func.func @transform_2(%arg0: i32, %arg1: i32, %arg2: i32, %arg3: i32) -> (i32, i32) {
    %c0_i32 = arith.constant 0 : i32
    %c0_i32_0 = arith.constant 0 : i32
    return %c0_i32, %arg2 : i32, i32
  }
  func.func @transform_3(%arg0: i32, %arg1: i32, %arg2: i32, %arg3: i32) -> (i32, i32) {
    %c0_i32 = arith.constant 0 : i32
    %c0_i32_0 = arith.constant 0 : i32
    return %c0_i32, %arg2 : i32, i32
  }
  func.func @transform_4(%arg0: i32, %arg1: i32, %arg2: i32, %arg3: i32) -> (i32, i32, i32) {
    %c0_i32 = arith.constant 0 : i32
    return %arg0, %arg1, %arg2 : i32, i32, i32
  }
}

module attributes {stable_mosaic.version = 11 : i64} {
  func.func @_fused_matmul_kernel(%arg0: i32, %arg1: i32, %arg2: i32, %arg3: i32, %arg4: memref<1x64x256xbf16, #tpu.memory_space<vmem>>, %arg5: memref<1x256x128xbf16, #tpu.memory_space<vmem>>, %arg6: memref<1x128xf32, #tpu.memory_space<vmem>>, %arg7: memref<1x128xf32, #tpu.memory_space<vmem>>, %arg8: memref<1x64x128xbf16, #tpu.memory_space<vmem>>, %arg9: memref<64x128xf32, #tpu.memory_space<vmem>>) attributes {dimension_semantics = [#tpu.dimension_semantics<parallel>, #tpu.dimension_semantics<parallel>, #tpu.dimension_semantics<parallel>, #tpu.dimension_semantics<arbitrary>], iteration_bounds = array<i64: 2, 1, 1, 1>, scalar_prefetch = 0 : i64, scratch_operands = 1 : i64, tpu.core_type = #tpu.core_type<tc>, window_params = [{transform_indices = @transform_0, window_bounds = array<i64: 1, 64, 256>}, {transform_indices = @transform_1, window_bounds = array<i64: 1, 256, 128>}, {transform_indices = @transform_2, window_bounds = array<i64: 1, 128>}, {transform_indices = @transform_3, window_bounds = array<i64: 1, 128>}, {transform_indices = @transform_4, window_bounds = array<i64: 1, 64, 128>}]} {
    %c0_i32 = arith.constant 0 : i32
    %0 = arith.cmpi eq, %arg3, %c0_i32 : i32
    %1 = arith.extui %0 : i1 to i32
    %c0_i32_0 = arith.constant 0 : i32
    %2 = arith.cmpi ne, %1, %c0_i32_0 : i32
    scf.if %2 {
      %cst_12 = arith.constant 0.000000e+00 : f32
      %14 = vector.broadcast %cst_12 : f32 to vector<64x128xf32>
      %c0_13 = arith.constant 0 : index
      %c0_14 = arith.constant 0 : index
      %15 = vector.load %arg9[%c0_13, %c0_14] : memref<64x128xf32, #tpu.memory_space<vmem>>, vector<64x128xf32>
      tpu.vector_store %arg9[%c0_13, %c0_14], %14 {strides = array<i32>} : memref<64x128xf32, #tpu.memory_space<vmem>>, vector<64x128xf32>,
    } else {
    }
    %c0 = arith.constant 0 : index
    %c0_1 = arith.constant 0 : index
    %3 = vector.load %arg9[%c0, %c0_1] : memref<64x128xf32, #tpu.memory_space<vmem>>, vector<64x128xf32>
    %c0_2 = arith.constant 0 : index
    %c0_3 = arith.constant 0 : index
    %c0_4 = arith.constant 0 : index
    %4 = vector.load %arg4[%c0_2, %c0_3, %c0_4] : memref<1x64x256xbf16, #tpu.memory_space<vmem>>, vector<1x64x256xbf16>
    %5 = vector.shape_cast %4 : vector<1x64x256xbf16> to vector<64x256xbf16>
    %c0_5 = arith.constant 0 : index
    %c0_6 = arith.constant 0 : index
    %c0_7 = arith.constant 0 : index
    %6 = vector.load %arg5[%c0_5, %c0_6, %c0_7] : memref<1x256x128xbf16, #tpu.memory_space<vmem>>, vector<1x256x128xbf16>
    %7 = vector.shape_cast %6 : vector<1x256x128xbf16> to vector<256x128xbf16>
    %cst = arith.constant dense<0.000000e+00> : vector<64x128xf32>
    %8 = tpu.matmul %5, %7, %cst {dimension_numbers = #tpu.dot_dimension_numbers<[1], [0], [0], [1], [0, 0, 1, 1], [], []>} : vector<64x256xbf16>, vector<256x128xbf16>, vector<64x128xf32> -> vector<64x128xf32>
    %9 = arith.addf %3, %8 : vector<64x128xf32>
    %c0_8 = arith.constant 0 : index
    %c0_9 = arith.constant 0 : index
    %10 = vector.load %arg9[%c0_8, %c0_9] : memref<64x128xf32, #tpu.memory_space<vmem>>, vector<64x128xf32>
    tpu.vector_store %arg9[%c0_8, %c0_9], %9 {strides = array<i32>} : memref<64x128xf32, #tpu.memory_space<vmem>>, vector<64x128xf32>,
    %c0_i32_10 = arith.constant 0 : i32
    %11 = arith.cmpi eq, %arg3, %c0_i32_10 : i32
    %12 = arith.extui %11 : i1 to i32
    %c0_i32_11 = arith.constant 0 : i32
    %13 = arith.cmpi ne, %12, %c0_i32_11 : i32
    scf.if %13 {
      %c0_12 = arith.constant 0 : index
      %c0_13 = arith.constant 0 : index
      %14 = vector.load %arg9[%c0_12, %c0_13] : memref<64x128xf32, #tpu.memory_space<vmem>>, vector<64x128xf32>
      %c0_14 = arith.constant 0 : index
      %c0_15 = arith.constant 0 : index
      %15 = vector.load %arg6[%c0_14, %c0_15] : memref<1x128xf32, #tpu.memory_space<vmem>>, vector<1x128xf32>
      %16 = vector.broadcast %15 : vector<1x128xf32> to vector<64x128xf32>
      %17 = arith.mulf %14, %16 : vector<64x128xf32>
      %c0_16 = arith.constant 0 : index
      %c0_17 = arith.constant 0 : index
      %18 = vector.load %arg7[%c0_16, %c0_17] : memref<1x128xf32, #tpu.memory_space<vmem>>, vector<1x128xf32>
      %19 = vector.broadcast %18 : vector<1x128xf32> to vector<64x128xf32>
      %20 = arith.addf %17, %19 : vector<64x128xf32>
      %21 = arith.truncf %20 : vector<64x128xf32> to vector<64x128xbf16>
      %c0_18 = arith.constant 0 : index
      %c0_19 = arith.constant 0 : index
      %c0_20 = arith.constant 0 : index
      %22 = vector.load %arg8[%c0_18, %c0_19, %c0_20] : memref<1x64x128xbf16, #tpu.memory_space<vmem>>, vector<1x64x128xbf16>
      %23 = vector.shape_cast %22 : vector<1x64x128xbf16> to vector<64x128xbf16>
      %24 = vector.shape_cast %21 : vector<64x128xbf16> to vector<1x64x128xbf16>
      tpu.vector_store %arg8[%c0_18, %c0_19, %c0_20], %24 {strides = array<i32>} : memref<1x64x128xbf16, #tpu.memory_space<vmem>>, vector<1x64x128xbf16>,
    } else {
    }
    return
  }
  func.func @transform_0(%arg0: i32, %arg1: i32, %arg2: i32, %arg3: i32) -> (i32, i32, i32) {
    %c0_i32 = arith.constant 0 : i32
    %c0_i32_0 = arith.constant 0 : i32
    return %c0_i32, %arg1, %arg3 : i32, i32, i32
  }
  func.func @transform_1(%arg0: i32, %arg1: i32, %arg2: i32, %arg3: i32) -> (i32, i32, i32) {
    %c0_i32 = arith.constant 0 : i32
    return %arg0, %arg3, %arg2 : i32, i32, i32
  }
  func.func @transform_2(%arg0: i32, %arg1: i32, %arg2: i32, %arg3: i32) -> (i32, i32) {
    %c0_i32 = arith.constant 0 : i32
    %c0_i32_0 = arith.constant 0 : i32
    return %c0_i32, %arg2 : i32, i32
  }
  func.func @transform_3(%arg0: i32, %arg1: i32, %arg2: i32, %arg3: i32) -> (i32, i32) {
    %c0_i32 = arith.constant 0 : i32
    %c0_i32_0 = arith.constant 0 : i32
    return %c0_i32, %arg2 : i32, i32
  }
  func.func @transform_4(%arg0: i32, %arg1: i32, %arg2: i32, %arg3: i32) -> (i32, i32, i32) {
    %c0_i32 = arith.constant 0 : i32
    return %arg0, %arg1, %arg2 : i32, i32, i32
  }
}

module attributes {stable_mosaic.version = 11 : i64} {
  func.func @_conv3x3_kernel(%arg0: i32, %arg1: memref<1x82x128xbf16, #tpu.memory_space<vmem>>, %arg2: memref<9x128x128xbf16, #tpu.memory_space<vmem>>, %arg3: memref<1x128xf32, #tpu.memory_space<vmem>>, %arg4: memref<1x128xf32, #tpu.memory_space<vmem>>, %arg5: memref<1x64x128xbf16, #tpu.memory_space<vmem>>) attributes {dimension_semantics = [#tpu.dimension_semantics<parallel>], iteration_bounds = array<i64: 2>, scalar_prefetch = 0 : i64, scratch_operands = 0 : i64, tpu.core_type = #tpu.core_type<tc>, window_params = [{transform_indices = @transform_0, window_bounds = array<i64: 1, 82, 128>}, {pipeline_mode = #tpu.pipeline_mode<synchronous>, transform_indices = @transform_1, window_bounds = array<i64: 9, 128, 128>}, {pipeline_mode = #tpu.pipeline_mode<synchronous>, transform_indices = @transform_2, window_bounds = array<i64: 1, 128>}, {pipeline_mode = #tpu.pipeline_mode<synchronous>, transform_indices = @transform_3, window_bounds = array<i64: 1, 128>}, {transform_indices = @transform_4, window_bounds = array<i64: 1, 64, 128>}]} {
    %c0 = arith.constant 0 : index
    %c0_0 = arith.constant 0 : index
    %c0_1 = arith.constant 0 : index
    %0 = vector.load %arg1[%c0, %c0_0, %c0_1] : memref<1x82x128xbf16, #tpu.memory_space<vmem>>, vector<1x82x128xbf16>
    %1 = vector.shape_cast %0 : vector<1x82x128xbf16> to vector<82x128xbf16>
    %2 = arith.extf %1 : vector<82x128xbf16> to vector<82x128xf32>
    %3 = tpu.iota {dimensions = array<i32: 0>} : vector<64x1xi32>
    %c8_i32 = arith.constant 8 : i32
    %c0_i32 = arith.constant 0 : i32
    %4 = arith.cmpi eq, %c8_i32, %c0_i32 : i32
    %c1_i32 = arith.constant 1 : i32
    %5 = arith.select %4, %c1_i32, %c8_i32 : i32
    %6 = vector.broadcast %5 : i32 to vector<64x1xi32>
    %7 = arith.remsi %3, %6 : vector<64x1xi32>
    %c0_i32_2 = arith.constant 0 : i32
    %8 = vector.broadcast %c0_i32_2 : i32 to vector<64x1xi32>
    %9 = arith.cmpi ne, %7, %8 : vector<64x1xi32>
    %c0_i32_3 = arith.constant 0 : i32
    %10 = vector.broadcast %c0_i32_3 : i32 to vector<64x1xi32>
    %11 = arith.cmpi slt, %7, %10 : vector<64x1xi32>
    %c0_i32_4 = arith.constant 0 : i32
    %12 = arith.cmpi slt, %5, %c0_i32_4 : i32
    %13 = vector.broadcast %12 : i1 to vector<64x1xi1>
    %14 = vector.broadcast %13 : vector<64x1xi1> to vector<64x1xi1>
    %15 = arith.xori %11, %14 : vector<64x1xi1>
    %16 = arith.andi %15, %9 : vector<64x1xi1>
    %17 = vector.broadcast %5 : i32 to vector<64x1xi32>
    %18 = arith.addi %7, %17 : vector<64x1xi32>
    %19 = arith.select %16, %18, %7 : vector<64x1xi1>, vector<64x1xi32>
    %cst = arith.constant 0.000000e+00 : f32
    %20 = vector.broadcast %cst : f32 to vector<64x128xf32>
    %21 = vector.extract_strided_slice %2 {offsets = [0, 0], sizes = [64, 128], strides = [1, 1]} : vector<82x128xf32> to vector<64x128xf32>
    %c1_i32_5 = arith.constant 1 : i32
    %22 = vector.broadcast %c1_i32_5 : i32 to vector<64x1xi32>
    %23 = arith.cmpi sge, %19, %22 : vector<64x1xi32>
    %cst_6 = arith.constant 0.000000e+00 : f32
    %24 = vector.shape_cast %23 : vector<64x1xi1> to vector<64x1xi1>
    %25 = vector.broadcast %24 : vector<64x1xi1> to vector<64x128xi1>
    %26 = vector.broadcast %cst_6 : f32 to vector<64x128xf32>
    %27 = arith.select %25, %21, %26 : vector<64x128xi1>, vector<64x128xf32>
    %28 = arith.truncf %27 : vector<64x128xf32> to vector<64x128xbf16>
    %c0_7 = arith.constant 0 : index
    %c0_8 = arith.constant 0 : index
    %c0_9 = arith.constant 0 : index
    %29 = vector.load %arg2[%c0_7, %c0_8, %c0_9] : memref<9x128x128xbf16, #tpu.memory_space<vmem>>, vector<1x128x128xbf16>
    %30 = vector.shape_cast %29 : vector<1x128x128xbf16> to vector<128x128xbf16>
    %cst_10 = arith.constant dense<0.000000e+00> : vector<64x128xf32>
    %31 = tpu.matmul %28, %30, %cst_10 {dimension_numbers = #tpu.dot_dimension_numbers<[1], [0], [0], [1], [0, 0, 1, 1], [], []>} : vector<64x128xbf16>, vector<128x128xbf16>, vector<64x128xf32> -> vector<64x128xf32>
    %32 = arith.addf %20, %31 : vector<64x128xf32>
    %33 = vector.extract_strided_slice %2 {offsets = [1, 0], sizes = [64, 128], strides = [1, 1]} : vector<82x128xf32> to vector<64x128xf32>
    %34 = arith.truncf %33 : vector<64x128xf32> to vector<64x128xbf16>
    %c1 = arith.constant 1 : index
    %c0_11 = arith.constant 0 : index
    %c0_12 = arith.constant 0 : index
    %35 = vector.load %arg2[%c1, %c0_11, %c0_12] : memref<9x128x128xbf16, #tpu.memory_space<vmem>>, vector<1x128x128xbf16>
    %36 = vector.shape_cast %35 : vector<1x128x128xbf16> to vector<128x128xbf16>
    %cst_13 = arith.constant dense<0.000000e+00> : vector<64x128xf32>
    %37 = tpu.matmul %34, %36, %cst_13 {dimension_numbers = #tpu.dot_dimension_numbers<[1], [0], [0], [1], [0, 0, 1, 1], [], []>} : vector<64x128xbf16>, vector<128x128xbf16>, vector<64x128xf32> -> vector<64x128xf32>
    %38 = arith.addf %32, %37 : vector<64x128xf32>
    %39 = vector.extract_strided_slice %2 {offsets = [2, 0], sizes = [64, 128], strides = [1, 1]} : vector<82x128xf32> to vector<64x128xf32>
    %c6_i32 = arith.constant 6 : i32
    %40 = vector.broadcast %c6_i32 : i32 to vector<64x1xi32>
    %41 = arith.cmpi sle, %19, %40 : vector<64x1xi32>
    %cst_14 = arith.constant 0.000000e+00 : f32
    %42 = vector.shape_cast %41 : vector<64x1xi1> to vector<64x1xi1>
    %43 = vector.broadcast %42 : vector<64x1xi1> to vector<64x128xi1>
    %44 = vector.broadcast %cst_14 : f32 to vector<64x128xf32>
    %45 = arith.select %43, %39, %44 : vector<64x128xi1>, vector<64x128xf32>
    %46 = arith.truncf %45 : vector<64x128xf32> to vector<64x128xbf16>
    %c2 = arith.constant 2 : index
    %c0_15 = arith.constant 0 : index
    %c0_16 = arith.constant 0 : index
    %47 = vector.load %arg2[%c2, %c0_15, %c0_16] : memref<9x128x128xbf16, #tpu.memory_space<vmem>>, vector<1x128x128xbf16>
    %48 = vector.shape_cast %47 : vector<1x128x128xbf16> to vector<128x128xbf16>
    %cst_17 = arith.constant dense<0.000000e+00> : vector<64x128xf32>
    %49 = tpu.matmul %46, %48, %cst_17 {dimension_numbers = #tpu.dot_dimension_numbers<[1], [0], [0], [1], [0, 0, 1, 1], [], []>} : vector<64x128xbf16>, vector<128x128xbf16>, vector<64x128xf32> -> vector<64x128xf32>
    %50 = arith.addf %38, %49 : vector<64x128xf32>
    %51 = vector.extract_strided_slice %2 {offsets = [8, 0], sizes = [64, 128], strides = [1, 1]} : vector<82x128xf32> to vector<64x128xf32>
    %c1_i32_18 = arith.constant 1 : i32
    %52 = vector.broadcast %c1_i32_18 : i32 to vector<64x1xi32>
    %53 = arith.cmpi sge, %19, %52 : vector<64x1xi32>
    %cst_19 = arith.constant 0.000000e+00 : f32
    %54 = vector.shape_cast %53 : vector<64x1xi1> to vector<64x1xi1>
    %55 = vector.broadcast %54 : vector<64x1xi1> to vector<64x128xi1>
    %56 = vector.broadcast %cst_19 : f32 to vector<64x128xf32>
    %57 = arith.select %55, %51, %56 : vector<64x128xi1>, vector<64x128xf32>
    %58 = arith.truncf %57 : vector<64x128xf32> to vector<64x128xbf16>
    %c3 = arith.constant 3 : index
    %c0_20 = arith.constant 0 : index
    %c0_21 = arith.constant 0 : index
    %59 = vector.load %arg2[%c3, %c0_20, %c0_21] : memref<9x128x128xbf16, #tpu.memory_space<vmem>>, vector<1x128x128xbf16>
    %60 = vector.shape_cast %59 : vector<1x128x128xbf16> to vector<128x128xbf16>
    %cst_22 = arith.constant dense<0.000000e+00> : vector<64x128xf32>
    %61 = tpu.matmul %58, %60, %cst_22 {dimension_numbers = #tpu.dot_dimension_numbers<[1], [0], [0], [1], [0, 0, 1, 1], [], []>} : vector<64x128xbf16>, vector<128x128xbf16>, vector<64x128xf32> -> vector<64x128xf32>
    %62 = arith.addf %50, %61 : vector<64x128xf32>
    %63 = vector.extract_strided_slice %2 {offsets = [9, 0], sizes = [64, 128], strides = [1, 1]} : vector<82x128xf32> to vector<64x128xf32>
    %64 = arith.truncf %63 : vector<64x128xf32> to vector<64x128xbf16>
    %c4 = arith.constant 4 : index
    %c0_23 = arith.constant 0 : index
    %c0_24 = arith.constant 0 : index
    %65 = vector.load %arg2[%c4, %c0_23, %c0_24] : memref<9x128x128xbf16, #tpu.memory_space<vmem>>, vector<1x128x128xbf16>
    %66 = vector.shape_cast %65 : vector<1x128x128xbf16> to vector<128x128xbf16>
    %cst_25 = arith.constant dense<0.000000e+00> : vector<64x128xf32>
    %67 = tpu.matmul %64, %66, %cst_25 {dimension_numbers = #tpu.dot_dimension_numbers<[1], [0], [0], [1], [0, 0, 1, 1], [], []>} : vector<64x128xbf16>, vector<128x128xbf16>, vector<64x128xf32> -> vector<64x128xf32>
    %68 = arith.addf %62, %67 : vector<64x128xf32>
    %69 = vector.extract_strided_slice %2 {offsets = [10, 0], sizes = [64, 128], strides = [1, 1]} : vector<82x128xf32> to vector<64x128xf32>
    %c6_i32_26 = arith.constant 6 : i32
    %70 = vector.broadcast %c6_i32_26 : i32 to vector<64x1xi32>
    %71 = arith.cmpi sle, %19, %70 : vector<64x1xi32>
    %cst_27 = arith.constant 0.000000e+00 : f32
    %72 = vector.shape_cast %71 : vector<64x1xi1> to vector<64x1xi1>
    %73 = vector.broadcast %72 : vector<64x1xi1> to vector<64x128xi1>
    %74 = vector.broadcast %cst_27 : f32 to vector<64x128xf32>
    %75 = arith.select %73, %69, %74 : vector<64x128xi1>, vector<64x128xf32>
    %76 = arith.truncf %75 : vector<64x128xf32> to vector<64x128xbf16>
    %c5 = arith.constant 5 : index
    %c0_28 = arith.constant 0 : index
    %c0_29 = arith.constant 0 : index
    %77 = vector.load %arg2[%c5, %c0_28, %c0_29] : memref<9x128x128xbf16, #tpu.memory_space<vmem>>, vector<1x128x128xbf16>
    %78 = vector.shape_cast %77 : vector<1x128x128xbf16> to vector<128x128xbf16>
    %cst_30 = arith.constant dense<0.000000e+00> : vector<64x128xf32>
    %79 = tpu.matmul %76, %78, %cst_30 {dimension_numbers = #tpu.dot_dimension_numbers<[1], [0], [0], [1], [0, 0, 1, 1], [], []>} : vector<64x128xbf16>, vector<128x128xbf16>, vector<64x128xf32> -> vector<64x128xf32>
    %80 = arith.addf %68, %79 : vector<64x128xf32>
    %81 = vector.extract_strided_slice %2 {offsets = [16, 0], sizes = [64, 128], strides = [1, 1]} : vector<82x128xf32> to vector<64x128xf32>
    %c1_i32_31 = arith.constant 1 : i32
    %82 = vector.broadcast %c1_i32_31 : i32 to vector<64x1xi32>
    %83 = arith.cmpi sge, %19, %82 : vector<64x1xi32>
    %cst_32 = arith.constant 0.000000e+00 : f32
    %84 = vector.shape_cast %83 : vector<64x1xi1> to vector<64x1xi1>
    %85 = vector.broadcast %84 : vector<64x1xi1> to vector<64x128xi1>
    %86 = vector.broadcast %cst_32 : f32 to vector<64x128xf32>
    %87 = arith.select %85, %81, %86 : vector<64x128xi1>, vector<64x128xf32>
    %88 = arith.truncf %87 : vector<64x128xf32> to vector<64x128xbf16>
    %c6 = arith.constant 6 : index
    %c0_33 = arith.constant 0 : index
    %c0_34 = arith.constant 0 : index
    %89 = vector.load %arg2[%c6, %c0_33, %c0_34] : memref<9x128x128xbf16, #tpu.memory_space<vmem>>, vector<1x128x128xbf16>
    %90 = vector.shape_cast %89 : vector<1x128x128xbf16> to vector<128x128xbf16>
    %cst_35 = arith.constant dense<0.000000e+00> : vector<64x128xf32>
    %91 = tpu.matmul %88, %90, %cst_35 {dimension_numbers = #tpu.dot_dimension_numbers<[1], [0], [0], [1], [0, 0, 1, 1], [], []>} : vector<64x128xbf16>, vector<128x128xbf16>, vector<64x128xf32> -> vector<64x128xf32>
    %92 = arith.addf %80, %91 : vector<64x128xf32>
    %93 = vector.extract_strided_slice %2 {offsets = [17, 0], sizes = [64, 128], strides = [1, 1]} : vector<82x128xf32> to vector<64x128xf32>
    %94 = arith.truncf %93 : vector<64x128xf32> to vector<64x128xbf16>
    %c7 = arith.constant 7 : index
    %c0_36 = arith.constant 0 : index
    %c0_37 = arith.constant 0 : index
    %95 = vector.load %arg2[%c7, %c0_36, %c0_37] : memref<9x128x128xbf16, #tpu.memory_space<vmem>>, vector<1x128x128xbf16>
    %96 = vector.shape_cast %95 : vector<1x128x128xbf16> to vector<128x128xbf16>
    %cst_38 = arith.constant dense<0.000000e+00> : vector<64x128xf32>
    %97 = tpu.matmul %94, %96, %cst_38 {dimension_numbers = #tpu.dot_dimension_numbers<[1], [0], [0], [1], [0, 0, 1, 1], [], []>} : vector<64x128xbf16>, vector<128x128xbf16>, vector<64x128xf32> -> vector<64x128xf32>
    %98 = arith.addf %92, %97 : vector<64x128xf32>
    %99 = vector.extract_strided_slice %2 {offsets = [18, 0], sizes = [64, 128], strides = [1, 1]} : vector<82x128xf32> to vector<64x128xf32>
    %c6_i32_39 = arith.constant 6 : i32
    %100 = vector.broadcast %c6_i32_39 : i32 to vector<64x1xi32>
    %101 = arith.cmpi sle, %19, %100 : vector<64x1xi32>
    %cst_40 = arith.constant 0.000000e+00 : f32
    %102 = vector.shape_cast %101 : vector<64x1xi1> to vector<64x1xi1>
    %103 = vector.broadcast %102 : vector<64x1xi1> to vector<64x128xi1>
    %104 = vector.broadcast %cst_40 : f32 to vector<64x128xf32>
    %105 = arith.select %103, %99, %104 : vector<64x128xi1>, vector<64x128xf32>
    %106 = arith.truncf %105 : vector<64x128xf32> to vector<64x128xbf16>
    %c8 = arith.constant 8 : index
    %c0_41 = arith.constant 0 : index
    %c0_42 = arith.constant 0 : index
    %107 = vector.load %arg2[%c8, %c0_41, %c0_42] : memref<9x128x128xbf16, #tpu.memory_space<vmem>>, vector<1x128x128xbf16>
    %108 = vector.shape_cast %107 : vector<1x128x128xbf16> to vector<128x128xbf16>
    %cst_43 = arith.constant dense<0.000000e+00> : vector<64x128xf32>
    %109 = tpu.matmul %106, %108, %cst_43 {dimension_numbers = #tpu.dot_dimension_numbers<[1], [0], [0], [1], [0, 0, 1, 1], [], []>} : vector<64x128xbf16>, vector<128x128xbf16>, vector<64x128xf32> -> vector<64x128xf32>
    %110 = arith.addf %98, %109 : vector<64x128xf32>
    %c0_44 = arith.constant 0 : index
    %c0_45 = arith.constant 0 : index
    %111 = vector.load %arg3[%c0_44, %c0_45] : memref<1x128xf32, #tpu.memory_space<vmem>>, vector<1x128xf32>
    %112 = vector.broadcast %111 : vector<1x128xf32> to vector<64x128xf32>
    %113 = arith.mulf %110, %112 : vector<64x128xf32>
    %c0_46 = arith.constant 0 : index
    %c0_47 = arith.constant 0 : index
    %114 = vector.load %arg4[%c0_46, %c0_47] : memref<1x128xf32, #tpu.memory_space<vmem>>, vector<1x128xf32>
    %115 = vector.broadcast %114 : vector<1x128xf32> to vector<64x128xf32>
    %116 = arith.addf %113, %115 : vector<64x128xf32>
    %cst_48 = arith.constant 0.000000e+00 : f32
    %117 = vector.broadcast %cst_48 : f32 to vector<64x128xf32>
    %118 = arith.maximumf %116, %117 : vector<64x128xf32>
    %119 = arith.truncf %118 : vector<64x128xf32> to vector<64x128xbf16>
    %c0_49 = arith.constant 0 : index
    %c0_50 = arith.constant 0 : index
    %c0_51 = arith.constant 0 : index
    %120 = vector.load %arg5[%c0_49, %c0_50, %c0_51] : memref<1x64x128xbf16, #tpu.memory_space<vmem>>, vector<1x64x128xbf16>
    %121 = vector.shape_cast %120 : vector<1x64x128xbf16> to vector<64x128xbf16>
    %122 = vector.shape_cast %119 : vector<64x128xbf16> to vector<1x64x128xbf16>
    tpu.vector_store %arg5[%c0_49, %c0_50, %c0_51], %122 {strides = array<i32>} : memref<1x64x128xbf16, #tpu.memory_space<vmem>>, vector<1x64x128xbf16>,
    return
  }
  func.func @transform_0(%arg0: i32) -> (i32, i32, i32) {
    %c0_i32 = arith.constant 0 : i32
    %c0_i32_0 = arith.constant 0 : i32
    %c0_i32_1 = arith.constant 0 : i32
    return %arg0, %c0_i32, %c0_i32_0 : i32, i32, i32
  }
  func.func @transform_1(%arg0: i32) -> (i32, i32, i32) {
    %c0_i32 = arith.constant 0 : i32
    %c0_i32_0 = arith.constant 0 : i32
    %c0_i32_1 = arith.constant 0 : i32
    %c0_i32_2 = arith.constant 0 : i32
    return %c0_i32, %c0_i32_0, %c0_i32_1 : i32, i32, i32
  }
  func.func @transform_2(%arg0: i32) -> (i32, i32) {
    %c0_i32 = arith.constant 0 : i32
    %c0_i32_0 = arith.constant 0 : i32
    %c0_i32_1 = arith.constant 0 : i32
    return %c0_i32, %c0_i32_0 : i32, i32
  }
  func.func @transform_3(%arg0: i32) -> (i32, i32) {
    %c0_i32 = arith.constant 0 : i32
    %c0_i32_0 = arith.constant 0 : i32
    %c0_i32_1 = arith.constant 0 : i32
    return %c0_i32, %c0_i32_0 : i32, i32
  }
  func.func @transform_4(%arg0: i32) -> (i32, i32, i32) {
    %c0_i32 = arith.constant 0 : i32
    %c0_i32_0 = arith.constant 0 : i32
    %c0_i32_1 = arith.constant 0 : i32
    return %arg0, %c0_i32, %c0_i32_0 : i32, i32, i32
  }
}

module attributes {stable_mosaic.version = 11 : i64} {
  func.func @_conv3x3_kernel(%arg0: i32, %arg1: memref<1x82x128xbf16, #tpu.memory_space<vmem>>, %arg2: memref<9x128x128xbf16, #tpu.memory_space<vmem>>, %arg3: memref<1x128xf32, #tpu.memory_space<vmem>>, %arg4: memref<1x128xf32, #tpu.memory_space<vmem>>, %arg5: memref<1x64x128xf32, #tpu.memory_space<vmem>>) attributes {dimension_semantics = [#tpu.dimension_semantics<parallel>], iteration_bounds = array<i64: 2>, scalar_prefetch = 0 : i64, scratch_operands = 0 : i64, tpu.core_type = #tpu.core_type<tc>, window_params = [{transform_indices = @transform_0, window_bounds = array<i64: 1, 82, 128>}, {pipeline_mode = #tpu.pipeline_mode<synchronous>, transform_indices = @transform_1, window_bounds = array<i64: 9, 128, 128>}, {pipeline_mode = #tpu.pipeline_mode<synchronous>, transform_indices = @transform_2, window_bounds = array<i64: 1, 128>}, {pipeline_mode = #tpu.pipeline_mode<synchronous>, transform_indices = @transform_3, window_bounds = array<i64: 1, 128>}, {transform_indices = @transform_4, window_bounds = array<i64: 1, 64, 128>}]} {
    %c0 = arith.constant 0 : index
    %c0_0 = arith.constant 0 : index
    %c0_1 = arith.constant 0 : index
    %0 = vector.load %arg1[%c0, %c0_0, %c0_1] : memref<1x82x128xbf16, #tpu.memory_space<vmem>>, vector<1x82x128xbf16>
    %1 = vector.shape_cast %0 : vector<1x82x128xbf16> to vector<82x128xbf16>
    %2 = arith.extf %1 : vector<82x128xbf16> to vector<82x128xf32>
    %3 = tpu.iota {dimensions = array<i32: 0>} : vector<64x1xi32>
    %c8_i32 = arith.constant 8 : i32
    %c0_i32 = arith.constant 0 : i32
    %4 = arith.cmpi eq, %c8_i32, %c0_i32 : i32
    %c1_i32 = arith.constant 1 : i32
    %5 = arith.select %4, %c1_i32, %c8_i32 : i32
    %6 = vector.broadcast %5 : i32 to vector<64x1xi32>
    %7 = arith.remsi %3, %6 : vector<64x1xi32>
    %c0_i32_2 = arith.constant 0 : i32
    %8 = vector.broadcast %c0_i32_2 : i32 to vector<64x1xi32>
    %9 = arith.cmpi ne, %7, %8 : vector<64x1xi32>
    %c0_i32_3 = arith.constant 0 : i32
    %10 = vector.broadcast %c0_i32_3 : i32 to vector<64x1xi32>
    %11 = arith.cmpi slt, %7, %10 : vector<64x1xi32>
    %c0_i32_4 = arith.constant 0 : i32
    %12 = arith.cmpi slt, %5, %c0_i32_4 : i32
    %13 = vector.broadcast %12 : i1 to vector<64x1xi1>
    %14 = vector.broadcast %13 : vector<64x1xi1> to vector<64x1xi1>
    %15 = arith.xori %11, %14 : vector<64x1xi1>
    %16 = arith.andi %15, %9 : vector<64x1xi1>
    %17 = vector.broadcast %5 : i32 to vector<64x1xi32>
    %18 = arith.addi %7, %17 : vector<64x1xi32>
    %19 = arith.select %16, %18, %7 : vector<64x1xi1>, vector<64x1xi32>
    %cst = arith.constant 0.000000e+00 : f32
    %20 = vector.broadcast %cst : f32 to vector<64x128xf32>
    %21 = vector.extract_strided_slice %2 {offsets = [0, 0], sizes = [64, 128], strides = [1, 1]} : vector<82x128xf32> to vector<64x128xf32>
    %c1_i32_5 = arith.constant 1 : i32
    %22 = vector.broadcast %c1_i32_5 : i32 to vector<64x1xi32>
    %23 = arith.cmpi sge, %19, %22 : vector<64x1xi32>
    %cst_6 = arith.constant 0.000000e+00 : f32
    %24 = vector.shape_cast %23 : vector<64x1xi1> to vector<64x1xi1>
    %25 = vector.broadcast %24 : vector<64x1xi1> to vector<64x128xi1>
    %26 = vector.broadcast %cst_6 : f32 to vector<64x128xf32>
    %27 = arith.select %25, %21, %26 : vector<64x128xi1>, vector<64x128xf32>
    %28 = arith.truncf %27 : vector<64x128xf32> to vector<64x128xbf16>
    %c0_7 = arith.constant 0 : index
    %c0_8 = arith.constant 0 : index
    %c0_9 = arith.constant 0 : index
    %29 = vector.load %arg2[%c0_7, %c0_8, %c0_9] : memref<9x128x128xbf16, #tpu.memory_space<vmem>>, vector<1x128x128xbf16>
    %30 = vector.shape_cast %29 : vector<1x128x128xbf16> to vector<128x128xbf16>
    %cst_10 = arith.constant dense<0.000000e+00> : vector<64x128xf32>
    %31 = tpu.matmul %28, %30, %cst_10 {dimension_numbers = #tpu.dot_dimension_numbers<[1], [0], [0], [1], [0, 0, 1, 1], [], []>} : vector<64x128xbf16>, vector<128x128xbf16>, vector<64x128xf32> -> vector<64x128xf32>
    %32 = arith.addf %20, %31 : vector<64x128xf32>
    %33 = vector.extract_strided_slice %2 {offsets = [1, 0], sizes = [64, 128], strides = [1, 1]} : vector<82x128xf32> to vector<64x128xf32>
    %34 = arith.truncf %33 : vector<64x128xf32> to vector<64x128xbf16>
    %c1 = arith.constant 1 : index
    %c0_11 = arith.constant 0 : index
    %c0_12 = arith.constant 0 : index
    %35 = vector.load %arg2[%c1, %c0_11, %c0_12] : memref<9x128x128xbf16, #tpu.memory_space<vmem>>, vector<1x128x128xbf16>
    %36 = vector.shape_cast %35 : vector<1x128x128xbf16> to vector<128x128xbf16>
    %cst_13 = arith.constant dense<0.000000e+00> : vector<64x128xf32>
    %37 = tpu.matmul %34, %36, %cst_13 {dimension_numbers = #tpu.dot_dimension_numbers<[1], [0], [0], [1], [0, 0, 1, 1], [], []>} : vector<64x128xbf16>, vector<128x128xbf16>, vector<64x128xf32> -> vector<64x128xf32>
    %38 = arith.addf %32, %37 : vector<64x128xf32>
    %39 = vector.extract_strided_slice %2 {offsets = [2, 0], sizes = [64, 128], strides = [1, 1]} : vector<82x128xf32> to vector<64x128xf32>
    %c6_i32 = arith.constant 6 : i32
    %40 = vector.broadcast %c6_i32 : i32 to vector<64x1xi32>
    %41 = arith.cmpi sle, %19, %40 : vector<64x1xi32>
    %cst_14 = arith.constant 0.000000e+00 : f32
    %42 = vector.shape_cast %41 : vector<64x1xi1> to vector<64x1xi1>
    %43 = vector.broadcast %42 : vector<64x1xi1> to vector<64x128xi1>
    %44 = vector.broadcast %cst_14 : f32 to vector<64x128xf32>
    %45 = arith.select %43, %39, %44 : vector<64x128xi1>, vector<64x128xf32>
    %46 = arith.truncf %45 : vector<64x128xf32> to vector<64x128xbf16>
    %c2 = arith.constant 2 : index
    %c0_15 = arith.constant 0 : index
    %c0_16 = arith.constant 0 : index
    %47 = vector.load %arg2[%c2, %c0_15, %c0_16] : memref<9x128x128xbf16, #tpu.memory_space<vmem>>, vector<1x128x128xbf16>
    %48 = vector.shape_cast %47 : vector<1x128x128xbf16> to vector<128x128xbf16>
    %cst_17 = arith.constant dense<0.000000e+00> : vector<64x128xf32>
    %49 = tpu.matmul %46, %48, %cst_17 {dimension_numbers = #tpu.dot_dimension_numbers<[1], [0], [0], [1], [0, 0, 1, 1], [], []>} : vector<64x128xbf16>, vector<128x128xbf16>, vector<64x128xf32> -> vector<64x128xf32>
    %50 = arith.addf %38, %49 : vector<64x128xf32>
    %51 = vector.extract_strided_slice %2 {offsets = [8, 0], sizes = [64, 128], strides = [1, 1]} : vector<82x128xf32> to vector<64x128xf32>
    %c1_i32_18 = arith.constant 1 : i32
    %52 = vector.broadcast %c1_i32_18 : i32 to vector<64x1xi32>
    %53 = arith.cmpi sge, %19, %52 : vector<64x1xi32>
    %cst_19 = arith.constant 0.000000e+00 : f32
    %54 = vector.shape_cast %53 : vector<64x1xi1> to vector<64x1xi1>
    %55 = vector.broadcast %54 : vector<64x1xi1> to vector<64x128xi1>
    %56 = vector.broadcast %cst_19 : f32 to vector<64x128xf32>
    %57 = arith.select %55, %51, %56 : vector<64x128xi1>, vector<64x128xf32>
    %58 = arith.truncf %57 : vector<64x128xf32> to vector<64x128xbf16>
    %c3 = arith.constant 3 : index
    %c0_20 = arith.constant 0 : index
    %c0_21 = arith.constant 0 : index
    %59 = vector.load %arg2[%c3, %c0_20, %c0_21] : memref<9x128x128xbf16, #tpu.memory_space<vmem>>, vector<1x128x128xbf16>
    %60 = vector.shape_cast %59 : vector<1x128x128xbf16> to vector<128x128xbf16>
    %cst_22 = arith.constant dense<0.000000e+00> : vector<64x128xf32>
    %61 = tpu.matmul %58, %60, %cst_22 {dimension_numbers = #tpu.dot_dimension_numbers<[1], [0], [0], [1], [0, 0, 1, 1], [], []>} : vector<64x128xbf16>, vector<128x128xbf16>, vector<64x128xf32> -> vector<64x128xf32>
    %62 = arith.addf %50, %61 : vector<64x128xf32>
    %63 = vector.extract_strided_slice %2 {offsets = [9, 0], sizes = [64, 128], strides = [1, 1]} : vector<82x128xf32> to vector<64x128xf32>
    %64 = arith.truncf %63 : vector<64x128xf32> to vector<64x128xbf16>
    %c4 = arith.constant 4 : index
    %c0_23 = arith.constant 0 : index
    %c0_24 = arith.constant 0 : index
    %65 = vector.load %arg2[%c4, %c0_23, %c0_24] : memref<9x128x128xbf16, #tpu.memory_space<vmem>>, vector<1x128x128xbf16>
    %66 = vector.shape_cast %65 : vector<1x128x128xbf16> to vector<128x128xbf16>
    %cst_25 = arith.constant dense<0.000000e+00> : vector<64x128xf32>
    %67 = tpu.matmul %64, %66, %cst_25 {dimension_numbers = #tpu.dot_dimension_numbers<[1], [0], [0], [1], [0, 0, 1, 1], [], []>} : vector<64x128xbf16>, vector<128x128xbf16>, vector<64x128xf32> -> vector<64x128xf32>
    %68 = arith.addf %62, %67 : vector<64x128xf32>
    %69 = vector.extract_strided_slice %2 {offsets = [10, 0], sizes = [64, 128], strides = [1, 1]} : vector<82x128xf32> to vector<64x128xf32>
    %c6_i32_26 = arith.constant 6 : i32
    %70 = vector.broadcast %c6_i32_26 : i32 to vector<64x1xi32>
    %71 = arith.cmpi sle, %19, %70 : vector<64x1xi32>
    %cst_27 = arith.constant 0.000000e+00 : f32
    %72 = vector.shape_cast %71 : vector<64x1xi1> to vector<64x1xi1>
    %73 = vector.broadcast %72 : vector<64x1xi1> to vector<64x128xi1>
    %74 = vector.broadcast %cst_27 : f32 to vector<64x128xf32>
    %75 = arith.select %73, %69, %74 : vector<64x128xi1>, vector<64x128xf32>
    %76 = arith.truncf %75 : vector<64x128xf32> to vector<64x128xbf16>
    %c5 = arith.constant 5 : index
    %c0_28 = arith.constant 0 : index
    %c0_29 = arith.constant 0 : index
    %77 = vector.load %arg2[%c5, %c0_28, %c0_29] : memref<9x128x128xbf16, #tpu.memory_space<vmem>>, vector<1x128x128xbf16>
    %78 = vector.shape_cast %77 : vector<1x128x128xbf16> to vector<128x128xbf16>
    %cst_30 = arith.constant dense<0.000000e+00> : vector<64x128xf32>
    %79 = tpu.matmul %76, %78, %cst_30 {dimension_numbers = #tpu.dot_dimension_numbers<[1], [0], [0], [1], [0, 0, 1, 1], [], []>} : vector<64x128xbf16>, vector<128x128xbf16>, vector<64x128xf32> -> vector<64x128xf32>
    %80 = arith.addf %68, %79 : vector<64x128xf32>
    %81 = vector.extract_strided_slice %2 {offsets = [16, 0], sizes = [64, 128], strides = [1, 1]} : vector<82x128xf32> to vector<64x128xf32>
    %c1_i32_31 = arith.constant 1 : i32
    %82 = vector.broadcast %c1_i32_31 : i32 to vector<64x1xi32>
    %83 = arith.cmpi sge, %19, %82 : vector<64x1xi32>
    %cst_32 = arith.constant 0.000000e+00 : f32
    %84 = vector.shape_cast %83 : vector<64x1xi1> to vector<64x1xi1>
    %85 = vector.broadcast %84 : vector<64x1xi1> to vector<64x128xi1>
    %86 = vector.broadcast %cst_32 : f32 to vector<64x128xf32>
    %87 = arith.select %85, %81, %86 : vector<64x128xi1>, vector<64x128xf32>
    %88 = arith.truncf %87 : vector<64x128xf32> to vector<64x128xbf16>
    %c6 = arith.constant 6 : index
    %c0_33 = arith.constant 0 : index
    %c0_34 = arith.constant 0 : index
    %89 = vector.load %arg2[%c6, %c0_33, %c0_34] : memref<9x128x128xbf16, #tpu.memory_space<vmem>>, vector<1x128x128xbf16>
    %90 = vector.shape_cast %89 : vector<1x128x128xbf16> to vector<128x128xbf16>
    %cst_35 = arith.constant dense<0.000000e+00> : vector<64x128xf32>
    %91 = tpu.matmul %88, %90, %cst_35 {dimension_numbers = #tpu.dot_dimension_numbers<[1], [0], [0], [1], [0, 0, 1, 1], [], []>} : vector<64x128xbf16>, vector<128x128xbf16>, vector<64x128xf32> -> vector<64x128xf32>
    %92 = arith.addf %80, %91 : vector<64x128xf32>
    %93 = vector.extract_strided_slice %2 {offsets = [17, 0], sizes = [64, 128], strides = [1, 1]} : vector<82x128xf32> to vector<64x128xf32>
    %94 = arith.truncf %93 : vector<64x128xf32> to vector<64x128xbf16>
    %c7 = arith.constant 7 : index
    %c0_36 = arith.constant 0 : index
    %c0_37 = arith.constant 0 : index
    %95 = vector.load %arg2[%c7, %c0_36, %c0_37] : memref<9x128x128xbf16, #tpu.memory_space<vmem>>, vector<1x128x128xbf16>
    %96 = vector.shape_cast %95 : vector<1x128x128xbf16> to vector<128x128xbf16>
    %cst_38 = arith.constant dense<0.000000e+00> : vector<64x128xf32>
    %97 = tpu.matmul %94, %96, %cst_38 {dimension_numbers = #tpu.dot_dimension_numbers<[1], [0], [0], [1], [0, 0, 1, 1], [], []>} : vector<64x128xbf16>, vector<128x128xbf16>, vector<64x128xf32> -> vector<64x128xf32>
    %98 = arith.addf %92, %97 : vector<64x128xf32>
    %99 = vector.extract_strided_slice %2 {offsets = [18, 0], sizes = [64, 128], strides = [1, 1]} : vector<82x128xf32> to vector<64x128xf32>
    %c6_i32_39 = arith.constant 6 : i32
    %100 = vector.broadcast %c6_i32_39 : i32 to vector<64x1xi32>
    %101 = arith.cmpi sle, %19, %100 : vector<64x1xi32>
    %cst_40 = arith.constant 0.000000e+00 : f32
    %102 = vector.shape_cast %101 : vector<64x1xi1> to vector<64x1xi1>
    %103 = vector.broadcast %102 : vector<64x1xi1> to vector<64x128xi1>
    %104 = vector.broadcast %cst_40 : f32 to vector<64x128xf32>
    %105 = arith.select %103, %99, %104 : vector<64x128xi1>, vector<64x128xf32>
    %106 = arith.truncf %105 : vector<64x128xf32> to vector<64x128xbf16>
    %c8 = arith.constant 8 : index
    %c0_41 = arith.constant 0 : index
    %c0_42 = arith.constant 0 : index
    %107 = vector.load %arg2[%c8, %c0_41, %c0_42] : memref<9x128x128xbf16, #tpu.memory_space<vmem>>, vector<1x128x128xbf16>
    %108 = vector.shape_cast %107 : vector<1x128x128xbf16> to vector<128x128xbf16>
    %cst_43 = arith.constant dense<0.000000e+00> : vector<64x128xf32>
    %109 = tpu.matmul %106, %108, %cst_43 {dimension_numbers = #tpu.dot_dimension_numbers<[1], [0], [0], [1], [0, 0, 1, 1], [], []>} : vector<64x128xbf16>, vector<128x128xbf16>, vector<64x128xf32> -> vector<64x128xf32>
    %110 = arith.addf %98, %109 : vector<64x128xf32>
    %c0_44 = arith.constant 0 : index
    %c0_45 = arith.constant 0 : index
    %111 = vector.load %arg3[%c0_44, %c0_45] : memref<1x128xf32, #tpu.memory_space<vmem>>, vector<1x128xf32>
    %112 = vector.broadcast %111 : vector<1x128xf32> to vector<64x128xf32>
    %113 = arith.mulf %110, %112 : vector<64x128xf32>
    %c0_46 = arith.constant 0 : index
    %c0_47 = arith.constant 0 : index
    %114 = vector.load %arg4[%c0_46, %c0_47] : memref<1x128xf32, #tpu.memory_space<vmem>>, vector<1x128xf32>
    %115 = vector.broadcast %114 : vector<1x128xf32> to vector<64x128xf32>
    %116 = arith.addf %113, %115 : vector<64x128xf32>
    %cst_48 = arith.constant 0.000000e+00 : f32
    %117 = vector.broadcast %cst_48 : f32 to vector<64x128xf32>
    %118 = arith.maximumf %116, %117 : vector<64x128xf32>
    %c0_49 = arith.constant 0 : index
    %c0_50 = arith.constant 0 : index
    %c0_51 = arith.constant 0 : index
    %119 = vector.load %arg5[%c0_49, %c0_50, %c0_51] : memref<1x64x128xf32, #tpu.memory_space<vmem>>, vector<1x64x128xf32>
    %120 = vector.shape_cast %119 : vector<1x64x128xf32> to vector<64x128xf32>
    %121 = vector.shape_cast %118 : vector<64x128xf32> to vector<1x64x128xf32>
    tpu.vector_store %arg5[%c0_49, %c0_50, %c0_51], %121 {strides = array<i32>} : memref<1x64x128xf32, #tpu.memory_space<vmem>>, vector<1x64x128xf32>,
    return
  }
  func.func @transform_0(%arg0: i32) -> (i32, i32, i32) {
    %c0_i32 = arith.constant 0 : i32
    %c0_i32_0 = arith.constant 0 : i32
    %c0_i32_1 = arith.constant 0 : i32
    return %arg0, %c0_i32, %c0_i32_0 : i32, i32, i32
  }
  func.func @transform_1(%arg0: i32) -> (i32, i32, i32) {
    %c0_i32 = arith.constant 0 : i32
    %c0_i32_0 = arith.constant 0 : i32
    %c0_i32_1 = arith.constant 0 : i32
    %c0_i32_2 = arith.constant 0 : i32
    return %c0_i32, %c0_i32_0, %c0_i32_1 : i32, i32, i32
  }
  func.func @transform_2(%arg0: i32) -> (i32, i32) {
    %c0_i32 = arith.constant 0 : i32
    %c0_i32_0 = arith.constant 0 : i32
    %c0_i32_1 = arith.constant 0 : i32
    return %c0_i32, %c0_i32_0 : i32, i32
  }
  func.func @transform_3(%arg0: i32) -> (i32, i32) {
    %c0_i32 = arith.constant 0 : i32
    %c0_i32_0 = arith.constant 0 : i32
    %c0_i32_1 = arith.constant 0 : i32
    return %c0_i32, %c0_i32_0 : i32, i32
  }
  func.func @transform_4(%arg0: i32) -> (i32, i32, i32) {
    %c0_i32 = arith.constant 0 : i32
    %c0_i32_0 = arith.constant 0 : i32
    %c0_i32_1 = arith.constant 0 : i32
    return %arg0, %c0_i32, %c0_i32_0 : i32, i32, i32
  }
}

</mosaic_0001>

<llo_original>
// kernel: rt_layer_forward.5
$region0: #{rt_layer_forward.5}
  #allocation0 [shape = 'u32[]', space=smem, size = 0x4, offset = 0x4, fixed_abs, tag = 'smem constant byte address 0x4 - core index']
  #allocation1 [shape = 'u32[72,128]{1,0:T(1,128)}', space=vmem, size = 0x9000, scoped, tag = 'internal scratch']
  #allocation2 [shape = 'f32[64,128]{1,0:T(8,128)}', space=vmem, size = 0x8000, scoped, tag = 'scratch operand']
  %s0 = inlined_call_operand.vmem [shape: bf16[1,64,256], index: 0, kind: input, shape index: {}]
  %s1 = inlined_call_operand.vmem [shape: bf16[2,256,128], index: 1, kind: input, shape index: {}]
  %s2 = inlined_call_operand.vmem [shape: f32[1,128], index: 2, kind: input, shape index: {}]
  %s3 = inlined_call_operand.vmem [shape: f32[1,128], index: 3, kind: input, shape index: {}]
  %s4 = inlined_call_operand.vmem [shape: bf16[2,64,128], index: 4, kind: output, shape index: {}]
  %s5 = sld [smem:[#allocation0]]
  $region57: #{rt_layer_forward.5} parent=0
    _
  %s7 = ssub.s32 1, %s5
  %s8 = scalar_select 0, %s7, %s5
  loop: start=0, step=1, limit=4
  $region2: #{rt_layer_forward.5} parent=0 // loop_pre_header
    _
  $region3: #{rt_layer_forward.5} parent=0 // loop_header
    %s10 = sphi 0, %s14
    %p11 = scmp.ge.s32.totalorder %s10, 4
    %s17 = sphi 0, %s43
    %s18 = sphi 0, %s39
    %s19 = sphi 0, %s35
    %s20 = sphi 0, %s31
    %s21 = sphi 0, %s17
    %s22 = sphi 0, %s18
    %s23 = sphi 0, %s19
    %s24 = sphi 0, %s20
    %s25 = sphi 0, %s21
    %s26 = sphi 0, %s22
    %s27 = sphi 0, %s23
    %s28 = sphi 0, %s24
    %s48 = sphi 0, %s50
    %s51 = sphi 0, %s48
    %s52 = sphi 0, %s51
    %s68 = sphi 0, %s52
    %s78 = sphi 0, %s80
    %s81 = sphi 0, %s78
    %s82 = sphi 0, %s81
    %s98 = sphi 0, %s82
    %s104 = sphi 0, %s106
    %s107 = sphi 0, %s104
    %s108 = sphi 0, %s107
    %s124 = sphi 0, %s108
    %s130 = sphi 0, %s132
    %s133 = sphi 0, %s130
    %s134 = sphi 0, %s133
    %s150 = sphi 0, %s134
    %s160 = sphi 0, %s162
    %s163 = sphi 0, %s160
    %s164 = sphi 0, %s163
    %s180 = sphi 0, %s164
  $region4: #{rt_layer_forward.5} parent=0 // loop_header_branch
    %13 = sbr.rel (%p11) target = $region8
  $region5: #{rt_layer_forward.5} parent=0 // loop_body
    %s15 = ssub.s32 %s10, 1
    %s16 = ssub.s32 %s10, 2
    %s29 = sadd.s32 1, %s20
    %p30 = scmp.ge.s32.totalorder %s29, 1
    %s31 = scalar_select %p30, 0, %s29
    %s32 = sadd.s32 1, %s19
    %s33 = scalar_select %p30, %s32, %s19
    %p34 = scmp.ge.s32.totalorder %s33, 1
    %s35 = scalar_select %p34, 0, %s33
    %s36 = sadd.s32 1, %s18
    %s37 = scalar_select %p34, %s36, %s18
    %p38 = scmp.ge.s32.totalorder %s37, 1
    %s39 = scalar_select %p38, 0, %s37
    %s40 = sadd.s32 1, %s17
    %s41 = scalar_select %p38, %s40, %s17
    %p42 = scmp.ge.s32.totalorder %s41, 2
    %s43 = scalar_select %p42, 0, %s41
    %s44 = ssub.s32 %s18, %s39
    %s45 = ssub.s32 %s20, %s31
    %s46 = sor.u32 %s44, %s45
    %p47 = scmp.eq.s32.totalorder %s46, 0
    %s49 = sadd.s32 %s48, 1
    %s50 = scalar_select %p47, %s48, %s49
    %p53 = pneg %p47
    %p54 = scmp.eq.s32.totalorder %s10, 1
    %p55 = por %p53, %p54
    %p56 = scmp.ne.s32.totalorder %s48, %s51
    %p57 = scmp.eq.s32.totalorder %s10, 0
    %p58 = por %p56, %p57
    %p59 = scmp.ne.s32.totalorder %s48, %s51
    %p60 = scmp.eq.s32.totalorder %s15, 1
    %p61 = por %p59, %p60
    %p62 = scmp.ne.s32.totalorder %s51, %s52
    %p63 = scmp.eq.s32.totalorder %s15, 0
    %p64 = por %p62, %p63
    %p65 = scmp.ne.s32.totalorder %s51, %s52
    %p66 = scmp.eq.s32.totalorder %s16, 1
    %p67 = por %p65, %p66
    %p69 = scmp.ne.s32.totalorder %s52, %s68
    %p70 = scmp.eq.s32.totalorder %s16, 0
    %p71 = por %p69, %p70
    %s72 = ssub.s32 %s17, %s43
    %s73 = ssub.s32 %s20, %s31
    %s74 = sor.u32 %s72, %s73
    %s75 = ssub.s32 %s19, %s35
    %s76 = sor.u32 %s74, %s75
    %p77 = scmp.eq.s32.totalorder %s76, 0
    %s79 = sadd.s32 %s78, 1
    %s80 = scalar_select %p77, %s78, %s79
    %p83 = pneg %p77
    %p84 = scmp.eq.s32.totalorder %s10, 1
    %p85 = por %p83, %p84
    %p86 = scmp.ne.s32.totalorder %s78, %s81
    %p87 = scmp.eq.s32.totalorder %s10, 0
    %p88 = por %p86, %p87
    %p89 = scmp.ne.s32.totalorder %s78, %s81
    %p90 = scmp.eq.s32.totalorder %s15, 1
    %p91 = por %p89, %p90
    %p92 = scmp.ne.s32.totalorder %s81, %s82
    %p93 = scmp.eq.s32.totalorder %s15, 0
    %p94 = por %p92, %p93
    %p95 = scmp.ne.s32.totalorder %s81, %s82
    %p96 = scmp.eq.s32.totalorder %s16, 1
    %p97 = por %p95, %p96
    %p99 = scmp.ne.s32.totalorder %s82, %s98
    %p100 = scmp.eq.s32.totalorder %s16, 0
    %p101 = por %p99, %p100
    %s102 = ssub.s32 %s19, %s35
    %p103 = scmp.eq.s32.totalorder %s102, 0
    %s105 = sadd.s32 %s104, 1
    %s106 = scalar_select %p103, %s104, %s105
    %p109 = pneg %p103
    %p110 = scmp.eq.s32.totalorder %s10, 1
    %p111 = por %p109, %p110
    %p112 = scmp.ne.s32.totalorder %s104, %s107
    %p113 = scmp.eq.s32.totalorder %s10, 0
    %p114 = por %p112, %p113
    %p115 = scmp.ne.s32.totalorder %s104, %s107
    %p116 = scmp.eq.s32.totalorder %s15, 1
    %p117 = por %p115, %p116
    %p118 = scmp.ne.s32.totalorder %s107, %s108
    %p119 = scmp.eq.s32.totalorder %s15, 0
    %p120 = por %p118, %p119
    %p121 = scmp.ne.s32.totalorder %s107, %s108
    %p122 = scmp.eq.s32.totalorder %s16, 1
    %p123 = por %p121, %p122
    %p125 = scmp.ne.s32.totalorder %s108, %s124
    %p126 = scmp.eq.s32.totalorder %s16, 0
    %p127 = por %p125, %p126
    %s128 = ssub.s32 %s19, %s35
    %p129 = scmp.eq.s32.totalorder %s128, 0
    %s131 = sadd.s32 %s130, 1
    %s132 = scalar_select %p129, %s130, %s131
    %p135 = pneg %p129
    %p136 = scmp.eq.s32.totalorder %s10, 1
    %p137 = por %p135, %p136
    %p138 = scmp.ne.s32.totalorder %s130, %s133
    %p139 = scmp.eq.s32.totalorder %s10, 0
    %p140 = por %p138, %p139
    %p141 = scmp.ne.s32.totalorder %s130, %s133
    %p142 = scmp.eq.s32.totalorder %s15, 1
    %p143 = por %p141, %p142
    %p144 = scmp.ne.s32.totalorder %s133, %s134
    %p145 = scmp.eq.s32.totalorder %s15, 0
    %p146 = por %p144, %p145
    %p147 = scmp.ne.s32.totalorder %s133, %s134
    %p148 = scmp.eq.s32.totalorder %s16, 1
    %p149 = por %p147, %p148
    %p151 = scmp.ne.s32.totalorder %s134, %s150
    %p152 = scmp.eq.s32.totalorder %s16, 0
    %p153 = por %p151, %p152
    %s154 = ssub.s32 %s17, %s43
    %s155 = ssub.s32 %s18, %s39
    %s156 = sor.u32 %s154, %s155
    %s157 = ssub.s32 %s19, %s35
    %s158 = sor.u32 %s156, %s157
    %p159 = scmp.eq.s32.totalorder %s158, 0
    %s161 = sadd.s32 %s160, 1
    %s162 = scalar_select %p159, %s160, %s161
    %p165 = pneg %p159
    %p166 = scmp.eq.s32.totalorder %s10, 1
    %p167 = por %p165, %p166
    %p168 = scmp.ne.s32.totalorder %s160, %s163
    %p169 = scmp.eq.s32.totalorder %s10, 0
    %p170 = por %p168, %p169
    %p171 = scmp.ne.s32.totalorder %s160, %s163
    %p172 = scmp.eq.s32.totalorder %s15, 1
    %p173 = por %p171, %p172
    %p174 = scmp.ne.s32.totalorder %s163, %s164
    %p175 = scmp.eq.s32.totalorder %s15, 0
    %p176 = por %p174, %p175
    %p177 = scmp.ne.s32.totalorder %s163, %s164
    %p178 = scmp.eq.s32.totalorder %s16, 1
    %p179 = por %p177, %p178
    %p181 = scmp.ne.s32.totalorder %s164, %s180
    %p182 = scmp.eq.s32.totalorder %s16, 0
    %p183 = por %p181, %p182
    %p184 = scmp.le.s32.totalorder 1, %s10
    %p185 = scmp.lt.s32.totalorder %s10, 3
    %p186 = pnand %p184, %p185
    %p187 = pneg %p186
    // Predicated region
    $region9: #{rt_layer_forward.5} parent=5 // pred_check
      _
    $region10: #{rt_layer_forward.5} parent=5 // pred_check_branch
      %189 = sbr.rel (%p186) target = $region12
    $region11: #{rt_layer_forward.5} parent=5 // pred_region
      %s190 = ssub.s32 %s10, 1
      // Predicated region
      $region13: #{rt_layer_forward.5} parent=11 // pred_check
        %p191 = pneg %p64
      $region14: #{rt_layer_forward.5} parent=11 // pred_check_branch
        %193 = sbr.rel (%p191) target = $region16
      $region15: #{rt_layer_forward.5} parent=11 // pred_region
        %s194 = smul.u32 8, %s22
        %s195 = smul.u32 2, %s24
        %p196 = scmp.lt.s32.totalorder %s194, 7
        %s197 = scalar_select %p196, %s194, 7
        %p198 = scmp.lt.s32.totalorder %s195, 1
        %s199 = scalar_select %p198, %s195, 1
        %s200 = smul.addr %s197, 2
        %s201 = sadd.s32 %s199, %s200
        %s202 = smul.addr %s201, 4
        %s203 = scalar_lea.vmem %s0, %s202
        %s204 = smul.u32 8, %s22
        %s205 = smul.u32 2, %s24
      $region16: #{rt_layer_forward.5} parent=11 // pred_fallthru
        _
      // Predicated region
      $region17: #{rt_layer_forward.5} parent=11 // pred_check
        %p206 = pneg %p120
      $region18: #{rt_layer_forward.5} parent=11 // pred_check_branch
        %208 = sbr.rel (%p206) target = $region20
      $region19: #{rt_layer_forward.5} parent=11 // pred_region
        %p209 = scmp.lt.s32.totalorder %s23, 0
        %s210 = scalar_select %p209, %s23, 0
        %s211 = scalar_lea.vmem %s2, %s210
      $region20: #{rt_layer_forward.5} parent=11 // pred_fallthru
        _
      // Predicated region
      $region21: #{rt_layer_forward.5} parent=11 // pred_check
        %p212 = pneg %p146
      $region22: #{rt_layer_forward.5} parent=11 // pred_check_branch
        %214 = sbr.rel (%p212) target = $region24
      $region23: #{rt_layer_forward.5} parent=11 // pred_region
        %p215 = scmp.lt.s32.totalorder %s23, 0
        %s216 = scalar_select %p215, %s23, 0
        %s217 = scalar_lea.vmem %s3, %s216
      $region24: #{rt_layer_forward.5} parent=11 // pred_fallthru
        _
    $region12: #{rt_layer_forward.5} parent=5 // pred_fallthru
      _
    %p218 = scmp.lt.s32.totalorder %s10, 2
    // Predicated region
    $region25: #{rt_layer_forward.5} parent=5 // pred_check
      %p219 = pneg %p218
    $region26: #{rt_layer_forward.5} parent=5 // pred_check_branch
      %221 = sbr.rel (%p219) target = $region28
    $region27: #{rt_layer_forward.5} parent=5 // pred_region
      // Predicated region
      $region29: #{rt_layer_forward.5} parent=27 // pred_check
        %p222 = pneg %p88
      $region30: #{rt_layer_forward.5} parent=27 // pred_check_branch
        %224 = sbr.rel (%p222) target = $region32
      $region31: #{rt_layer_forward.5} parent=27 // pred_region
        %s225 = smul.u32 32, %s20
        %p226 = scmp.lt.s32.totalorder %s17, 1
        %s227 = scalar_select %p226, %s17, 1
        %p228 = scmp.lt.s32.totalorder %s225, 31
        %s229 = scalar_select %p228, %s225, 31
        %p230 = scmp.lt.s32.totalorder %s19, 0
        %s231 = scalar_select %p230, %s19, 0
        %s232 = sadd.s32 %s231, %s229
        %s233 = smul.addr %s227, 32
        %s234 = sadd.s32 %s232, %s233
        %s235 = smul.addr %s234, 4
        %s236 = scalar_lea.vmem %s1, %s235
        %s237 = smul.u32 32, %s20
      $region32: #{rt_layer_forward.5} parent=27 // pred_fallthru
        _
    $region28: #{rt_layer_forward.5} parent=5 // pred_fallthru
      _
    %p238 = scmp.le.s32.totalorder 1, %s10
    %p239 = scmp.lt.s32.totalorder %s10, 3
    %p240 = pnand %p238, %p239
    %p241 = pneg %p240
    // Predicated region
    $region33: #{rt_layer_forward.5} parent=5 // pred_check
      _
    $region34: #{rt_layer_forward.5} parent=5 // pred_check_branch
      %243 = sbr.rel (%p240) target = $region36
    $region35: #{rt_layer_forward.5} parent=5 // pred_region
      %s244 = ssub.s32 %s10, 1
      %s245 = smul.u32 8, %s22
      %s246 = smul.u32 2, %s24
      %p247 = scmp.lt.s32.totalorder %s245, 7
      %s248 = scalar_select %p247, %s245, 7
      %p249 = scmp.lt.s32.totalorder %s246, 1
      %s250 = scalar_select %p249, %s246, 1
      %s251 = smul.addr %s248, 2
      %s252 = sadd.s32 %s250, %s251
      %s253 = smul.addr %s252, 4
      %s254 = scalar_lea.vmem %s0, %s253
      %p255 = pneg %p64
      %p256 = pneg %p61
      %s257 = smul.u32 32, %s24
      %p258 = scmp.lt.s32.totalorder %s21, 1
      %s259 = scalar_select %p258, %s21, 1
      %p260 = scmp.lt.s32.totalorder %s257, 31
      %s261 = scalar_select %p260, %s257, 31
      %p262 = scmp.lt.s32.totalorder %s23, 0
      %s263 = scalar_select %p262, %s23, 0
      %s264 = sadd.s32 %s263, %s261
      %s265 = smul.addr %s259, 32
      %s266 = sadd.s32 %s264, %s265
      %s267 = smul.addr %s266, 4
      %s268 = scalar_lea.vmem %s1, %s267
      %p269 = pneg %p94
      %p270 = pneg %p91
      %p271 = scmp.lt.s32.totalorder %s23, 0
      %s272 = scalar_select %p271, %s23, 0
      %s273 = scalar_lea.vmem %s2, %s272
      %p274 = pneg %p120
      %p275 = pneg %p117
      %p276 = scmp.lt.s32.totalorder %s23, 0
      %s277 = scalar_select %p276, %s23, 0
      %s278 = scalar_lea.vmem %s3, %s277
      %p279 = pneg %p146
      %p280 = pneg %p143
      %p281 = pneg %p176
      %p282 = pneg %p173
      %s283 = smul.u32 8, %s22
      %p284 = scmp.lt.s32.totalorder %s21, 1
      %s285 = scalar_select %p284, %s21, 1
      %p286 = scmp.lt.s32.totalorder %s283, 7
      %s287 = scalar_select %p286, %s283, 7
      %p288 = scmp.lt.s32.totalorder %s23, 0
      %s289 = scalar_select %p288, %s23, 0
      %s290 = sadd.s32 %s289, %s287
      %s291 = smul.addr %s285, 8
      %s292 = sadd.s32 %s290, %s291
      %s293 = smul.addr %s292, 4
      %s294 = scalar_lea.vmem %s4, %s293
      %s295 = smul.u32 8, %s22
      %s296 = smul.u32 2, %s24
      %p297 = scmp.lt.s32.totalorder %s295, 7
      %s298 = scalar_select %p297, %s295, 7
      %p299 = scmp.lt.s32.totalorder %s296, 1
      %s300 = scalar_select %p299, %s296, 1
      %s301 = smul.addr %s298, 2
      %s302 = sadd.s32 %s300, %s301
      %s303 = smul.addr %s302, 4
      %s304 = scalar_lea.vmem %s0, %s303
      %s305 = smul.u32 8, %s22
      %s306 = smul.u32 2, %s24
      %s307 = smul.u32 32, %s24
      %p308 = scmp.lt.s32.totalorder %s21, 1
      %s309 = scalar_select %p308, %s21, 1
      %p310 = scmp.lt.s32.totalorder %s307, 31
      %s311 = scalar_select %p310, %s307, 31
      %p312 = scmp.lt.s32.totalorder %s23, 0
      %s313 = scalar_select %p312, %s23, 0
      %s314 = sadd.s32 %s313, %s311
      %s315 = smul.addr %s309, 32
      %s316 = sadd.s32 %s314, %s315
      %s317 = smul.addr %s316, 4
      %s318 = scalar_lea.vmem %s1, %s317
      %s319 = smul.u32 32, %s24
      %p320 = scmp.lt.s32.totalorder %s23, 0
      %s321 = scalar_select %p320, %s23, 0
      %s322 = scalar_lea.vmem %s2, %s321
      %p323 = scmp.lt.s32.totalorder %s23, 0
      %s324 = scalar_select %p323, %s23, 0
      %s325 = scalar_lea.vmem %s3, %s324
      %s326 = smul.u32 8, %s22
      %p327 = scmp.lt.s32.totalorder %s21, 1
      %s328 = scalar_select %p327, %s21, 1
      %p329 = scmp.lt.s32.totalorder %s326, 7
      %s330 = scalar_select %p329, %s326, 7
      %p331 = scmp.lt.s32.totalorder %s23, 0
      %s332 = scalar_select %p331, %s23, 0
      %s333 = sadd.s32 %s332, %s330
      %s334 = smul.addr %s328, 8
      %s335 = sadd.s32 %s333, %s334
      %s336 = smul.addr %s335, 4
      %s337 = scalar_lea.vmem %s4, %s336
      %s338 = smul.u32 8, %s22
      %p339 = scmp.eq.s32.totalorder %s24, 0
      // Predicated region
      $region37: #{rt_layer_forward.5} parent=35 // pred_check
        %p340 = pneg %p339
      $region38: #{rt_layer_forward.5} parent=35 // pred_check_branch
        %342 = sbr.rel (%p340) target = $region40
      $region39: #{rt_layer_forward.5} parent=35 // pred_region
        %343 = vst [vmem:[#allocation2] sm:$0xff] 0.0
        %344 = vst [vmem:[#allocation2 + $0x8] sm:$0xff] 0.0
        %345 = vst [vmem:[#allocation2 + $0x10] sm:$0xff] 0.0
        %346 = vst [vmem:[#allocation2 + $0x18] sm:$0xff] 0.0
        %347 = vst [vmem:[#allocation2 + $0x20] sm:$0xff] 0.0
        %348 = vst [vmem:[#allocation2 + $0x28] sm:$0xff] 0.0
        %349 = vst [vmem:[#allocation2 + $0x30] sm:$0xff] 0.0
        %350 = vst [vmem:[#allocation2 + $0x38] sm:$0xff] 0.0
      $region40: #{rt_layer_forward.5} parent=35 // pred_fallthru
        _
      %v351 = vld [vmem:[#allocation2] sm:$0xff]
      %v352 = vld [vmem:[#allocation2 + $0x8] sm:$0xff]
      %v353 = vld [vmem:[#allocation2 + $0x10] sm:$0xff]
      %v354 = vld [vmem:[#allocation2 + $0x18] sm:$0xff]
      %v355 = vld [vmem:[#allocation2 + $0x20] sm:$0xff]
      %v356 = vld [vmem:[#allocation2 + $0x28] sm:$0xff]
      %v357 = vld [vmem:[#allocation2 + $0x30] sm:$0xff]
      %v358 = vld [vmem:[#allocation2 + $0x38] sm:$0xff]
      %v359 = vld [vmem:[%s304] sm:$0xff]
      %v360 = vld [vmem:[%s304 + $0x8] sm:$0xff]
      %v361 = vld [vmem:[%s304 + $0x10] sm:$0xff]
      %v362 = vld [vmem:[%s304 + $0x18] sm:$0xff]
      %v363 = vld [vmem:[%s304 + $0x20] sm:$0xff]
      %v364 = vld [vmem:[%s304 + $0x28] sm:$0xff]
      %v365 = vld [vmem:[%s304 + $0x30] sm:$0xff]
      %v366 = vld [vmem:[%s304 + $0x38] sm:$0xff]
      %v367 = vld [vmem:[%s318] sm:$0xf]
      %v368 = vld [vmem:[%s318 + $0x4] sm:$0xf]
      %v369 = vld [vmem:[%s318 + $0x8] sm:$0xf]
      %v370 = vld [vmem:[%s318 + $0xc] sm:$0xf]
      %v371 = vld [vmem:[%s318 + $0x10] sm:$0xf]
      %v372 = vld [vmem:[%s318 + $0x14] sm:$0xf]
      %v373 = vld [vmem:[%s318 + $0x18] sm:$0xf]
      %v374 = vld [vmem:[%s318 + $0x1c] sm:$0xf]
      %v375 = vld [vmem:[%s318 + $0x20] sm:$0xf]
      %v376 = vld [vmem:[%s318 + $0x24] sm:$0xf]
      %v377 = vld [vmem:[%s318 + $0x28] sm:$0xf]
      %v378 = vld [vmem:[%s318 + $0x2c] sm:$0xf]
      %v379 = vld [vmem:[%s318 + $0x30] sm:$0xf]
      %v380 = vld [vmem:[%s318 + $0x34] sm:$0xf]
      %v381 = vld [vmem:[%s318 + $0x38] sm:$0xf]
      %v382 = vld [vmem:[%s318 + $0x3c] sm:$0xf]
      %v383 = vld [vmem:[%s318 + $0x40] sm:$0xf]
      %v384 = vld [vmem:[%s318 + $0x44] sm:$0xf]
      %v385 = vld [vmem:[%s318 + $0x48] sm:$0xf]
      %v386 = vld [vmem:[%s318 + $0x4c] sm:$0xf]
      %v387 = vld [vmem:[%s318 + $0x50] sm:$0xf]
      %v388 = vld [vmem:[%s318 + $0x54] sm:$0xf]
      %v389 = vld [vmem:[%s318 + $0x58] sm:$0xf]
      %v390 = vld [vmem:[%s318 + $0x5c] sm:$0xf]
      %v391 = vld [vmem:[%s318 + $0x60] sm:$0xf]
      %v392 = vld [vmem:[%s318 + $0x64] sm:$0xf]
      %v393 = vld [vmem:[%s318 + $0x68] sm:$0xf]
      %v394 = vld [vmem:[%s318 + $0x6c] sm:$0xf]
      %v395 = vld [vmem:[%s318 + $0x70] sm:$0xf]
      %v396 = vld [vmem:[%s318 + $0x74] sm:$0xf]
      %v397 = vld [vmem:[%s318 + $0x78] sm:$0xf]
      %v398 = vld [vmem:[%s318 + $0x7c] sm:$0xf]
      %v407 = vunpack.c.l.b16 %v359
      %v408 = vunpack.c.h.b16 %v359
      %v409 = vunpack.c.l.b16 %v360
      %v410 = vunpack.c.h.b16 %v360
      %v411 = vunpack.c.l.b16 %v361
      %v412 = vunpack.c.h.b16 %v361
      %v413 = vunpack.c.l.b16 %v362
      %v414 = vunpack.c.h.b16 %v362
      %v415 = vunpack.c.l.b16 %v363
      %v416 = vunpack.c.h.b16 %v363
      %v417 = vunpack.c.l.b16 %v364
      %v418 = vunpack.c.h.b16 %v364
      %v419 = vunpack.c.l.b16 %v365
      %v420 = vunpack.c.h.b16 %v365
      %v421 = vunpack.c.l.b16 %v366
      %v422 = vunpack.c.h.b16 %v366
      %v423 = vpack.c.b16 %v409, %v407
      %v424 = vpack.c.b16 %v410, %v408
      %v425 = vpack.c.b16 %v413, %v411
      %v426 = vpack.c.b16 %v414, %v412
      %v427 = vpack.c.b16 %v417, %v415
      %v428 = vpack.c.b16 %v418, %v416
      %v429 = vpack.c.b16 %v421, %v419
      %v430 = vpack.c.b16 %v422, %v420
      %v471 = vunpack.c.l.b16 %v367
      %v472 = vunpack.c.l.b16 %v368
      %v473 = vunpack.c.l.b16 %v369
      %v474 = vunpack.c.l.b16 %v370
      %v475 = vunpack.c.l.b16 %v371
      %v476 = vunpack.c.l.b16 %v372
      %v477 = vunpack.c.l.b16 %v373
      %v478 = vunpack.c.l.b16 %v374
      %v479 = vunpack.c.l.b16 %v375
      %v480 = vunpack.c.l.b16 %v376
      %v481 = vunpack.c.l.b16 %v377
      %v482 = vunpack.c.l.b16 %v378
      %v483 = vunpack.c.l.b16 %v379
      %v484 = vunpack.c.l.b16 %v380
      %v485 = vunpack.c.l.b16 %v381
      %v486 = vunpack.c.l.b16 %v382
      %v487 = vunpack.c.l.b16 %v383
      %v488 = vunpack.c.l.b16 %v384
      %v489 = vunpack.c.l.b16 %v385
      %v490 = vunpack.c.l.b16 %v386
      %v491 = vunpack.c.l.b16 %v387
      %v492 = vunpack.c.l.b16 %v388
      %v493 = vunpack.c.l.b16 %v389
      %v494 = vunpack.c.l.b16 %v390
      %v495 = vunpack.c.l.b16 %v391
      %v496 = vunpack.c.l.b16 %v392
      %v497 = vunpack.c.l.b16 %v393
      %v498 = vunpack.c.l.b16 %v394
      %v499 = vunpack.c.l.b16 %v395
      %v500 = vunpack.c.l.b16 %v396
      %v501 = vunpack.c.l.b16 %v397
      %v502 = vunpack.c.l.b16 %v398
      %v503 = vpack.c.b16 %v472, %v471
      %v504 = vpack.c.b16 %v474, %v473
      %v505 = vpack.c.b16 %v476, %v475
      %v506 = vpack.c.b16 %v478, %v477
      %v507 = vpack.c.b16 %v480, %v479
      %v508 = vpack.c.b16 %v482, %v481
      %v509 = vpack.c.b16 %v484, %v483
      %v510 = vpack.c.b16 %v486, %v485
      %v511 = vpack.c.b16 %v488, %v487
      %v512 = vpack.c.b16 %v490, %v489
      %v513 = vpack.c.b16 %v492, %v491
      %v514 = vpack.c.b16 %v494, %v493
      %v515 = vpack.c.b16 %v496, %v495
      %v516 = vpack.c.b16 %v498, %v497
      %v517 = vpack.c.b16 %v500, %v499
      %v518 = vpack.c.b16 %v502, %v501
      %535 = vmatpush.bf16.msra.mxu0 %v510
      %536 = vmatpush.bf16.msra.mxu0 %v509
      %537 = vmatpush.bf16.msra.mxu0 %v508
      %538 = vmatpush.bf16.msra.mxu0 %v507
      %539 = vmatpush.bf16.msra.mxu0 %v506
      %540 = vmatpush.bf16.msra.mxu0 %v505
      %541 = vmatpush.bf16.msra.mxu0 %v504
      %542 = vmatpush.bf16.msra.mxu0 %v503
      %543 = vmatmul.bf16.gmra.mxu0 %v423
      %v544 = vpop.f32.mrf.mxu0
      %v545 = vadd.f32 0.0, %v544
      %v546 = vpop.f32.mrf.mxu0
      %v547 = vadd.f32 0.0, %v546
      %548 = vmatmul.bf16.gmra.mxu0 %v425
      %v549 = vpop.f32.mrf.mxu0
      %v550 = vadd.f32 0.0, %v549
      %v551 = vpop.f32.mrf.mxu0
      %v552 = vadd.f32 0.0, %v551
      %553 = vmatmul.bf16.gmra.mxu0 %v427
      %v554 = vpop.f32.mrf.mxu0
      %v555 = vadd.f32 0.0, %v554
      %v556 = vpop.f32.mrf.mxu0
      %v557 = vadd.f32 0.0, %v556
      %558 = vmatmul.bf16.gmra.mxu0 %v429
      %v559 = vpop.f32.mrf.mxu0
      %v560 = vadd.f32 0.0, %v559
      %v561 = vpop.f32.mrf.mxu0
      %v562 = vadd.f32 0.0, %v561
      %563 = vdwg.mxu0
      %564 = vmatpush.bf16.msra.mxu0 %v518
      %565 = vmatpush.bf16.msra.mxu0 %v517
      %566 = vmatpush.bf16.msra.mxu0 %v516
      %567 = vmatpush.bf16.msra.mxu0 %v515
      %568 = vmatpush.bf16.msra.mxu0 %v514
      %569 = vmatpush.bf16.msra.mxu0 %v513
      %570 = vmatpush.bf16.msra.mxu0 %v512
      %571 = vmatpush.bf16.msra.mxu0 %v511
      %572 = vmatmul.bf16.gmra.mxu0 %v424
      %v573 = vpop.f32.mrf.mxu0
      %v574 = vadd.f32 %v545, %v573
      %v575 = vpop.f32.mrf.mxu0
      %v576 = vadd.f32 %v547, %v575
      %577 = vmatmul.bf16.gmra.mxu0 %v426
      %v578 = vpop.f32.mrf.mxu0
      %v579 = vadd.f32 %v550, %v578
      %v580 = vpop.f32.mrf.mxu0
      %v581 = vadd.f32 %v552, %v580
      %582 = vmatmul.bf16.gmra.mxu0 %v428
      %v583 = vpop.f32.mrf.mxu0
      %v584 = vadd.f32 %v555, %v583
      %v585 = vpop.f32.mrf.mxu0
      %v586 = vadd.f32 %v557, %v585
      %587 = vmatmul.bf16.gmra.mxu0 %v430
      %v588 = vpop.f32.mrf.mxu0
      %v589 = vadd.f32 %v560, %v588
      %v590 = vpop.f32.mrf.mxu0
      %v591 = vadd.f32 %v562, %v590
      %592 = vdwg.mxu0
      %v593 = vadd.f32 %v351, %v574
      %v594 = vadd.f32 %v352, %v576
      %v595 = vadd.f32 %v353, %v579
      %v596 = vadd.f32 %v354, %v581
      %v597 = vadd.f32 %v355, %v584
      %v598 = vadd.f32 %v356, %v586
      %v599 = vadd.f32 %v357, %v589
      %v600 = vadd.f32 %v358, %v591
      %601 = vst [vmem:[#allocation2] sm:$0xff] %v593
      %602 = vst [vmem:[#allocation2 + $0x8] sm:$0xff] %v594
      %603 = vst [vmem:[#allocation2 + $0x10] sm:$0xff] %v595
      %604 = vst [vmem:[#allocation2 + $0x18] sm:$0xff] %v596
      %605 = vst [vmem:[#allocation2 + $0x20] sm:$0xff] %v597
      %606 = vst [vmem:[#allocation2 + $0x28] sm:$0xff] %v598
      %607 = vst [vmem:[#allocation2 + $0x30] sm:$0xff] %v599
      %608 = vst [vmem:[#allocation2 + $0x38] sm:$0xff] %v600
      // Predicated region
      $region41: #{rt_layer_forward.5} parent=35 // pred_check
        %p609 = pneg %p339
      $region42: #{rt_layer_forward.5} parent=35 // pred_check_branch
        %611 = sbr.rel (%p609) target = $region44
      $region43: #{rt_layer_forward.5} parent=35 // pred_region
        %v612 = vld [vmem:[#allocation2] sm:$0xff]
        %v613 = vld [vmem:[#allocation2 + $0x8] sm:$0xff]
        %v614 = vld [vmem:[#allocation2 + $0x10] sm:$0xff]
        %v615 = vld [vmem:[#allocation2 + $0x18] sm:$0xff]
        %v616 = vld [vmem:[#allocation2 + $0x20] sm:$0xff]
        %v617 = vld [vmem:[#allocation2 + $0x28] sm:$0xff]
        %v618 = vld [vmem:[#allocation2 + $0x30] sm:$0xff]
        %v619 = vld [vmem:[#allocation2 + $0x38] sm:$0xff]
        %v620 = vld [vmem:[%s322] sm:$0x1]
        %v622 = vperm.slane %v620, 0
        %v624 = vmul.f32 %v612, %v622
        %v625 = vmul.f32 %v613, %v622
        %v626 = vmul.f32 %v614, %v622
        %v627 = vmul.f32 %v615, %v622
        %v628 = vmul.f32 %v616, %v622
        %v629 = vmul.f32 %v617, %v622
        %v630 = vmul.f32 %v618, %v622
        %v631 = vmul.f32 %v619, %v622
        %v632 = vld [vmem:[%s325] sm:$0x1]
        %v634 = vperm.slane %v632, 0
        %v636 = vadd.f32 %v624, %v634
        %v637 = vadd.f32 %v625, %v634
        %v638 = vadd.f32 %v626, %v634
        %v639 = vadd.f32 %v627, %v634
        %v640 = vadd.f32 %v628, %v634
        %v641 = vadd.f32 %v629, %v634
        %v642 = vadd.f32 %v630, %v634
        %v643 = vadd.f32 %v631, %v634
        %v644 = vpack.c.bf16 %v636, %v636
        %v645 = vpack.c.bf16 %v637, %v637
        %v646 = vpack.c.bf16 %v638, %v638
        %v647 = vpack.c.bf16 %v639, %v639
        %v648 = vpack.c.bf16 %v640, %v640
        %v649 = vpack.c.bf16 %v641, %v641
        %v650 = vpack.c.bf16 %v642, %v642
        %v651 = vpack.c.bf16 %v643, %v643
        %652 = vst [vmem:[%s337] sm:$0xf] %v644
        %653 = vst [vmem:[%s337 + $0x4] sm:$0xf] %v645
        %654 = vst [vmem:[%s337 + $0x8] sm:$0xf] %v646
        %655 = vst [vmem:[%s337 + $0xc] sm:$0xf] %v647
        %656 = vst [vmem:[%s337 + $0x10] sm:$0xf] %v648
        %657 = vst [vmem:[%s337 + $0x14] sm:$0xf] %v649
        %658 = vst [vmem:[%s337 + $0x18] sm:$0xf] %v650
        %659 = vst [vmem:[%s337 + $0x1c] sm:$0xf] %v651
      $region44: #{rt_layer_forward.5} parent=35 // pred_fallthru
        _
      %s660 = smul.u32 8, %s22
      %p661 = scmp.lt.s32.totalorder %s21, 1
      %s662 = scalar_select %p661, %s21, 1
      %p663 = scmp.lt.s32.totalorder %s660, 7
      %s664 = scalar_select %p663, %s660, 7
      %p665 = scmp.lt.s32.totalorder %s23, 0
      %s666 = scalar_select %p665, %s23, 0
      %s667 = sadd.s32 %s666, %s664
      %s668 = smul.addr %s662, 8
      %s669 = sadd.s32 %s667, %s668
      %s670 = smul.addr %s669, 4
      %s671 = scalar_lea.vmem %s4, %s670
      // Predicated region
      $region45: #{rt_layer_forward.5} parent=35 // pred_check
        %p672 = pneg %p173
      $region46: #{rt_layer_forward.5} parent=35 // pred_check_branch
        %674 = sbr.rel (%p672) target = $region48
      $region47: #{rt_layer_forward.5} parent=35 // pred_region
        %s675 = smul.u32 8, %s22
      $region48: #{rt_layer_forward.5} parent=35 // pred_fallthru
        _
    $region36: #{rt_layer_forward.5} parent=5 // pred_fallthru
      _
    %p676 = scmp.le.s32.totalorder 2, %s10
    // Predicated region
    $region49: #{rt_layer_forward.5} parent=5 // pred_check
      %p677 = pneg %p676
    $region50: #{rt_layer_forward.5} parent=5 // pred_check_branch
      %679 = sbr.rel (%p677) target = $region52
    $region51: #{rt_layer_forward.5} parent=5 // pred_region
      %s680 = ssub.s32 %s10, 2
      // Predicated region
      $region53: #{rt_layer_forward.5} parent=51 // pred_check
        %p681 = pneg %p179
      $region54: #{rt_layer_forward.5} parent=51 // pred_check_branch
        %683 = sbr.rel (%p681) target = $region56
      $region55: #{rt_layer_forward.5} parent=51 // pred_region
        %s684 = smul.u32 8, %s26
        %p685 = scmp.lt.s32.totalorder %s25, 1
        %s686 = scalar_select %p685, %s25, 1
        %p687 = scmp.lt.s32.totalorder %s684, 7
        %s688 = scalar_select %p687, %s684, 7
        %p689 = scmp.lt.s32.totalorder %s27, 0
        %s690 = scalar_select %p689, %s27, 0
        %s691 = sadd.s32 %s690, %s688
        %s692 = smul.addr %s686, 8
        %s693 = sadd.s32 %s691, %s692
        %s694 = smul.addr %s693, 4
        %s695 = scalar_lea.vmem %s4, %s694
      $region56: #{rt_layer_forward.5} parent=51 // pred_fallthru
        _
    $region52: #{rt_layer_forward.5} parent=5 // pred_fallthru
      _
  $region6: #{rt_layer_forward.5} parent=0 // loop_footer
    %s14 = sadd.s32 1, %s10
  $region7: #{rt_layer_forward.5} parent=0 // loop_footer_branch
    %9 = sbr.rel target = $region3
  $region8: #{rt_layer_forward.5} parent=0 // loop_exit
    _

// kernel: rt_layer_forward.4
$region0: #{rt_layer_forward.4}
  #allocation0 [shape = 'u32[]', space=smem, size = 0x4, offset = 0x4, fixed_abs, tag = 'smem constant byte address 0x4 - core index']
  #allocation1 [shape = 'u32[72,128]{1,0:T(1,128)}', space=vmem, size = 0x9000, scoped, tag = 'internal scratch']
  #allocation2 [shape = 'f32[512,128]{1,0:T(8,128)}', space=vmem, size = 0x40000, scoped, tag = 'scratch operand']
  %s0 = inlined_call_operand.vmem [shape: bf16[1,512,4], index: 0, kind: input, shape index: {}]
  %s1 = inlined_call_operand.vmem [shape: bf16[1,4,128], index: 1, kind: input, shape index: {}]
  %s2 = inlined_call_operand.vmem [shape: f32[1,128], index: 2, kind: input, shape index: {}]
  %s3 = inlined_call_operand.vmem [shape: f32[1,128], index: 3, kind: input, shape index: {}]
  %s4 = inlined_call_operand.vmem [shape: bf16[1,512,128], index: 4, kind: output, shape index: {}]
  %s5 = sld [smem:[#allocation0]]
  $region34: #{rt_layer_forward.4} parent=0
    _
  %s7 = ssub.s32 1, %s5
  %s8 = scalar_select 0, %s7, %s5
  // Predicated region
  $region2: #{rt_layer_forward.4} parent=0 // pred_check
    _
  $region3: #{rt_layer_forward.4} parent=0 // pred_check_branch
    %10 = sbr.rel (0) target = $region5
  $region4: #{rt_layer_forward.4} parent=0 // pred_region
    _
  $region5: #{rt_layer_forward.4} parent=0 // pred_fallthru
    _
  // Predicated region
  $region6: #{rt_layer_forward.4} parent=0 // pred_check
    _
  $region7: #{rt_layer_forward.4} parent=0 // pred_check_branch
    %12 = sbr.rel (0) target = $region9
  $region8: #{rt_layer_forward.4} parent=0 // pred_region
    _
  $region9: #{rt_layer_forward.4} parent=0 // pred_fallthru
    _
  // Predicated region
  $region10: #{rt_layer_forward.4} parent=0 // pred_check
    _
  $region11: #{rt_layer_forward.4} parent=0 // pred_check_branch
    %14 = sbr.rel (0) target = $region13
  $region12: #{rt_layer_forward.4} parent=0 // pred_region
    _
  $region13: #{rt_layer_forward.4} parent=0 // pred_fallthru
    _
  // Predicated region
  $region14: #{rt_layer_forward.4} parent=0 // pred_check
    _
  $region15: #{rt_layer_forward.4} parent=0 // pred_check_branch
    %16 = sbr.rel (0) target = $region17
  $region16: #{rt_layer_forward.4} parent=0 // pred_region
    _
  $region17: #{rt_layer_forward.4} parent=0 // pred_fallthru
    _
  %p18 = scmp.eq.s32.totalorder 0, 0
  // Predicated region
  $region18: #{rt_layer_forward.4} parent=0 // pred_check
    %p19 = pneg %p18
  $region19: #{rt_layer_forward.4} parent=0 // pred_check_branch
    %21 = sbr.rel (%p19) target = $region21
  $region20: #{rt_layer_forward.4} parent=0 // pred_region
    %22 = vst [vmem:[#allocation2] sm:$0xff] 0.0
    %23 = vst [vmem:[#allocation2 + $0x8] sm:$0xff] 0.0
    %24 = vst [vmem:[#allocation2 + $0x10] sm:$0xff] 0.0
    %25 = vst [vmem:[#allocation2 + $0x18] sm:$0xff] 0.0
    %26 = vst [vmem:[#allocation2 + $0x20] sm:$0xff] 0.0
    %27 = vst [vmem:[#allocation2 + $0x28] sm:$0xff] 0.0
    %28 = vst [vmem:[#allocation2 + $0x30] sm:$0xff] 0.0
    %29 = vst [vmem:[#allocation2 + $0x38] sm:$0xff] 0.0
    %30 = vst [vmem:[#allocation2 + $0x40] sm:$0xff] 0.0
    %31 = vst [vmem:[#allocation2 + $0x48] sm:$0xff] 0.0
    %32 = vst [vmem:[#allocation2 + $0x50] sm:$0xff] 0.0
    %33 = vst [vmem:[#allocation2 + $0x58] sm:$0xff] 0.0
    %34 = vst [vmem:[#allocation2 + $0x60] sm:$0xff] 0.0
    %35 = vst [vmem:[#allocation2 + $0x68] sm:$0xff] 0.0
    %36 = vst [vmem:[#allocation2 + $0x70] sm:$0xff] 0.0
    %37 = vst [vmem:[#allocation2 + $0x78] sm:$0xff] 0.0
    %38 = vst [vmem:[#allocation2 + $0x80] sm:$0xff] 0.0
    %39 = vst [vmem:[#allocation2 + $0x88] sm:$0xff] 0.0
    %40 = vst [vmem:[#allocation2 + $0x90] sm:$0xff] 0.0
    %41 = vst [vmem:[#allocation2 + $0x98] sm:$0xff] 0.0
    %42 = vst [vmem:[#allocation2 + $0xa0] sm:$0xff] 0.0
    %43 = vst [vmem:[#allocation2 + $0xa8] sm:$0xff] 0.0
    %44 = vst [vmem:[#allocation2 + $0xb0] sm:$0xff] 0.0
    %45 = vst [vmem:[#allocation2 + $0xb8] sm:$0xff] 0.0
    %46 = vst [vmem:[#allocation2 + $0xc0] sm:$0xff] 0.0
    %47 = vst [vmem:[#allocation2 + $0xc8] sm:$0xff] 0.0
    %48 = vst [vmem:[#allocation2 + $0xd0] sm:$0xff] 0.0
    %49 = vst [vmem:[#allocation2 + $0xd8] sm:$0xff] 0.0
    %50 = vst [vmem:[#allocation2 + $0xe0] sm:$0xff] 0.0
    %51 = vst [vmem:[#allocation2 + $0xe8] sm:$0xff] 0.0
    %52 = vst [vmem:[#allocation2 + $0xf0] sm:$0xff] 0.0
    %53 = vst [vmem:[#allocation2 + $0xf8] sm:$0xff] 0.0
    %54 = vst [vmem:[#allocation2 + $0x100] sm:$0xff] 0.0
    %55 = vst [vmem:[#allocation2 + $0x108] sm:$0xff] 0.0
    %56 = vst [vmem:[#allocation2 + $0x110] sm:$0xff] 0.0
    %57 = vst [vmem:[#allocation2 + $0x118] sm:$0xff] 0.0
    %58 = vst [vmem:[#allocation2 + $0x120] sm:$0xff] 0.0
    %59 = vst [vmem:[#allocation2 + $0x128] sm:$0xff] 0.0
    %60 = vst [vmem:[#allocation2 + $0x130] sm:$0xff] 0.0
    %61 = vst [vmem:[#allocation2 + $0x138] sm:$0xff] 0.0
    %62 = vst [vmem:[#allocation2 + $0x140] sm:$0xff] 0.0
    %63 = vst [vmem:[#allocation2 + $0x148] sm:$0xff] 0.0
    %64 = vst [vmem:[#allocation2 + $0x150] sm:$0xff] 0.0
    %65 = vst [vmem:[#allocation2 + $0x158] sm:$0xff] 0.0
    %66 = vst [vmem:[#allocation2 + $0x160] sm:$0xff] 0.0
    %67 = vst [vmem:[#allocation2 + $0x168] sm:$0xff] 0.0
    %68 = vst [vmem:[#allocation2 + $0x170] sm:$0xff] 0.0
    %69 = vst [vmem:[#allocation2 + $0x178] sm:$0xff] 0.0
    %70 = vst [vmem:[#allocation2 + $0x180] sm:$0xff] 0.0
    %71 = vst [vmem:[#allocation2 + $0x188] sm:$0xff] 0.0
    %72 = vst [vmem:[#allocation2 + $0x190] sm:$0xff] 0.0
    %73 = vst [vmem:[#allocation2 + $0x198] sm:$0xff] 0.0
    %74 = vst [vmem:[#allocation2 + $0x1a0] sm:$0xff] 0.0
    %75 = vst [vmem:[#allocation2 + $0x1a8] sm:$0xff] 0.0
    %76 = vst [vmem:[#allocation2 + $0x1b0] sm:$0xff] 0.0
    %77 = vst [vmem:[#allocation2 + $0x1b8] sm:$0xff] 0.0
    %78 = vst [vmem:[#allocation2 + $0x1c0] sm:$0xff] 0.0
    %79 = vst [vmem:[#allocation2 + $0x1c8] sm:$0xff] 0.0
    %80 = vst [vmem:[#allocation2 + $0x1d0] sm:$0xff] 0.0
    %81 = vst [vmem:[#allocation2 + $0x1d8] sm:$0xff] 0.0
    %82 = vst [vmem:[#allocation2 + $0x1e0] sm:$0xff] 0.0
    %83 = vst [vmem:[#allocation2 + $0x1e8] sm:$0xff] 0.0
    %84 = vst [vmem:[#allocation2 + $0x1f0] sm:$0xff] 0.0
    %85 = vst [vmem:[#allocation2 + $0x1f8] sm:$0xff] 0.0
  $region21: #{rt_layer_forward.4} parent=0 // pred_fallthru
    _
  %v86 = vld [vmem:[#allocation2] sm:$0xff]
  %v87 = vld [vmem:[#allocation2 + $0x8] sm:$0xff]
  %v88 = vld [vmem:[#allocation2 + $0x10] sm:$0xff]
  %v89 = vld [vmem:[#allocation2 + $0x18] sm:$0xff]
  %v90 = vld [vmem:[#allocation2 + $0x20] sm:$0xff]
  %v91 = vld [vmem:[#allocation2 + $0x28] sm:$0xff]
  %v92 = vld [vmem:[#allocation2 + $0x30] sm:$0xff]
  %v93 = vld [vmem:[#allocation2 + $0x38] sm:$0xff]
  %v94 = vld [vmem:[#allocation2 + $0x40] sm:$0xff]
  %v95 = vld [vmem:[#allocation2 + $0x48] sm:$0xff]
  %v96 = vld [vmem:[#allocation2 + $0x50] sm:$0xff]
  %v97 = vld [vmem:[#allocation2 + $0x58] sm:$0xff]
  %v98 = vld [vmem:[#allocation2 + $0x60] sm:$0xff]
  %v99 = vld [vmem:[#allocation2 + $0x68] sm:$0xff]
  %v100 = vld [vmem:[#allocation2 + $0x70] sm:$0xff]
  %v101 = vld [vmem:[#allocation2 + $0x78] sm:$0xff]
  %v102 = vld [vmem:[#allocation2 + $0x80] sm:$0xff]
  %v103 = vld [vmem:[#allocation2 + $0x88] sm:$0xff]
  %v104 = vld [vmem:[#allocation2 + $0x90] sm:$0xff]
  %v105 = vld [vmem:[#allocation2 + $0x98] sm:$0xff]
  %v106 = vld [vmem:[#allocation2 + $0xa0] sm:$0xff]
  %v107 = vld [vmem:[#allocation2 + $0xa8] sm:$0xff]
  %v108 = vld [vmem:[#allocation2 + $0xb0] sm:$0xff]
  %v109 = vld [vmem:[#allocation2 + $0xb8] sm:$0xff]
  %v110 = vld [vmem:[#allocation2 + $0xc0] sm:$0xff]
  %v111 = vld [vmem:[#allocation2 + $0xc8] sm:$0xff]
  %v112 = vld [vmem:[#allocation2 + $0xd0] sm:$0xff]
  %v113 = vld [vmem:[#allocation2 + $0xd8] sm:$0xff]
  %v114 = vld [vmem:[#allocation2 + $0xe0] sm:$0xff]
  %v115 = vld [vmem:[#allocation2 + $0xe8] sm:$0xff]
  %v116 = vld [vmem:[#allocation2 + $0xf0] sm:$0xff]
  %v117 = vld [vmem:[#allocation2 + $0xf8] sm:$0xff]
  %v118 = vld [vmem:[#allocation2 + $0x100] sm:$0xff]
  %v119 = vld [vmem:[#allocation2 + $0x108] sm:$0xff]
  %v120 = vld [vmem:[#allocation2 + $0x110] sm:$0xff]
  %v121 = vld [vmem:[#allocation2 + $0x118] sm:$0xff]
  %v122 = vld [vmem:[#allocation2 + $0x120] sm:$0xff]
  %v123 = vld [vmem:[#allocation2 + $0x128] sm:$0xff]
  %v124 = vld [vmem:[#allocation2 + $0x130] sm:$0xff]
  %v125 = vld [vmem:[#allocation2 + $0x138] sm:$0xff]
  %v126 = vld [vmem:[#allocation2 + $0x140] sm:$0xff]
  %v127 = vld [vmem:[#allocation2 + $0x148] sm:$0xff]
  %v128 = vld [vmem:[#allocation2 + $0x150] sm:$0xff]
  %v129 = vld [vmem:[#allocation2 + $0x158] sm:$0xff]
  %v130 = vld [vmem:[#allocation2 + $0x160] sm:$0xff]
  %v131 = vld [vmem:[#allocation2 + $0x168] sm:$0xff]
  %v132 = vld [vmem:[#allocation2 + $0x170] sm:$0xff]
  %v133 = vld [vmem:[#allocation2 + $0x178] sm:$0xff]
  %v134 = vld [vmem:[#allocation2 + $0x180] sm:$0xff]
  %v135 = vld [vmem:[#allocation2 + $0x188] sm:$0xff]
  %v136 = vld [vmem:[#allocation2 + $0x190] sm:$0xff]
  %v137 = vld [vmem:[#allocation2 + $0x198] sm:$0xff]
  %v138 = vld [vmem:[#allocation2 + $0x1a0] sm:$0xff]
  %v139 = vld [vmem:[#allocation2 + $0x1a8] sm:$0xff]
  %v140 = vld [vmem:[#allocation2 + $0x1b0] sm:$0xff]
  %v141 = vld [vmem:[#allocation2 + $0x1b8] sm:$0xff]
  %v142 = vld [vmem:[#allocation2 + $0x1c0] sm:$0xff]
  %v143 = vld [vmem:[#allocation2 + $0x1c8] sm:$0xff]
  %v144 = vld [vmem:[#allocation2 + $0x1d0] sm:$0xff]
  %v145 = vld [vmem:[#allocation2 + $0x1d8] sm:$0xff]
  %v146 = vld [vmem:[#allocation2 + $0x1e0] sm:$0xff]
  %v147 = vld [vmem:[#allocation2 + $0x1e8] sm:$0xff]
  %v148 = vld [vmem:[#allocation2 + $0x1f0] sm:$0xff]
  %v149 = vld [vmem:[#allocation2 + $0x1f8] sm:$0xff]
  %v150 = vld [vmem:[%s0] sm:$0xf]
  %v151 = vld [vmem:[%s0 + $0x4] sm:$0xf]
  %v152 = vld [vmem:[%s0 + $0x8] sm:$0xf]
  %v153 = vld [vmem:[%s0 + $0xc] sm:$0xf]
  %v154 = vld [vmem:[%s0 + $0x10] sm:$0xf]
  %v155 = vld [vmem:[%s0 + $0x14] sm:$0xf]
  %v156 = vld [vmem:[%s0 + $0x18] sm:$0xf]
  %v157 = vld [vmem:[%s0 + $0x1c] sm:$0xf]
  %v158 = vld [vmem:[%s0 + $0x20] sm:$0xf]
  %v159 = vld [vmem:[%s0 + $0x24] sm:$0xf]
  %v160 = vld [vmem:[%s0 + $0x28] sm:$0xf]
  %v161 = vld [vmem:[%s0 + $0x2c] sm:$0xf]
  %v162 = vld [vmem:[%s0 + $0x30] sm:$0xf]
  %v163 = vld [vmem:[%s0 + $0x34] sm:$0xf]
  %v164 = vld [vmem:[%s0 + $0x38] sm:$0xf]
  %v165 = vld [vmem:[%s0 + $0x3c] sm:$0xf]
  %v166 = vld [vmem:[%s0 + $0x40] sm:$0xf]
  %v167 = vld [vmem:[%s0 + $0x44] sm:$0xf]
  %v168 = vld [vmem:[%s0 + $0x48] sm:$0xf]
  %v169 = vld [vmem:[%s0 + $0x4c] sm:$0xf]
  %v170 = vld [vmem:[%s0 + $0x50] sm:$0xf]
  %v171 = vld [vmem:[%s0 + $0x54] sm:$0xf]
  %v172 = vld [vmem:[%s0 + $0x58] sm:$0xf]
  %v173 = vld [vmem:[%s0 + $0x5c] sm:$0xf]
  %v174 = vld [vmem:[%s0 + $0x60] sm:$0xf]
  %v175 = vld [vmem:[%s0 + $0x64] sm:$0xf]
  %v176 = vld [vmem:[%s0 + $0x68] sm:$0xf]
  %v177 = vld [vmem:[%s0 + $0x6c] sm:$0xf]
  %v178 = vld [vmem:[%s0 + $0x70] sm:$0xf]
  %v179 = vld [vmem:[%s0 + $0x74] sm:$0xf]
  %v180 = vld [vmem:[%s0 + $0x78] sm:$0xf]
  %v181 = vld [vmem:[%s0 + $0x7c] sm:$0xf]
  %v182 = vld [vmem:[%s0 + $0x80] sm:$0xf]
  %v183 = vld [vmem:[%s0 + $0x84] sm:$0xf]
  %v184 = vld [vmem:[%s0 + $0x88] sm:$0xf]
  %v185 = vld [vmem:[%s0 + $0x8c] sm:$0xf]
  %v186 = vld [vmem:[%s0 + $0x90] sm:$0xf]
  %v187 = vld [vmem:[%s0 + $0x94] sm:$0xf]
  %v188 = vld [vmem:[%s0 + $0x98] sm:$0xf]
  %v189 = vld [vmem:[%s0 + $0x9c] sm:$0xf]
  %v190 = vld [vmem:[%s0 + $0xa0] sm:$0xf]
  %v191 = vld [vmem:[%s0 + $0xa4] sm:$0xf]
  %v192 = vld [vmem:[%s0 + $0xa8] sm:$0xf]
  %v193 = vld [vmem:[%s0 + $0xac] sm:$0xf]
  %v194 = vld [vmem:[%s0 + $0xb0] sm:$0xf]
  %v195 = vld [vmem:[%s0 + $0xb4] sm:$0xf]
  %v196 = vld [vmem:[%s0 + $0xb8] sm:$0xf]
  %v197 = vld [vmem:[%s0 + $0xbc] sm:$0xf]
  %v198 = vld [vmem:[%s0 + $0xc0] sm:$0xf]
  %v199 = vld [vmem:[%s0 + $0xc4] sm:$0xf]
  %v200 = vld [vmem:[%s0 + $0xc8] sm:$0xf]
  %v201 = vld [vmem:[%s0 + $0xcc] sm:$0xf]
  %v202 = vld [vmem:[%s0 + $0xd0] sm:$0xf]
  %v203 = vld [vmem:[%s0 + $0xd4] sm:$0xf]
  %v204 = vld [vmem:[%s0 + $0xd8] sm:$0xf]
  %v205 = vld [vmem:[%s0 + $0xdc] sm:$0xf]
  %v206 = vld [vmem:[%s0 + $0xe0] sm:$0xf]
  %v207 = vld [vmem:[%s0 + $0xe4] sm:$0xf]
  %v208 = vld [vmem:[%s0 + $0xe8] sm:$0xf]
  %v209 = vld [vmem:[%s0 + $0xec] sm:$0xf]
  %v210 = vld [vmem:[%s0 + $0xf0] sm:$0xf]
  %v211 = vld [vmem:[%s0 + $0xf4] sm:$0xf]
  %v212 = vld [vmem:[%s0 + $0xf8] sm:$0xf]
  %v213 = vld [vmem:[%s0 + $0xfc] sm:$0xf]
  %v214 = vld [vmem:[%s1] sm:$0x3]
  %v279 = vunpack.c.l.b16 %v150
  %v280 = vunpack.c.l.b16 %v151
  %v281 = vunpack.c.l.b16 %v152
  %v282 = vunpack.c.l.b16 %v153
  %v283 = vunpack.c.l.b16 %v154
  %v284 = vunpack.c.l.b16 %v155
  %v285 = vunpack.c.l.b16 %v156
  %v286 = vunpack.c.l.b16 %v157
  %v287 = vunpack.c.l.b16 %v158
  %v288 = vunpack.c.l.b16 %v159
  %v289 = vunpack.c.l.b16 %v160
  %v290 = vunpack.c.l.b16 %v161
  %v291 = vunpack.c.l.b16 %v162
  %v292 = vunpack.c.l.b16 %v163
  %v293 = vunpack.c.l.b16 %v164
  %v294 = vunpack.c.l.b16 %v165
  %v295 = vunpack.c.l.b16 %v166
  %v296 = vunpack.c.l.b16 %v167
  %v297 = vunpack.c.l.b16 %v168
  %v298 = vunpack.c.l.b16 %v169
  %v299 = vunpack.c.l.b16 %v170
  %v300 = vunpack.c.l.b16 %v171
  %v301 = vunpack.c.l.b16 %v172
  %v302 = vunpack.c.l.b16 %v173
  %v303 = vunpack.c.l.b16 %v174
  %v304 = vunpack.c.l.b16 %v175
  %v305 = vunpack.c.l.b16 %v176
  %v306 = vunpack.c.l.b16 %v177
  %v307 = vunpack.c.l.b16 %v178
  %v308 = vunpack.c.l.b16 %v179
  %v309 = vunpack.c.l.b16 %v180
  %v310 = vunpack.c.l.b16 %v181
  %v311 = vunpack.c.l.b16 %v182
  %v312 = vunpack.c.l.b16 %v183
  %v313 = vunpack.c.l.b16 %v184
  %v314 = vunpack.c.l.b16 %v185
  %v315 = vunpack.c.l.b16 %v186
  %v316 = vunpack.c.l.b16 %v187
  %v317 = vunpack.c.l.b16 %v188
  %v318 = vunpack.c.l.b16 %v189
  %v319 = vunpack.c.l.b16 %v190
  %v320 = vunpack.c.l.b16 %v191
  %v321 = vunpack.c.l.b16 %v192
  %v322 = vunpack.c.l.b16 %v193
  %v323 = vunpack.c.l.b16 %v194
  %v324 = vunpack.c.l.b16 %v195
  %v325 = vunpack.c.l.b16 %v196
  %v326 = vunpack.c.l.b16 %v197
  %v327 = vunpack.c.l.b16 %v198
  %v328 = vunpack.c.l.b16 %v199
  %v329 = vunpack.c.l.b16 %v200
  %v330 = vunpack.c.l.b16 %v201
  %v331 = vunpack.c.l.b16 %v202
  %v332 = vunpack.c.l.b16 %v203
  %v333 = vunpack.c.l.b16 %v204
  %v334 = vunpack.c.l.b16 %v205
  %v335 = vunpack.c.l.b16 %v206
  %v336 = vunpack.c.l.b16 %v207
  %v337 = vunpack.c.l.b16 %v208
  %v338 = vunpack.c.l.b16 %v209
  %v339 = vunpack.c.l.b16 %v210
  %v340 = vunpack.c.l.b16 %v211
  %v341 = vunpack.c.l.b16 %v212
  %v342 = vunpack.c.l.b16 %v213
  %v343 = vpack.c.b16 %v280, %v279
  %v344 = vpack.c.b16 %v282, %v281
  %v345 = vpack.c.b16 %v284, %v283
  %v346 = vpack.c.b16 %v286, %v285
  %v347 = vpack.c.b16 %v288, %v287
  %v348 = vpack.c.b16 %v290, %v289
  %v349 = vpack.c.b16 %v292, %v291
  %v350 = vpack.c.b16 %v294, %v293
  %v351 = vpack.c.b16 %v296, %v295
  %v352 = vpack.c.b16 %v298, %v297
  %v353 = vpack.c.b16 %v300, %v299
  %v354 = vpack.c.b16 %v302, %v301
  %v355 = vpack.c.b16 %v304, %v303
  %v356 = vpack.c.b16 %v306, %v305
  %v357 = vpack.c.b16 %v308, %v307
  %v358 = vpack.c.b16 %v310, %v309
  %v359 = vpack.c.b16 %v312, %v311
  %v360 = vpack.c.b16 %v314, %v313
  %v361 = vpack.c.b16 %v316, %v315
  %v362 = vpack.c.b16 %v318, %v317
  %v363 = vpack.c.b16 %v320, %v319
  %v364 = vpack.c.b16 %v322, %v321
  %v365 = vpack.c.b16 %v324, %v323
  %v366 = vpack.c.b16 %v326, %v325
  %v367 = vpack.c.b16 %v328, %v327
  %v368 = vpack.c.b16 %v330, %v329
  %v369 = vpack.c.b16 %v332, %v331
  %v370 = vpack.c.b16 %v334, %v333
  %v371 = vpack.c.b16 %v336, %v335
  %v372 = vpack.c.b16 %v338, %v337
  %v373 = vpack.c.b16 %v340, %v339
  %v374 = vpack.c.b16 %v342, %v341
  %vm375 = vcmask 31744
  %v377 = vsel %vm375, %v343, 0
  %v380 = vsel %vm375, %v344, 0
  %v383 = vsel %vm375, %v345, 0
  %v386 = vsel %vm375, %v346, 0
  %v389 = vsel %vm375, %v347, 0
  %v392 = vsel %vm375, %v348, 0
  %v395 = vsel %vm375, %v349, 0
  %v398 = vsel %vm375, %v350, 0
  %v401 = vsel %vm375, %v351, 0
  %v404 = vsel %vm375, %v352, 0
  %v407 = vsel %vm375, %v353, 0
  %v410 = vsel %vm375, %v354, 0
  %v413 = vsel %vm375, %v355, 0
  %v416 = vsel %vm375, %v356, 0
  %v419 = vsel %vm375, %v357, 0
  %v422 = vsel %vm375, %v358, 0
  %v425 = vsel %vm375, %v359, 0
  %v428 = vsel %vm375, %v360, 0
  %v431 = vsel %vm375, %v361, 0
  %v434 = vsel %vm375, %v362, 0
  %v437 = vsel %vm375, %v363, 0
  %v440 = vsel %vm375, %v364, 0
  %v443 = vsel %vm375, %v365, 0
  %v446 = vsel %vm375, %v366, 0
  %v449 = vsel %vm375, %v367, 0
  %v452 = vsel %vm375, %v368, 0
  %v455 = vsel %vm375, %v369, 0
  %v458 = vsel %vm375, %v370, 0
  %v461 = vsel %vm375, %v371, 0
  %v464 = vsel %vm375, %v372, 0
  %v467 = vsel %vm375, %v373, 0
  %v470 = vsel %vm375, %v374, 0
  %vm472 = vcmask 1041408
  %v474 = vsel %vm472, %v214, 0
  %476 = vmatpush.bf16.msra.mxu0 0
  %477 = vmatpush.bf16.msra.mxu0 0
  %478 = vmatpush.bf16.msra.mxu0 0
  %479 = vmatpush.bf16.msra.mxu0 0
  %480 = vmatpush.bf16.msra.mxu0 0
  %481 = vmatpush.bf16.msra.mxu0 0
  %482 = vmatpush.bf16.msra.mxu0 0
  %483 = vmatpush.bf16.msra.mxu0 %v474
  %484 = vmatmul.bf16.gmra.mxu0 %v377
  %v485 = vpop.f32.mrf.mxu0
  %v486 = vadd.f32 0.0, %v485
  %v487 = vpop.f32.mrf.mxu0
  %v488 = vadd.f32 0.0, %v487
  %489 = vmatmul.bf16.gmra.mxu0 %v380
  %v490 = vpop.f32.mrf.mxu0
  %v491 = vadd.f32 0.0, %v490
  %v492 = vpop.f32.mrf.mxu0
  %v493 = vadd.f32 0.0, %v492
  %494 = vmatmul.bf16.gmra.mxu0 %v383
  %v495 = vpop.f32.mrf.mxu0
  %v496 = vadd.f32 0.0, %v495
  %v497 = vpop.f32.mrf.mxu0
  %v498 = vadd.f32 0.0, %v497
  %499 = vmatmul.bf16.gmra.mxu0 %v386
  %v500 = vpop.f32.mrf.mxu0
  %v501 = vadd.f32 0.0, %v500
  %v502 = vpop.f32.mrf.mxu0
  %v503 = vadd.f32 0.0, %v502
  %504 = vmatmul.bf16.gmra.mxu0 %v389
  %v505 = vpop.f32.mrf.mxu0
  %v506 = vadd.f32 0.0, %v505
  %v507 = vpop.f32.mrf.mxu0
  %v508 = vadd.f32 0.0, %v507
  %509 = vmatmul.bf16.gmra.mxu0 %v392
  %v510 = vpop.f32.mrf.mxu0
  %v511 = vadd.f32 0.0, %v510
  %v512 = vpop.f32.mrf.mxu0
  %v513 = vadd.f32 0.0, %v512
  %514 = vmatmul.bf16.gmra.mxu0 %v395
  %v515 = vpop.f32.mrf.mxu0
  %v516 = vadd.f32 0.0, %v515
  %v517 = vpop.f32.mrf.mxu0
  %v518 = vadd.f32 0.0, %v517
  %519 = vmatmul.bf16.gmra.mxu0 %v398
  %v520 = vpop.f32.mrf.mxu0
  %v521 = vadd.f32 0.0, %v520
  %v522 = vpop.f32.mrf.mxu0
  %v523 = vadd.f32 0.0, %v522
  %524 = vmatmul.bf16.gmra.mxu0 %v401
  %v525 = vpop.f32.mrf.mxu0
  %v526 = vadd.f32 0.0, %v525
  %v527 = vpop.f32.mrf.mxu0
  %v528 = vadd.f32 0.0, %v527
  %529 = vmatmul.bf16.gmra.mxu0 %v404
  %v530 = vpop.f32.mrf.mxu0
  %v531 = vadd.f32 0.0, %v530
  %v532 = vpop.f32.mrf.mxu0
  %v533 = vadd.f32 0.0, %v532
  %534 = vmatmul.bf16.gmra.mxu0 %v407
  %v535 = vpop.f32.mrf.mxu0
  %v536 = vadd.f32 0.0, %v535
  %v537 = vpop.f32.mrf.mxu0
  %v538 = vadd.f32 0.0, %v537
  %539 = vmatmul.bf16.gmra.mxu0 %v410
  %v540 = vpop.f32.mrf.mxu0
  %v541 = vadd.f32 0.0, %v540
  %v542 = vpop.f32.mrf.mxu0
  %v543 = vadd.f32 0.0, %v542
  %544 = vmatmul.bf16.gmra.mxu0 %v413
  %v545 = vpop.f32.mrf.mxu0
  %v546 = vadd.f32 0.0, %v545
  %v547 = vpop.f32.mrf.mxu0
  %v548 = vadd.f32 0.0, %v547
  %549 = vmatmul.bf16.gmra.mxu0 %v416
  %v550 = vpop.f32.mrf.mxu0
  %v551 = vadd.f32 0.0, %v550
  %v552 = vpop.f32.mrf.mxu0
  %v553 = vadd.f32 0.0, %v552
  %554 = vmatmul.bf16.gmra.mxu0 %v419
  %v555 = vpop.f32.mrf.mxu0
  %v556 = vadd.f32 0.0, %v555
  %v557 = vpop.f32.mrf.mxu0
  %v558 = vadd.f32 0.0, %v557
  %559 = vmatmul.bf16.gmra.mxu0 %v422
  %v560 = vpop.f32.mrf.mxu0
  %v561 = vadd.f32 0.0, %v560
  %v562 = vpop.f32.mrf.mxu0
  %v563 = vadd.f32 0.0, %v562
  %564 = vmatmul.bf16.gmra.mxu0 %v425
  %v565 = vpop.f32.mrf.mxu0
  %v566 = vadd.f32 0.0, %v565
  %v567 = vpop.f32.mrf.mxu0
  %v568 = vadd.f32 0.0, %v567
  %569 = vmatmul.bf16.gmra.mxu0 %v428
  %v570 = vpop.f32.mrf.mxu0
  %v571 = vadd.f32 0.0, %v570
  %v572 = vpop.f32.mrf.mxu0
  %v573 = vadd.f32 0.0, %v572
  %574 = vmatmul.bf16.gmra.mxu0 %v431
  %v575 = vpop.f32.mrf.mxu0
  %v576 = vadd.f32 0.0, %v575
  %v577 = vpop.f32.mrf.mxu0
  %v578 = vadd.f32 0.0, %v577
  %579 = vmatmul.bf16.gmra.mxu0 %v434
  %v580 = vpop.f32.mrf.mxu0
  %v581 = vadd.f32 0.0, %v580
  %v582 = vpop.f32.mrf.mxu0
  %v583 = vadd.f32 0.0, %v582
  %584 = vmatmul.bf16.gmra.mxu0 %v437
  %v585 = vpop.f32.mrf.mxu0
  %v586 = vadd.f32 0.0, %v585
  %v587 = vpop.f32.mrf.mxu0
  %v588 = vadd.f32 0.0, %v587
  %589 = vmatmul.bf16.gmra.mxu0 %v440
  %v590 = vpop.f32.mrf.mxu0
  %v591 = vadd.f32 0.0, %v590
  %v592 = vpop.f32.mrf.mxu0
  %v593 = vadd.f32 0.0, %v592
  %594 = vmatmul.bf16.gmra.mxu0 %v443
  %v595 = vpop.f32.mrf.mxu0
  %v596 = vadd.f32 0.0, %v595
  %v597 = vpop.f32.mrf.mxu0
  %v598 = vadd.f32 0.0, %v597
  %599 = vmatmul.bf16.gmra.mxu0 %v446
  %v600 = vpop.f32.mrf.mxu0
  %v601 = vadd.f32 0.0, %v600
  %v602 = vpop.f32.mrf.mxu0
  %v603 = vadd.f32 0.0, %v602
  %604 = vmatmul.bf16.gmra.mxu0 %v449
  %v605 = vpop.f32.mrf.mxu0
  %v606 = vadd.f32 0.0, %v605
  %v607 = vpop.f32.mrf.mxu0
  %v608 = vadd.f32 0.0, %v607
  %609 = vmatmul.bf16.gmra.mxu0 %v452
  %v610 = vpop.f32.mrf.mxu0
  %v611 = vadd.f32 0.0, %v610
  %v612 = vpop.f32.mrf.mxu0
  %v613 = vadd.f32 0.0, %v612
  %614 = vmatmul.bf16.gmra.mxu0 %v455
  %v615 = vpop.f32.mrf.mxu0
  %v616 = vadd.f32 0.0, %v615
  %v617 = vpop.f32.mrf.mxu0
  %v618 = vadd.f32 0.0, %v617
  %619 = vmatmul.bf16.gmra.mxu0 %v458
  %v620 = vpop.f32.mrf.mxu0
  %v621 = vadd.f32 0.0, %v620
  %v622 = vpop.f32.mrf.mxu0
  %v623 = vadd.f32 0.0, %v622
  %624 = vmatmul.bf16.gmra.mxu0 %v461
  %v625 = vpop.f32.mrf.mxu0
  %v626 = vadd.f32 0.0, %v625
  %v627 = vpop.f32.mrf.mxu0
  %v628 = vadd.f32 0.0, %v627
  %629 = vmatmul.bf16.gmra.mxu0 %v464
  %v630 = vpop.f32.mrf.mxu0
  %v631 = vadd.f32 0.0, %v630
  %v632 = vpop.f32.mrf.mxu0
  %v633 = vadd.f32 0.0, %v632
  %634 = vmatmul.bf16.gmra.mxu0 %v467
  %v635 = vpop.f32.mrf.mxu0
  %v636 = vadd.f32 0.0, %v635
  %v637 = vpop.f32.mrf.mxu0
  %v638 = vadd.f32 0.0, %v637
  %639 = vmatmul.bf16.gmra.mxu0 %v470
  %v640 = vpop.f32.mrf.mxu0
  %v641 = vadd.f32 0.0, %v640
  %v642 = vpop.f32.mrf.mxu0
  %v643 = vadd.f32 0.0, %v642
  %644 = vdwg.mxu0
  %v645 = vadd.f32 %v86, %v486
  %v646 = vadd.f32 %v87, %v488
  %v647 = vadd.f32 %v88, %v491
  %v648 = vadd.f32 %v89, %v493
  %v649 = vadd.f32 %v90, %v496
  %v650 = vadd.f32 %v91, %v498
  %v651 = vadd.f32 %v92, %v501
  %v652 = vadd.f32 %v93, %v503
  %v653 = vadd.f32 %v94, %v506
  %v654 = vadd.f32 %v95, %v508
  %v655 = vadd.f32 %v96, %v511
  %v656 = vadd.f32 %v97, %v513
  %v657 = vadd.f32 %v98, %v516
  %v658 = vadd.f32 %v99, %v518
  %v659 = vadd.f32 %v100, %v521
  %v660 = vadd.f32 %v101, %v523
  %v661 = vadd.f32 %v102, %v526
  %v662 = vadd.f32 %v103, %v528
  %v663 = vadd.f32 %v104, %v531
  %v664 = vadd.f32 %v105, %v533
  %v665 = vadd.f32 %v106, %v536
  %v666 = vadd.f32 %v107, %v538
  %v667 = vadd.f32 %v108, %v541
  %v668 = vadd.f32 %v109, %v543
  %v669 = vadd.f32 %v110, %v546
  %v670 = vadd.f32 %v111, %v548
  %v671 = vadd.f32 %v112, %v551
  %v672 = vadd.f32 %v113, %v553
  %v673 = vadd.f32 %v114, %v556
  %v674 = vadd.f32 %v115, %v558
  %v675 = vadd.f32 %v116, %v561
  %v676 = vadd.f32 %v117, %v563
  %v677 = vadd.f32 %v118, %v566
  %v678 = vadd.f32 %v119, %v568
  %v679 = vadd.f32 %v120, %v571
  %v680 = vadd.f32 %v121, %v573
  %v681 = vadd.f32 %v122, %v576
  %v682 = vadd.f32 %v123, %v578
  %v683 = vadd.f32 %v124, %v581
  %v684 = vadd.f32 %v125, %v583
  %v685 = vadd.f32 %v126, %v586
  %v686 = vadd.f32 %v127, %v588
  %v687 = vadd.f32 %v128, %v591
  %v688 = vadd.f32 %v129, %v593
  %v689 = vadd.f32 %v130, %v596
  %v690 = vadd.f32 %v131, %v598
  %v691 = vadd.f32 %v132, %v601
  %v692 = vadd.f32 %v133, %v603
  %v693 = vadd.f32 %v134, %v606
  %v694 = vadd.f32 %v135, %v608
  %v695 = vadd.f32 %v136, %v611
  %v696 = vadd.f32 %v137, %v613
  %v697 = vadd.f32 %v138, %v616
  %v698 = vadd.f32 %v139, %v618
  %v699 = vadd.f32 %v140, %v621
  %v700 = vadd.f32 %v141, %v623
  %v701 = vadd.f32 %v142, %v626
  %v702 = vadd.f32 %v143, %v628
  %v703 = vadd.f32 %v144, %v631
  %v704 = vadd.f32 %v145, %v633
  %v705 = vadd.f32 %v146, %v636
  %v706 = vadd.f32 %v147, %v638
  %v707 = vadd.f32 %v148, %v641
  %v708 = vadd.f32 %v149, %v643
  %709 = vst [vmem:[#allocation2] sm:$0xff] %v645
  %710 = vst [vmem:[#allocation2 + $0x8] sm:$0xff] %v646
  %711 = vst [vmem:[#allocation2 + $0x10] sm:$0xff] %v647
  %712 = vst [vmem:[#allocation2 + $0x18] sm:$0xff] %v648
  %713 = vst [vmem:[#allocation2 + $0x20] sm:$0xff] %v649
  %714 = vst [vmem:[#allocation2 + $0x28] sm:$0xff] %v650
  %715 = vst [vmem:[#allocation2 + $0x30] sm:$0xff] %v651
  %716 = vst [vmem:[#allocation2 + $0x38] sm:$0xff] %v652
  %717 = vst [vmem:[#allocation2 + $0x40] sm:$0xff] %v653
  %718 = vst [vmem:[#allocation2 + $0x48] sm:$0xff] %v654
  %719 = vst [vmem:[#allocation2 + $0x50] sm:$0xff] %v655
  %720 = vst [vmem:[#allocation2 + $0x58] sm:$0xff] %v656
  %721 = vst [vmem:[#allocation2 + $0x60] sm:$0xff] %v657
  %722 = vst [vmem:[#allocation2 + $0x68] sm:$0xff] %v658
  %723 = vst [vmem:[#allocation2 + $0x70] sm:$0xff] %v659
  %724 = vst [vmem:[#allocation2 + $0x78] sm:$0xff] %v660
  %725 = vst [vmem:[#allocation2 + $0x80] sm:$0xff] %v661
  %726 = vst [vmem:[#allocation2 + $0x88] sm:$0xff] %v662
  %727 = vst [vmem:[#allocation2 + $0x90] sm:$0xff] %v663
  %728 = vst [vmem:[#allocation2 + $0x98] sm:$0xff] %v664
  %729 = vst [vmem:[#allocation2 + $0xa0] sm:$0xff] %v665
  %730 = vst [vmem:[#allocation2 + $0xa8] sm:$0xff] %v666
  %731 = vst [vmem:[#allocation2 + $0xb0] sm:$0xff] %v667
  %732 = vst [vmem:[#allocation2 + $0xb8] sm:$0xff] %v668
  %733 = vst [vmem:[#allocation2 + $0xc0] sm:$0xff] %v669
  %734 = vst [vmem:[#allocation2 + $0xc8] sm:$0xff] %v670
  %735 = vst [vmem:[#allocation2 + $0xd0] sm:$0xff] %v671
  %736 = vst [vmem:[#allocation2 + $0xd8] sm:$0xff] %v672
  %737 = vst [vmem:[#allocation2 + $0xe0] sm:$0xff] %v673
  %738 = vst [vmem:[#allocation2 + $0xe8] sm:$0xff] %v674
  %739 = vst [vmem:[#allocation2 + $0xf0] sm:$0xff] %v675
  %740 = vst [vmem:[#allocation2 + $0xf8] sm:$0xff] %v676
  %741 = vst [vmem:[#allocation2 + $0x100] sm:$0xff] %v677
  %742 = vst [vmem:[#allocation2 + $0x108] sm:$0xff] %v678
  %743 = vst [vmem:[#allocation2 + $0x110] sm:$0xff] %v679
  %744 = vst [vmem:[#allocation2 + $0x118] sm:$0xff] %v680
  %745 = vst [vmem:[#allocation2 + $0x120] sm:$0xff] %v681
  %746 = vst [vmem:[#allocation2 + $0x128] sm:$0xff] %v682
  %747 = vst [vmem:[#allocation2 + $0x130] sm:$0xff] %v683
  %748 = vst [vmem:[#allocation2 + $0x138] sm:$0xff] %v684
  %749 = vst [vmem:[#allocation2 + $0x140] sm:$0xff] %v685
  %750 = vst [vmem:[#allocation2 + $0x148] sm:$0xff] %v686
  %751 = vst [vmem:[#allocation2 + $0x150] sm:$0xff] %v687
  %752 = vst [vmem:[#allocation2 + $0x158] sm:$0xff] %v688
  %753 = vst [vmem:[#allocation2 + $0x160] sm:$0xff] %v689
  %754 = vst [vmem:[#allocation2 + $0x168] sm:$0xff] %v690
  %755 = vst [vmem:[#allocation2 + $0x170] sm:$0xff] %v691
  %756 = vst [vmem:[#allocation2 + $0x178] sm:$0xff] %v692
  %757 = vst [vmem:[#allocation2 + $0x180] sm:$0xff] %v693
  %758 = vst [vmem:[#allocation2 + $0x188] sm:$0xff] %v694
  %759 = vst [vmem:[#allocation2 + $0x190] sm:$0xff] %v695
  %760 = vst [vmem:[#allocation2 + $0x198] sm:$0xff] %v696
  %761 = vst [vmem:[#allocation2 + $0x1a0] sm:$0xff] %v697
  %762 = vst [vmem:[#allocation2 + $0x1a8] sm:$0xff] %v698
  %763 = vst [vmem:[#allocation2 + $0x1b0] sm:$0xff] %v699
  %764 = vst [vmem:[#allocation2 + $0x1b8] sm:$0xff] %v700
  %765 = vst [vmem:[#allocation2 + $0x1c0] sm:$0xff] %v701
  %766 = vst [vmem:[#allocation2 + $0x1c8] sm:$0xff] %v702
  %767 = vst [vmem:[#allocation2 + $0x1d0] sm:$0xff] %v703
  %768 = vst [vmem:[#allocation2 + $0x1d8] sm:$0xff] %v704
  %769 = vst [vmem:[#allocation2 + $0x1e0] sm:$0xff] %v705
  %770 = vst [vmem:[#allocation2 + $0x1e8] sm:$0xff] %v706
  %771 = vst [vmem:[#allocation2 + $0x1f0] sm:$0xff] %v707
  %772 = vst [vmem:[#allocation2 + $0x1f8] sm:$0xff] %v708
  // Predicated region
  $region22: #{rt_layer_forward.4} parent=0 // pred_check
    %p773 = pneg %p18
  $region23: #{rt_layer_forward.4} parent=0 // pred_check_branch
    %775 = sbr.rel (%p773) target = $region25
  $region24: #{rt_layer_forward.4} parent=0 // pred_region
    %v776 = vld [vmem:[#allocation2] sm:$0xff]
    %v777 = vld [vmem:[#allocation2 + $0x8] sm:$0xff]
    %v778 = vld [vmem:[#allocation2 + $0x10] sm:$0xff]
    %v779 = vld [vmem:[#allocation2 + $0x18] sm:$0xff]
    %v780 = vld [vmem:[#allocation2 + $0x20] sm:$0xff]
    %v781 = vld [vmem:[#allocation2 + $0x28] sm:$0xff]
    %v782 = vld [vmem:[#allocation2 + $0x30] sm:$0xff]
    %v783 = vld [vmem:[#allocation2 + $0x38] sm:$0xff]
    %v784 = vld [vmem:[#allocation2 + $0x40] sm:$0xff]
    %v785 = vld [vmem:[#allocation2 + $0x48] sm:$0xff]
    %v786 = vld [vmem:[#allocation2 + $0x50] sm:$0xff]
    %v787 = vld [vmem:[#allocation2 + $0x58] sm:$0xff]
    %v788 = vld [vmem:[#allocation2 + $0x60] sm:$0xff]
    %v789 = vld [vmem:[#allocation2 + $0x68] sm:$0xff]
    %v790 = vld [vmem:[#allocation2 + $0x70] sm:$0xff]
    %v791 = vld [vmem:[#allocation2 + $0x78] sm:$0xff]
    %v792 = vld [vmem:[#allocation2 + $0x80] sm:$0xff]
    %v793 = vld [vmem:[#allocation2 + $0x88] sm:$0xff]
    %v794 = vld [vmem:[#allocation2 + $0x90] sm:$0xff]
    %v795 = vld [vmem:[#allocation2 + $0x98] sm:$0xff]
    %v796 = vld [vmem:[#allocation2 + $0xa0] sm:$0xff]
    %v797 = vld [vmem:[#allocation2 + $0xa8] sm:$0xff]
    %v798 = vld [vmem:[#allocation2 + $0xb0] sm:$0xff]
    %v799 = vld [vmem:[#allocation2 + $0xb8] sm:$0xff]
    %v800 = vld [vmem:[#allocation2 + $0xc0] sm:$0xff]
    %v801 = vld [vmem:[#allocation2 + $0xc8] sm:$0xff]
    %v802 = vld [vmem:[#allocation2 + $0xd0] sm:$0xff]
    %v803 = vld [vmem:[#allocation2 + $0xd8] sm:$0xff]
    %v804 = vld [vmem:[#allocation2 + $0xe0] sm:$0xff]
    %v805 = vld [vmem:[#allocation2 + $0xe8] sm:$0xff]
    %v806 = vld [vmem:[#allocation2 + $0xf0] sm:$0xff]
    %v807 = vld [vmem:[#allocation2 + $0xf8] sm:$0xff]
    %v808 = vld [vmem:[#allocation2 + $0x100] sm:$0xff]
    %v809 = vld [vmem:[#allocation2 + $0x108] sm:$0xff]
    %v810 = vld [vmem:[#allocation2 + $0x110] sm:$0xff]
    %v811 = vld [vmem:[#allocation2 + $0x118] sm:$0xff]
    %v812 = vld [vmem:[#allocation2 + $0x120] sm:$0xff]
    %v813 = vld [vmem:[#allocation2 + $0x128] sm:$0xff]
    %v814 = vld [vmem:[#allocation2 + $0x130] sm:$0xff]
    %v815 = vld [vmem:[#allocation2 + $0x138] sm:$0xff]
    %v816 = vld [vmem:[#allocation2 + $0x140] sm:$0xff]
    %v817 = vld [vmem:[#allocation2 + $0x148] sm:$0xff]
    %v818 = vld [vmem:[#allocation2 + $0x150] sm:$0xff]
    %v819 = vld [vmem:[#allocation2 + $0x158] sm:$0xff]
    %v820 = vld [vmem:[#allocation2 + $0x160] sm:$0xff]
    %v821 = vld [vmem:[#allocation2 + $0x168] sm:$0xff]
    %v822 = vld [vmem:[#allocation2 + $0x170] sm:$0xff]
    %v823 = vld [vmem:[#allocation2 + $0x178] sm:$0xff]
    %v824 = vld [vmem:[#allocation2 + $0x180] sm:$0xff]
    %v825 = vld [vmem:[#allocation2 + $0x188] sm:$0xff]
    %v826 = vld [vmem:[#allocation2 + $0x190] sm:$0xff]
    %v827 = vld [vmem:[#allocation2 + $0x198] sm:$0xff]
    %v828 = vld [vmem:[#allocation2 + $0x1a0] sm:$0xff]
    %v829 = vld [vmem:[#allocation2 + $0x1a8] sm:$0xff]
    %v830 = vld [vmem:[#allocation2 + $0x1b0] sm:$0xff]
    %v831 = vld [vmem:[#allocation2 + $0x1b8] sm:$0xff]
    %v832 = vld [vmem:[#allocation2 + $0x1c0] sm:$0xff]
    %v833 = vld [vmem:[#allocation2 + $0x1c8] sm:$0xff]
    %v834 = vld [vmem:[#allocation2 + $0x1d0] sm:$0xff]
    %v835 = vld [vmem:[#allocation2 + $0x1d8] sm:$0xff]
    %v836 = vld [vmem:[#allocation2 + $0x1e0] sm:$0xff]
    %v837 = vld [vmem:[#allocation2 + $0x1e8] sm:$0xff]
    %v838 = vld [vmem:[#allocation2 + $0x1f0] sm:$0xff]
    %v839 = vld [vmem:[#allocation2 + $0x1f8] sm:$0xff]
    %v840 = vld [vmem:[%s2] sm:$0x1]
    %v842 = vperm.slane %v840, 0
    %v844 = vmul.f32 %v776, %v842
    %v845 = vmul.f32 %v777, %v842
    %v846 = vmul.f32 %v778, %v842
    %v847 = vmul.f32 %v779, %v842
    %v848 = vmul.f32 %v780, %v842
    %v849 = vmul.f32 %v781, %v842
    %v850 = vmul.f32 %v782, %v842
    %v851 = vmul.f32 %v783, %v842
    %v852 = vmul.f32 %v784, %v842
    %v853 = vmul.f32 %v785, %v842
    %v854 = vmul.f32 %v786, %v842
    %v855 = vmul.f32 %v787, %v842
    %v856 = vmul.f32 %v788, %v842
    %v857 = vmul.f32 %v789, %v842
    %v858 = vmul.f32 %v790, %v842
    %v859 = vmul.f32 %v791, %v842
    %v860 = vmul.f32 %v792, %v842
    %v861 = vmul.f32 %v793, %v842
    %v862 = vmul.f32 %v794, %v842
    %v863 = vmul.f32 %v795, %v842
    %v864 = vmul.f32 %v796, %v842
    %v865 = vmul.f32 %v797, %v842
    %v866 = vmul.f32 %v798, %v842
    %v867 = vmul.f32 %v799, %v842
    %v868 = vmul.f32 %v800, %v842
    %v869 = vmul.f32 %v801, %v842
    %v870 = vmul.f32 %v802, %v842
    %v871 = vmul.f32 %v803, %v842
    %v872 = vmul.f32 %v804, %v842
    %v873 = vmul.f32 %v805, %v842
    %v874 = vmul.f32 %v806, %v842
    %v875 = vmul.f32 %v807, %v842
    %v876 = vmul.f32 %v808, %v842
    %v877 = vmul.f32 %v809, %v842
    %v878 = vmul.f32 %v810, %v842
    %v879 = vmul.f32 %v811, %v842
    %v880 = vmul.f32 %v812, %v842
    %v881 = vmul.f32 %v813, %v842
    %v882 = vmul.f32 %v814, %v842
    %v883 = vmul.f32 %v815, %v842
    %v884 = vmul.f32 %v816, %v842
    %v885 = vmul.f32 %v817, %v842
    %v886 = vmul.f32 %v818, %v842
    %v887 = vmul.f32 %v819, %v842
    %v888 = vmul.f32 %v820, %v842
    %v889 = vmul.f32 %v821, %v842
    %v890 = vmul.f32 %v822, %v842
    %v891 = vmul.f32 %v823, %v842
    %v892 = vmul.f32 %v824, %v842
    %v893 = vmul.f32 %v825, %v842
    %v894 = vmul.f32 %v826, %v842
    %v895 = vmul.f32 %v827, %v842
    %v896 = vmul.f32 %v828, %v842
    %v897 = vmul.f32 %v829, %v842
    %v898 = vmul.f32 %v830, %v842
    %v899 = vmul.f32 %v831, %v842
    %v900 = vmul.f32 %v832, %v842
    %v901 = vmul.f32 %v833, %v842
    %v902 = vmul.f32 %v834, %v842
    %v903 = vmul.f32 %v835, %v842
    %v904 = vmul.f32 %v836, %v842
    %v905 = vmul.f32 %v837, %v842
    %v906 = vmul.f32 %v838, %v842
    %v907 = vmul.f32 %v839, %v842
    %v908 = vld [vmem:[%s3] sm:$0x1]
    %v910 = vperm.slane %v908, 0
    %v912 = vadd.f32 %v844, %v910
    %v913 = vadd.f32 %v845, %v910
    %v914 = vadd.f32 %v846, %v910
    %v915 = vadd.f32 %v847, %v910
    %v916 = vadd.f32 %v848, %v910
    %v917 = vadd.f32 %v849, %v910
    %v918 = vadd.f32 %v850, %v910
    %v919 = vadd.f32 %v851, %v910
    %v920 = vadd.f32 %v852, %v910
    %v921 = vadd.f32 %v853, %v910
    %v922 = vadd.f32 %v854, %v910
    %v923 = vadd.f32 %v855, %v910
    %v924 = vadd.f32 %v856, %v910
    %v925 = vadd.f32 %v857, %v910
    %v926 = vadd.f32 %v858, %v910
    %v927 = vadd.f32 %v859, %v910
    %v928 = vadd.f32 %v860, %v910
    %v929 = vadd.f32 %v861, %v910
    %v930 = vadd.f32 %v862, %v910
    %v931 = vadd.f32 %v863, %v910
    %v932 = vadd.f32 %v864, %v910
    %v933 = vadd.f32 %v865, %v910
    %v934 = vadd.f32 %v866, %v910
    %v935 = vadd.f32 %v867, %v910
    %v936 = vadd.f32 %v868, %v910
    %v937 = vadd.f32 %v869, %v910
    %v938 = vadd.f32 %v870, %v910
    %v939 = vadd.f32 %v871, %v910
    %v940 = vadd.f32 %v872, %v910
    %v941 = vadd.f32 %v873, %v910
    %v942 = vadd.f32 %v874, %v910
    %v943 = vadd.f32 %v875, %v910
    %v944 = vadd.f32 %v876, %v910
    %v945 = vadd.f32 %v877, %v910
    %v946 = vadd.f32 %v878, %v910
    %v947 = vadd.f32 %v879, %v910
    %v948 = vadd.f32 %v880, %v910
    %v949 = vadd.f32 %v881, %v910
    %v950 = vadd.f32 %v882, %v910
    %v951 = vadd.f32 %v883, %v910
    %v952 = vadd.f32 %v884, %v910
    %v953 = vadd.f32 %v885, %v910
    %v954 = vadd.f32 %v886, %v910
    %v955 = vadd.f32 %v887, %v910
    %v956 = vadd.f32 %v888, %v910
    %v957 = vadd.f32 %v889, %v910
    %v958 = vadd.f32 %v890, %v910
    %v959 = vadd.f32 %v891, %v910
    %v960 = vadd.f32 %v892, %v910
    %v961 = vadd.f32 %v893, %v910
    %v962 = vadd.f32 %v894, %v910
    %v963 = vadd.f32 %v895, %v910
    %v964 = vadd.f32 %v896, %v910
    %v965 = vadd.f32 %v897, %v910
    %v966 = vadd.f32 %v898, %v910
    %v967 = vadd.f32 %v899, %v910
    %v968 = vadd.f32 %v900, %v910
    %v969 = vadd.f32 %v901, %v910
    %v970 = vadd.f32 %v902, %v910
    %v971 = vadd.f32 %v903, %v910
    %v972 = vadd.f32 %v904, %v910
    %v973 = vadd.f32 %v905, %v910
    %v974 = vadd.f32 %v906, %v910
    %v975 = vadd.f32 %v907, %v910
    %v976 = vmax.f32 %v912, 0.0
    %v977 = vmax.f32 %v913, 0.0
    %v978 = vmax.f32 %v914, 0.0
    %v979 = vmax.f32 %v915, 0.0
    %v980 = vmax.f32 %v916, 0.0
    %v981 = vmax.f32 %v917, 0.0
    %v982 = vmax.f32 %v918, 0.0
    %v983 = vmax.f32 %v919, 0.0
    %v984 = vmax.f32 %v920, 0.0
    %v985 = vmax.f32 %v921, 0.0
    %v986 = vmax.f32 %v922, 0.0
    %v987 = vmax.f32 %v923, 0.0
    %v988 = vmax.f32 %v924, 0.0
    %v989 = vmax.f32 %v925, 0.0
    %v990 = vmax.f32 %v926, 0.0
    %v991 = vmax.f32 %v927, 0.0
    %v992 = vmax.f32 %v928, 0.0
    %v993 = vmax.f32 %v929, 0.0
    %v994 = vmax.f32 %v930, 0.0
    %v995 = vmax.f32 %v931, 0.0
    %v996 = vmax.f32 %v932, 0.0
    %v997 = vmax.f32 %v933, 0.0
    %v998 = vmax.f32 %v934, 0.0
    %v999 = vmax.f32 %v935, 0.0
    %v1000 = vmax.f32 %v936, 0.0
    %v1001 = vmax.f32 %v937, 0.0
    %v1002 = vmax.f32 %v938, 0.0
    %v1003 = vmax.f32 %v939, 0.0
    %v1004 = vmax.f32 %v940, 0.0
    %v1005 = vmax.f32 %v941, 0.0
    %v1006 = vmax.f32 %v942, 0.0
    %v1007 = vmax.f32 %v943, 0.0
    %v1008 = vmax.f32 %v944, 0.0
    %v1009 = vmax.f32 %v945, 0.0
    %v1010 = vmax.f32 %v946, 0.0
    %v1011 = vmax.f32 %v947, 0.0
    %v1012 = vmax.f32 %v948, 0.0
    %v1013 = vmax.f32 %v949, 0.0
    %v1014 = vmax.f32 %v950, 0.0
    %v1015 = vmax.f32 %v951, 0.0
    %v1016 = vmax.f32 %v952, 0.0
    %v1017 = vmax.f32 %v953, 0.0
    %v1018 = vmax.f32 %v954, 0.0
    %v1019 = vmax.f32 %v955, 0.0
    %v1020 = vmax.f32 %v956, 0.0
    %v1021 = vmax.f32 %v957, 0.0
    %v1022 = vmax.f32 %v958, 0.0
    %v1023 = vmax.f32 %v959, 0.0
    %v1024 = vmax.f32 %v960, 0.0
    %v1025 = vmax.f32 %v961, 0.0
    %v1026 = vmax.f32 %v962, 0.0
    %v1027 = vmax.f32 %v963, 0.0
    %v1028 = vmax.f32 %v964, 0.0
    %v1029 = vmax.f32 %v965, 0.0
    %v1030 = vmax.f32 %v966, 0.0
    %v1031 = vmax.f32 %v967, 0.0
    %v1032 = vmax.f32 %v968, 0.0
    %v1033 = vmax.f32 %v969, 0.0
    %v1034 = vmax.f32 %v970, 0.0
    %v1035 = vmax.f32 %v971, 0.0
    %v1036 = vmax.f32 %v972, 0.0
    %v1037 = vmax.f32 %v973, 0.0
    %v1038 = vmax.f32 %v974, 0.0
    %v1039 = vmax.f32 %v975, 0.0
    %v1040 = vpack.c.bf16 %v976, %v976
    %v1041 = vpack.c.bf16 %v977, %v977
    %v1042 = vpack.c.bf16 %v978, %v978
    %v1043 = vpack.c.bf16 %v979, %v979
    %v1044 = vpack.c.bf16 %v980, %v980
    %v1045 = vpack.c.bf16 %v981, %v981
    %v1046 = vpack.c.bf16 %v982, %v982
    %v1047 = vpack.c.bf16 %v983, %v983
    %v1048 = vpack.c.bf16 %v984, %v984
    %v1049 = vpack.c.bf16 %v985, %v985
    %v1050 = vpack.c.bf16 %v986, %v986
    %v1051 = vpack.c.bf16 %v987, %v987
    %v1052 = vpack.c.bf16 %v988, %v988
    %v1053 = vpack.c.bf16 %v989, %v989
    %v1054 = vpack.c.bf16 %v990, %v990
    %v1055 = vpack.c.bf16 %v991, %v991
    %v1056 = vpack.c.bf16 %v992, %v992
    %v1057 = vpack.c.bf16 %v993, %v993
    %v1058 = vpack.c.bf16 %v994, %v994
    %v1059 = vpack.c.bf16 %v995, %v995
    %v1060 = vpack.c.bf16 %v996, %v996
    %v1061 = vpack.c.bf16 %v997, %v997
    %v1062 = vpack.c.bf16 %v998, %v998
    %v1063 = vpack.c.bf16 %v999, %v999
    %v1064 = vpack.c.bf16 %v1000, %v1000
    %v1065 = vpack.c.bf16 %v1001, %v1001
    %v1066 = vpack.c.bf16 %v1002, %v1002
    %v1067 = vpack.c.bf16 %v1003, %v1003
    %v1068 = vpack.c.bf16 %v1004, %v1004
    %v1069 = vpack.c.bf16 %v1005, %v1005
    %v1070 = vpack.c.bf16 %v1006, %v1006
    %v1071 = vpack.c.bf16 %v1007, %v1007
    %v1072 = vpack.c.bf16 %v1008, %v1008
    %v1073 = vpack.c.bf16 %v1009, %v1009
    %v1074 = vpack.c.bf16 %v1010, %v1010
    %v1075 = vpack.c.bf16 %v1011, %v1011
    %v1076 = vpack.c.bf16 %v1012, %v1012
    %v1077 = vpack.c.bf16 %v1013, %v1013
    %v1078 = vpack.c.bf16 %v1014, %v1014
    %v1079 = vpack.c.bf16 %v1015, %v1015
    %v1080 = vpack.c.bf16 %v1016, %v1016
    %v1081 = vpack.c.bf16 %v1017, %v1017
    %v1082 = vpack.c.bf16 %v1018, %v1018
    %v1083 = vpack.c.bf16 %v1019, %v1019
    %v1084 = vpack.c.bf16 %v1020, %v1020
    %v1085 = vpack.c.bf16 %v1021, %v1021
    %v1086 = vpack.c.bf16 %v1022, %v1022
    %v1087 = vpack.c.bf16 %v1023, %v1023
    %v1088 = vpack.c.bf16 %v1024, %v1024
    %v1089 = vpack.c.bf16 %v1025, %v1025
    %v1090 = vpack.c.bf16 %v1026, %v1026
    %v1091 = vpack.c.bf16 %v1027, %v1027
    %v1092 = vpack.c.bf16 %v1028, %v1028
    %v1093 = vpack.c.bf16 %v1029, %v1029
    %v1094 = vpack.c.bf16 %v1030, %v1030
    %v1095 = vpack.c.bf16 %v1031, %v1031
    %v1096 = vpack.c.bf16 %v1032, %v1032
    %v1097 = vpack.c.bf16 %v1033, %v1033
    %v1098 = vpack.c.bf16 %v1034, %v1034
    %v1099 = vpack.c.bf16 %v1035, %v1035
    %v1100 = vpack.c.bf16 %v1036, %v1036
    %v1101 = vpack.c.bf16 %v1037, %v1037
    %v1102 = vpack.c.bf16 %v1038, %v1038
    %v1103 = vpack.c.bf16 %v1039, %v1039
    %1104 = vst [vmem:[%s4] sm:$0xf] %v1040
    %1105 = vst [vmem:[%s4 + $0x4] sm:$0xf] %v1041
    %1106 = vst [vmem:[%s4 + $0x8] sm:$0xf] %v1042
    %1107 = vst [vmem:[%s4 + $0xc] sm:$0xf] %v1043
    %1108 = vst [vmem:[%s4 + $0x10] sm:$0xf] %v1044
    %1109 = vst [vmem:[%s4 + $0x14] sm:$0xf] %v1045
    %1110 = vst [vmem:[%s4 + $0x18] sm:$0xf] %v1046
    %1111 = vst [vmem:[%s4 + $0x1c] sm:$0xf] %v1047
    %1112 = vst [vmem:[%s4 + $0x20] sm:$0xf] %v1048
    %1113 = vst [vmem:[%s4 + $0x24] sm:$0xf] %v1049
    %1114 = vst [vmem:[%s4 + $0x28] sm:$0xf] %v1050
    %1115 = vst [vmem:[%s4 + $0x2c] sm:$0xf] %v1051
    %1116 = vst [vmem:[%s4 + $0x30] sm:$0xf] %v1052
    %1117 = vst [vmem:[%s4 + $0x34] sm:$0xf] %v1053
    %1118 = vst [vmem:[%s4 + $0x38] sm:$0xf] %v1054
    %1119 = vst [vmem:[%s4 + $0x3c] sm:$0xf] %v1055
    %1120 = vst [vmem:[%s4 + $0x40] sm:$0xf] %v1056
    %1121 = vst [vmem:[%s4 + $0x44] sm:$0xf] %v1057
    %1122 = vst [vmem:[%s4 + $0x48] sm:$0xf] %v1058
    %1123 = vst [vmem:[%s4 + $0x4c] sm:$0xf] %v1059
    %1124 = vst [vmem:[%s4 + $0x50] sm:$0xf] %v1060
    %1125 = vst [vmem:[%s4 + $0x54] sm:$0xf] %v1061
    %1126 = vst [vmem:[%s4 + $0x58] sm:$0xf] %v1062
    %1127 = vst [vmem:[%s4 + $0x5c] sm:$0xf] %v1063
    %1128 = vst [vmem:[%s4 + $0x60] sm:$0xf] %v1064
    %1129 = vst [vmem:[%s4 + $0x64] sm:$0xf] %v1065
    %1130 = vst [vmem:[%s4 + $0x68] sm:$0xf] %v1066
    %1131 = vst [vmem:[%s4 + $0x6c] sm:$0xf] %v1067
    %1132 = vst [vmem:[%s4 + $0x70] sm:$0xf] %v1068
    %1133 = vst [vmem:[%s4 + $0x74] sm:$0xf] %v1069
    %1134 = vst [vmem:[%s4 + $0x78] sm:$0xf] %v1070
    %1135 = vst [vmem:[%s4 + $0x7c] sm:$0xf] %v1071
    %1136 = vst [vmem:[%s4 + $0x80] sm:$0xf] %v1072
    %1137 = vst [vmem:[%s4 + $0x84] sm:$0xf] %v1073
    %1138 = vst [vmem:[%s4 + $0x88] sm:$0xf] %v1074
    %1139 = vst [vmem:[%s4 + $0x8c] sm:$0xf] %v1075
    %1140 = vst [vmem:[%s4 + $0x90] sm:$0xf] %v1076
    %1141 = vst [vmem:[%s4 + $0x94] sm:$0xf] %v1077
    %1142 = vst [vmem:[%s4 + $0x98] sm:$0xf] %v1078
    %1143 = vst [vmem:[%s4 + $0x9c] sm:$0xf] %v1079
    %1144 = vst [vmem:[%s4 + $0xa0] sm:$0xf] %v1080
    %1145 = vst [vmem:[%s4 + $0xa4] sm:$0xf] %v1081
    %1146 = vst [vmem:[%s4 + $0xa8] sm:$0xf] %v1082
    %1147 = vst [vmem:[%s4 + $0xac] sm:$0xf] %v1083
    %1148 = vst [vmem:[%s4 + $0xb0] sm:$0xf] %v1084
    %1149 = vst [vmem:[%s4 + $0xb4] sm:$0xf] %v1085
    %1150 = vst [vmem:[%s4 + $0xb8] sm:$0xf] %v1086
    %1151 = vst [vmem:[%s4 + $0xbc] sm:$0xf] %v1087
    %1152 = vst [vmem:[%s4 + $0xc0] sm:$0xf] %v1088
    %1153 = vst [vmem:[%s4 + $0xc4] sm:$0xf] %v1089
    %1154 = vst [vmem:[%s4 + $0xc8] sm:$0xf] %v1090
    %1155 = vst [vmem:[%s4 + $0xcc] sm:$0xf] %v1091
    %1156 = vst [vmem:[%s4 + $0xd0] sm:$0xf] %v1092
    %1157 = vst [vmem:[%s4 + $0xd4] sm:$0xf] %v1093
    %1158 = vst [vmem:[%s4 + $0xd8] sm:$0xf] %v1094
    %1159 = vst [vmem:[%s4 + $0xdc] sm:$0xf] %v1095
    %1160 = vst [vmem:[%s4 + $0xe0] sm:$0xf] %v1096
    %1161 = vst [vmem:[%s4 + $0xe4] sm:$0xf] %v1097
    %1162 = vst [vmem:[%s4 + $0xe8] sm:$0xf] %v1098
    %1163 = vst [vmem:[%s4 + $0xec] sm:$0xf] %v1099
    %1164 = vst [vmem:[%s4 + $0xf0] sm:$0xf] %v1100
    %1165 = vst [vmem:[%s4 + $0xf4] sm:$0xf] %v1101
    %1166 = vst [vmem:[%s4 + $0xf8] sm:$0xf] %v1102
    %1167 = vst [vmem:[%s4 + $0xfc] sm:$0xf] %v1103
  $region25: #{rt_layer_forward.4} parent=0 // pred_fallthru
    _
  // Predicated region
  $region26: #{rt_layer_forward.4} parent=0 // pred_check
    _
  $region27: #{rt_layer_forward.4} parent=0 // pred_check_branch
    %1169 = sbr.rel (0) target = $region29
  $region28: #{rt_layer_forward.4} parent=0 // pred_region
    _
  $region29: #{rt_layer_forward.4} parent=0 // pred_fallthru
    _
  // Predicated region
  $region30: #{rt_layer_forward.4} parent=0 // pred_check
    _
  $region31: #{rt_layer_forward.4} parent=0 // pred_check_branch
    %1171 = sbr.rel (0) target = $region33
  $region32: #{rt_layer_forward.4} parent=0 // pred_region
    _
  $region33: #{rt_layer_forward.4} parent=0 // pred_fallthru
    _

// kernel: rt_layer_forward.7
$region0: #{rt_layer_forward.7}
  #allocation0 [shape = 'u32[]', space=smem, size = 0x4, offset = 0x4, fixed_abs, tag = 'smem constant byte address 0x4 - core index']
  #allocation1 [shape = 'u32[72,128]{1,0:T(1,128)}', space=vmem, size = 0x9000, scoped, tag = 'internal scratch']
  %s0 = inlined_call_operand.vmem [shape: bf16[2,82,128], index: 0, kind: input, shape index: {}]
  %s1 = inlined_call_operand.vmem [shape: bf16[9,128,128], index: 1, kind: input, shape index: {}]
  %s2 = inlined_call_operand.vmem [shape: f32[1,128], index: 2, kind: input, shape index: {}]
  %s3 = inlined_call_operand.vmem [shape: f32[1,128], index: 3, kind: input, shape index: {}]
  %s4 = inlined_call_operand.vmem [shape: f32[2,64,128], index: 4, kind: output, shape index: {}]
  %s5 = sld [smem:[#allocation0]]
  $region49: #{rt_layer_forward.7} parent=0
    _
  %s7 = ssub.s32 1, %s5
  %s8 = scalar_select 0, %s7, %s5
  loop: start=0, step=1, limit=4
  $region2: #{rt_layer_forward.7} parent=0 // loop_pre_header
    _
  $region3: #{rt_layer_forward.7} parent=0 // loop_header
    %s10 = sphi 0, %s14
    %p11 = scmp.ge.s32.totalorder %s10, 4
    %s20 = sphi 0, %s22
    %s23 = sphi 0, %s20
    %s24 = sphi 0, %s23
    %s40 = sphi 0, %s24
    %s44 = sphi 0, %s44
    %s46 = sphi 0, %s44
    %s47 = sphi 0, %s46
    %s61 = sphi 0, %s47
    %s65 = sphi 0, %s65
    %s67 = sphi 0, %s65
    %s68 = sphi 0, %s67
    %s82 = sphi 0, %s68
    %s86 = sphi 0, %s86
    %s88 = sphi 0, %s86
    %s89 = sphi 0, %s88
    %s103 = sphi 0, %s89
    %s109 = sphi 0, %s111
    %s112 = sphi 0, %s109
    %s113 = sphi 0, %s112
    %s129 = sphi 0, %s113
  $region4: #{rt_layer_forward.7} parent=0 // loop_header_branch
    %13 = sbr.rel (%p11) target = $region8
  $region5: #{rt_layer_forward.7} parent=0 // loop_body
    %s15 = ssub.s32 %s10, 1
    %s16 = ssub.s32 %s10, 2
    %s17 = sadd.s32 %s10, 1
    %s18 = ssub.s32 %s10, %s17
    %p19 = scmp.eq.s32.totalorder %s18, 0
    %s21 = sadd.s32 %s20, 1
    %s22 = scalar_select %p19, %s20, %s21
    %p25 = pneg %p19
    %p26 = scmp.eq.s32.totalorder %s10, 1
    %p27 = por %p25, %p26
    %p28 = scmp.ne.s32.totalorder %s20, %s23
    %p29 = scmp.eq.s32.totalorder %s10, 0
    %p30 = por %p28, %p29
    %p31 = scmp.ne.s32.totalorder %s20, %s23
    %p32 = scmp.eq.s32.totalorder %s15, 1
    %p33 = por %p31, %p32
    %p34 = scmp.ne.s32.totalorder %s23, %s24
    %p35 = scmp.eq.s32.totalorder %s15, 0
    %p36 = por %p34, %p35
    %p37 = scmp.ne.s32.totalorder %s23, %s24
    %p38 = scmp.eq.s32.totalorder %s16, 1
    %p39 = por %p37, %p38
    %p41 = scmp.ne.s32.totalorder %s24, %s40
    %p42 = scmp.eq.s32.totalorder %s16, 0
    %p43 = por %p41, %p42
    %s45 = sadd.s32 %s44, 1
    %p48 = scmp.eq.s32.totalorder %s10, 1
    %p49 = scmp.ne.s32.totalorder %s44, %s46
    %p50 = scmp.eq.s32.totalorder %s10, 0
    %p51 = por %p49, %p50
    %p52 = scmp.ne.s32.totalorder %s44, %s46
    %p53 = scmp.eq.s32.totalorder %s15, 1
    %p54 = por %p52, %p53
    %p55 = scmp.ne.s32.totalorder %s46, %s47
    %p56 = scmp.eq.s32.totalorder %s15, 0
    %p57 = por %p55, %p56
    %p58 = scmp.ne.s32.totalorder %s46, %s47
    %p59 = scmp.eq.s32.totalorder %s16, 1
    %p60 = por %p58, %p59
    %p62 = scmp.ne.s32.totalorder %s47, %s61
    %p63 = scmp.eq.s32.totalorder %s16, 0
    %p64 = por %p62, %p63
    %s66 = sadd.s32 %s65, 1
    %p69 = scmp.eq.s32.totalorder %s10, 1
    %p70 = scmp.ne.s32.totalorder %s65, %s67
    %p71 = scmp.eq.s32.totalorder %s10, 0
    %p72 = por %p70, %p71
    %p73 = scmp.ne.s32.totalorder %s65, %s67
    %p74 = scmp.eq.s32.totalorder %s15, 1
    %p75 = por %p73, %p74
    %p76 = scmp.ne.s32.totalorder %s67, %s68
    %p77 = scmp.eq.s32.totalorder %s15, 0
    %p78 = por %p76, %p77
    %p79 = scmp.ne.s32.totalorder %s67, %s68
    %p80 = scmp.eq.s32.totalorder %s16, 1
    %p81 = por %p79, %p80
    %p83 = scmp.ne.s32.totalorder %s68, %s82
    %p84 = scmp.eq.s32.totalorder %s16, 0
    %p85 = por %p83, %p84
    %s87 = sadd.s32 %s86, 1
    %p90 = scmp.eq.s32.totalorder %s10, 1
    %p91 = scmp.ne.s32.totalorder %s86, %s88
    %p92 = scmp.eq.s32.totalorder %s10, 0
    %p93 = por %p91, %p92
    %p94 = scmp.ne.s32.totalorder %s86, %s88
    %p95 = scmp.eq.s32.totalorder %s15, 1
    %p96 = por %p94, %p95
    %p97 = scmp.ne.s32.totalorder %s88, %s89
    %p98 = scmp.eq.s32.totalorder %s15, 0
    %p99 = por %p97, %p98
    %p100 = scmp.ne.s32.totalorder %s88, %s89
    %p101 = scmp.eq.s32.totalorder %s16, 1
    %p102 = por %p100, %p101
    %p104 = scmp.ne.s32.totalorder %s89, %s103
    %p105 = scmp.eq.s32.totalorder %s16, 0
    %p106 = por %p104, %p105
    %s107 = ssub.s32 %s10, %s17
    %p108 = scmp.eq.s32.totalorder %s107, 0
    %s110 = sadd.s32 %s109, 1
    %s111 = scalar_select %p108, %s109, %s110
    %p114 = pneg %p108
    %p115 = scmp.eq.s32.totalorder %s10, 1
    %p116 = por %p114, %p115
    %p117 = scmp.ne.s32.totalorder %s109, %s112
    %p118 = scmp.eq.s32.totalorder %s10, 0
    %p119 = por %p117, %p118
    %p120 = scmp.ne.s32.totalorder %s109, %s112
    %p121 = scmp.eq.s32.totalorder %s15, 1
    %p122 = por %p120, %p121
    %p123 = scmp.ne.s32.totalorder %s112, %s113
    %p124 = scmp.eq.s32.totalorder %s15, 0
    %p125 = por %p123, %p124
    %p126 = scmp.ne.s32.totalorder %s112, %s113
    %p127 = scmp.eq.s32.totalorder %s16, 1
    %p128 = por %p126, %p127
    %p130 = scmp.ne.s32.totalorder %s113, %s129
    %p131 = scmp.eq.s32.totalorder %s16, 0
    %p132 = por %p130, %p131
    %p133 = scmp.le.s32.totalorder 1, %s10
    %p134 = scmp.lt.s32.totalorder %s10, 3
    %p135 = pnand %p133, %p134
    %p136 = pneg %p135
    // Predicated region
    $region9: #{rt_layer_forward.7} parent=5 // pred_check
      _
    $region10: #{rt_layer_forward.7} parent=5 // pred_check_branch
      %138 = sbr.rel (%p135) target = $region12
    $region11: #{rt_layer_forward.7} parent=5 // pred_region
      %s139 = ssub.s32 %s10, 1
      // Predicated region
      $region13: #{rt_layer_forward.7} parent=11 // pred_check
        %p140 = pneg %p57
      $region14: #{rt_layer_forward.7} parent=11 // pred_check_branch
        %142 = sbr.rel (%p140) target = $region16
      $region15: #{rt_layer_forward.7} parent=11 // pred_region
        _
      $region16: #{rt_layer_forward.7} parent=11 // pred_fallthru
        _
      // Predicated region
      $region17: #{rt_layer_forward.7} parent=11 // pred_check
        %p143 = pneg %p78
      $region18: #{rt_layer_forward.7} parent=11 // pred_check_branch
        %145 = sbr.rel (%p143) target = $region20
      $region19: #{rt_layer_forward.7} parent=11 // pred_region
        _
      $region20: #{rt_layer_forward.7} parent=11 // pred_fallthru
        _
      // Predicated region
      $region21: #{rt_layer_forward.7} parent=11 // pred_check
        %p146 = pneg %p99
      $region22: #{rt_layer_forward.7} parent=11 // pred_check_branch
        %148 = sbr.rel (%p146) target = $region24
      $region23: #{rt_layer_forward.7} parent=11 // pred_region
        _
      $region24: #{rt_layer_forward.7} parent=11 // pred_fallthru
        _
    $region12: #{rt_layer_forward.7} parent=5 // pred_fallthru
      _
    %p149 = scmp.lt.s32.totalorder %s10, 2
    // Predicated region
    $region25: #{rt_layer_forward.7} parent=5 // pred_check
      %p150 = pneg %p149
    $region26: #{rt_layer_forward.7} parent=5 // pred_check_branch
      %152 = sbr.rel (%p150) target = $region28
    $region27: #{rt_layer_forward.7} parent=5 // pred_region
      // Predicated region
      $region29: #{rt_layer_forward.7} parent=27 // pred_check
        %p153 = pneg %p30
      $region30: #{rt_layer_forward.7} parent=27 // pred_check_branch
        %155 = sbr.rel (%p153) target = $region32
      $region31: #{rt_layer_forward.7} parent=27 // pred_region
        %p156 = scmp.lt.s32.totalorder %s10, 1
        %s157 = scalar_select %p156, %s10, 1
        %s158 = smul.addr %s157, 11
        %s159 = smul.addr %s158, 4
        %s160 = scalar_lea.vmem %s0, %s159
      $region32: #{rt_layer_forward.7} parent=27 // pred_fallthru
        _
    $region28: #{rt_layer_forward.7} parent=5 // pred_fallthru
      _
    %p161 = scmp.le.s32.totalorder 1, %s10
    %p162 = scmp.lt.s32.totalorder %s10, 3
    %p163 = pnand %p161, %p162
    %p164 = pneg %p163
    // Predicated region
    $region33: #{rt_layer_forward.7} parent=5 // pred_check
      _
    $region34: #{rt_layer_forward.7} parent=5 // pred_check_branch
      %166 = sbr.rel (%p163) target = $region36
    $region35: #{rt_layer_forward.7} parent=5 // pred_region
      %s167 = ssub.s32 %s10, 1
      %p168 = scmp.lt.s32.totalorder %s15, 1
      %s169 = scalar_select %p168, %s15, 1
      %s170 = smul.addr %s169, 11
      %s171 = smul.addr %s170, 4
      %s172 = scalar_lea.vmem %s0, %s171
      %p173 = pneg %p36
      %p174 = pneg %p33
      %p175 = pneg %p57
      %p176 = pneg %p54
      %p177 = pneg %p78
      %p178 = pneg %p75
      %p179 = pneg %p99
      %p180 = pneg %p96
      %p181 = pneg %p125
      %p182 = pneg %p122
      %p183 = scmp.lt.s32.totalorder %s15, 1
      %s184 = scalar_select %p183, %s15, 1
      %s185 = smul.addr %s184, 8
      %s186 = smul.addr %s185, 8
      %s187 = scalar_lea.vmem %s4, %s186
      %p188 = scmp.lt.s32.totalorder %s15, 1
      %s189 = scalar_select %p188, %s15, 1
      %s190 = smul.addr %s189, 11
      %s191 = smul.addr %s190, 4
      %s192 = scalar_lea.vmem %s0, %s191
      %p193 = scmp.lt.s32.totalorder %s15, 1
      %s194 = scalar_select %p193, %s15, 1
      %s195 = smul.addr %s194, 8
      %s196 = smul.addr %s195, 8
      %s197 = scalar_lea.vmem %s4, %s196
      %v198 = vld [vmem:[%s192] sm:$0xf]
      %v199 = vld [vmem:[%s192 + $0x4] sm:$0xf]
      %v200 = vld [vmem:[%s192 + $0x8] sm:$0xf]
      %v201 = vld [vmem:[%s192 + $0xc] sm:$0xf]
      %v202 = vld [vmem:[%s192 + $0x10] sm:$0xf]
      %v203 = vld [vmem:[%s192 + $0x14] sm:$0xf]
      %v204 = vld [vmem:[%s192 + $0x18] sm:$0xf]
      %v205 = vld [vmem:[%s192 + $0x1c] sm:$0xf]
      %v206 = vld [vmem:[%s192 + $0x20] sm:$0xf]
      %v207 = vld [vmem:[%s192 + $0x24] sm:$0xf]
      %v208 = vld [vmem:[%s192 + $0x28] sm:$0x1]
      %v209 = vunpack.c.l.bf16 %v198
      %v210 = vunpack.c.l.bf16 %v199
      %v211 = vunpack.c.l.bf16 %v200
      %v212 = vunpack.c.l.bf16 %v201
      %v213 = vunpack.c.l.bf16 %v202
      %v214 = vunpack.c.l.bf16 %v203
      %v215 = vunpack.c.l.bf16 %v204
      %v216 = vunpack.c.l.bf16 %v205
      %v217 = vunpack.c.l.bf16 %v206
      %v218 = vunpack.c.l.bf16 %v207
      %v219 = vunpack.c.l.bf16 %v208
      %v220 = vlaneseq
      %v221 = vshrl.u32 %v220, 7
      %v222 = vadd.s32 %v221, 8
      %v223 = vadd.s32 %v221, 16
      %v224 = vadd.s32 %v221, 24
      %v225 = vadd.s32 %v221, 32
      %v226 = vadd.s32 %v221, 40
      %v227 = vadd.s32 %v221, 48
      %v228 = vadd.s32 %v221, 56
      %vm229 = vcmp.lt.s32.totalorder %v221, 0
      %v230 = vsub.s32 0, %v221
      %v231 = vsel %vm229, %v230, %v221
      %v232 = vshrl.u32 %v231, 3
      %v233 = vand.u32 %v231, 7
      %v234 = vsub.s32 0, %v233
      %v235 = vsel %vm229, %v234, %v233
      %vm236 = vcmp.lt.s32.totalorder %v222, 0
      %v237 = vsub.s32 0, %v222
      %v238 = vsel %vm236, %v237, %v222
      %v239 = vshrl.u32 %v238, 3
      %v240 = vand.u32 %v238, 7
      %v241 = vsub.s32 0, %v240
      %v242 = vsel %vm236, %v241, %v240
      %vm243 = vcmp.lt.s32.totalorder %v223, 0
      %v244 = vsub.s32 0, %v223
      %v245 = vsel %vm243, %v244, %v223
      %v246 = vshrl.u32 %v245, 3
      %v247 = vand.u32 %v245, 7
      %v248 = vsub.s32 0, %v247
      %v249 = vsel %vm243, %v248, %v247
      %vm250 = vcmp.lt.s32.totalorder %v224, 0
      %v251 = vsub.s32 0, %v224
      %v252 = vsel %vm250, %v251, %v224
      %v253 = vshrl.u32 %v252, 3
      %v254 = vand.u32 %v252, 7
      %v255 = vsub.s32 0, %v254
      %v256 = vsel %vm250, %v255, %v254
      %vm257 = vcmp.lt.s32.totalorder %v225, 0
      %v258 = vsub.s32 0, %v225
      %v259 = vsel %vm257, %v258, %v225
      %v260 = vshrl.u32 %v259, 3
      %v261 = vand.u32 %v259, 7
      %v262 = vsub.s32 0, %v261
      %v263 = vsel %vm257, %v262, %v261
      %vm264 = vcmp.lt.s32.totalorder %v226, 0
      %v265 = vsub.s32 0, %v226
      %v266 = vsel %vm264, %v265, %v226
      %v267 = vshrl.u32 %v266, 3
      %v268 = vand.u32 %v266, 7
      %v269 = vsub.s32 0, %v268
      %v270 = vsel %vm264, %v269, %v268
      %vm271 = vcmp.lt.s32.totalorder %v227, 0
      %v272 = vsub.s32 0, %v227
      %v273 = vsel %vm271, %v272, %v227
      %v274 = vshrl.u32 %v273, 3
      %v275 = vand.u32 %v273, 7
      %v276 = vsub.s32 0, %v275
      %v277 = vsel %vm271, %v276, %v275
      %vm278 = vcmp.lt.s32.totalorder %v228, 0
      %v279 = vsub.s32 0, %v228
      %v280 = vsel %vm278, %v279, %v228
      %v281 = vshrl.u32 %v280, 3
      %v282 = vand.u32 %v280, 7
      %v283 = vsub.s32 0, %v282
      %v284 = vsel %vm278, %v283, %v282
      %vm285 = vcmp.ne.s32.totalorder %v235, 0
      %vm286 = vcmp.ne.s32.totalorder %v242, 0
      %vm287 = vcmp.ne.s32.totalorder %v249, 0
      %vm288 = vcmp.ne.s32.totalorder %v256, 0
      %vm289 = vcmp.ne.s32.totalorder %v263, 0
      %vm290 = vcmp.ne.s32.totalorder %v270, 0
      %vm291 = vcmp.ne.s32.totalorder %v277, 0
      %vm292 = vcmp.ne.s32.totalorder %v284, 0
      %vm293 = vcmp.lt.s32.totalorder %v235, 0
      %vm294 = vcmp.lt.s32.totalorder %v242, 0
      %vm295 = vcmp.lt.s32.totalorder %v249, 0
      %vm296 = vcmp.lt.s32.totalorder %v256, 0
      %vm297 = vcmp.lt.s32.totalorder %v263, 0
      %vm298 = vcmp.lt.s32.totalorder %v270, 0
      %vm299 = vcmp.lt.s32.totalorder %v277, 0
      %vm300 = vcmp.lt.s32.totalorder %v284, 0
      %vm301 = vmand %vm293, %vm285
      %vm302 = vmand %vm294, %vm286
      %vm303 = vmand %vm295, %vm287
      %vm304 = vmand %vm296, %vm288
      %vm305 = vmand %vm297, %vm289
      %vm306 = vmand %vm298, %vm290
      %vm307 = vmand %vm299, %vm291
      %vm308 = vmand %vm300, %vm292
      %v309 = vadd.s32 %v235, 8
      %v310 = vadd.s32 %v242, 8
      %v311 = vadd.s32 %v249, 8
      %v312 = vadd.s32 %v256, 8
      %v313 = vadd.s32 %v263, 8
      %v314 = vadd.s32 %v270, 8
      %v315 = vadd.s32 %v277, 8
      %v316 = vadd.s32 %v284, 8
      %v317 = vsel %vm301, %v309, %v235
      %v318 = vsel %vm302, %v310, %v242
      %v319 = vsel %vm303, %v311, %v249
      %v320 = vsel %vm304, %v312, %v256
      %v321 = vsel %vm305, %v313, %v263
      %v322 = vsel %vm306, %v314, %v270
      %v323 = vsel %vm307, %v315, %v277
      %v324 = vsel %vm308, %v316, %v284
      %vm325 = vcmp.ge.s32.totalorder %v317, 1
      %vm326 = vcmp.ge.s32.totalorder %v318, 1
      %vm327 = vcmp.ge.s32.totalorder %v319, 1
      %vm328 = vcmp.ge.s32.totalorder %v320, 1
      %vm329 = vcmp.ge.s32.totalorder %v321, 1
      %vm330 = vcmp.ge.s32.totalorder %v322, 1
      %vm331 = vcmp.ge.s32.totalorder %v323, 1
      %vm332 = vcmp.ge.s32.totalorder %v324, 1
      %v333 = vsel %vm325, 1, 0
      %v334 = vsel %vm326, 1, 0
      %v335 = vsel %vm327, 1, 0
      %v336 = vsel %vm328, 1, 0
      %v337 = vsel %vm329, 1, 0
      %v338 = vsel %vm330, 1, 0
      %v339 = vsel %vm331, 1, 0
      %v340 = vsel %vm332, 1, 0
      %vm341 = vcmp.eq.s32.totalorder %v333, 1
      %vm342 = vcmp.eq.s32.totalorder %v334, 1
      %vm343 = vcmp.eq.s32.totalorder %v335, 1
      %vm344 = vcmp.eq.s32.totalorder %v336, 1
      %vm345 = vcmp.eq.s32.totalorder %v337, 1
      %vm346 = vcmp.eq.s32.totalorder %v338, 1
      %vm347 = vcmp.eq.s32.totalorder %v339, 1
      %vm348 = vcmp.eq.s32.totalorder %v340, 1
      %v349 = vsel %vm341, %v209, 0.0
      %v350 = vsel %vm342, %v210, 0.0
      %v351 = vsel %vm343, %v211, 0.0
      %v352 = vsel %vm344, %v212, 0.0
      %v353 = vsel %vm345, %v213, 0.0
      %v354 = vsel %vm346, %v214, 0.0
      %v355 = vsel %vm347, %v215, 0.0
      %v356 = vsel %vm348, %v216, 0.0
      %v357 = vpack.c.bf16 %v350, %v349
      %v358 = vpack.c.bf16 %v352, %v351
      %v359 = vpack.c.bf16 %v354, %v353
      %v360 = vpack.c.bf16 %v356, %v355
      %v361 = vld [vmem:[%s1] sm:$0xf]
      %v362 = vld [vmem:[%s1 + $0x4] sm:$0xf]
      %v363 = vld [vmem:[%s1 + $0x8] sm:$0xf]
      %v364 = vld [vmem:[%s1 + $0xc] sm:$0xf]
      %v365 = vld [vmem:[%s1 + $0x10] sm:$0xf]
      %v366 = vld [vmem:[%s1 + $0x14] sm:$0xf]
      %v367 = vld [vmem:[%s1 + $0x18] sm:$0xf]
      %v368 = vld [vmem:[%s1 + $0x1c] sm:$0xf]
      %v369 = vld [vmem:[%s1 + $0x20] sm:$0xf]
      %v370 = vld [vmem:[%s1 + $0x24] sm:$0xf]
      %v371 = vld [vmem:[%s1 + $0x28] sm:$0xf]
      %v372 = vld [vmem:[%s1 + $0x2c] sm:$0xf]
      %v373 = vld [vmem:[%s1 + $0x30] sm:$0xf]
      %v374 = vld [vmem:[%s1 + $0x34] sm:$0xf]
      %v375 = vld [vmem:[%s1 + $0x38] sm:$0xf]
      %v376 = vld [vmem:[%s1 + $0x3c] sm:$0xf]
      %v377 = vpack.c.bf16 %v210, %v209
      %v378 = vpack.c.bf16 %v212, %v211
      %v379 = vpack.c.bf16 %v214, %v213
      %v380 = vpack.c.bf16 %v216, %v215
      %v381 = vpack.c.bf16 %v217, %v217
      %s382 = scalar_lea.vmem %s1, 64
      %v383 = vld [vmem:[%s382] sm:$0xf]
      %v384 = vld [vmem:[%s382 + $0x4] sm:$0xf]
      %v385 = vld [vmem:[%s382 + $0x8] sm:$0xf]
      %v386 = vld [vmem:[%s382 + $0xc] sm:$0xf]
      %v387 = vld [vmem:[%s382 + $0x10] sm:$0xf]
      %v388 = vld [vmem:[%s382 + $0x14] sm:$0xf]
      %v389 = vld [vmem:[%s382 + $0x18] sm:$0xf]
      %v390 = vld [vmem:[%s382 + $0x1c] sm:$0xf]
      %v391 = vld [vmem:[%s382 + $0x20] sm:$0xf]
      %v392 = vld [vmem:[%s382 + $0x24] sm:$0xf]
      %v393 = vld [vmem:[%s382 + $0x28] sm:$0xf]
      %v394 = vld [vmem:[%s382 + $0x2c] sm:$0xf]
      %v395 = vld [vmem:[%s382 + $0x30] sm:$0xf]
      %v396 = vld [vmem:[%s382 + $0x34] sm:$0xf]
      %v397 = vld [vmem:[%s382 + $0x38] sm:$0xf]
      %v398 = vld [vmem:[%s382 + $0x3c] sm:$0xf]
      %vm399 = vsmask.f32 7424
      %v401 = vshrl.u32 %v377, 16
      %v403 = vshll.u32 %v377, 16
      %v405 = vrot.slane %v403, 1
      %v406 = vor.u32 %v401, %v405
      %v408 = vshll.u32 %v378, 16
      %v410 = vrot.slane %v408, 1
      %v411 = vsel %vm399, %v406, %v410
      %v412 = vshrl.u32 %v378, 16
      %v414 = vor.u32 %v412, %v410
      %v416 = vshll.u32 %v379, 16
      %v418 = vrot.slane %v416, 1
      %v419 = vsel %vm399, %v414, %v418
      %v420 = vshrl.u32 %v379, 16
      %v422 = vor.u32 %v420, %v418
      %v424 = vshll.u32 %v380, 16
      %v426 = vrot.slane %v424, 1
      %v427 = vsel %vm399, %v422, %v426
      %v428 = vshrl.u32 %v380, 16
      %v430 = vor.u32 %v428, %v426
      %v432 = vshll.u32 %v381, 16
      %v434 = vrot.slane %v432, 1
      %v435 = vsel %vm399, %v430, %v434
      %v456 = vunpack.c.l.b16 %v383
      %v457 = vunpack.c.l.b16 %v384
      %v458 = vunpack.c.l.b16 %v385
      %v459 = vunpack.c.l.b16 %v386
      %v460 = vunpack.c.l.b16 %v387
      %v461 = vunpack.c.l.b16 %v388
      %v462 = vunpack.c.l.b16 %v389
      %v463 = vunpack.c.l.b16 %v390
      %v464 = vunpack.c.l.b16 %v391
      %v465 = vunpack.c.l.b16 %v392
      %v466 = vunpack.c.l.b16 %v393
      %v467 = vunpack.c.l.b16 %v394
      %v468 = vunpack.c.l.b16 %v395
      %v469 = vunpack.c.l.b16 %v396
      %v470 = vunpack.c.l.b16 %v397
      %v471 = vunpack.c.l.b16 %v398
      %v472 = vpack.c.b16 %v457, %v456
      %v473 = vpack.c.b16 %v459, %v458
      %v474 = vpack.c.b16 %v461, %v460
      %v475 = vpack.c.b16 %v463, %v462
      %v476 = vpack.c.b16 %v465, %v464
      %v477 = vpack.c.b16 %v467, %v466
      %v478 = vpack.c.b16 %v469, %v468
      %v479 = vpack.c.b16 %v471, %v470
      %488 = vmatpush.bf16.msra.mxu0 %v479
      %489 = vmatpush.bf16.msra.mxu0 %v478
      %490 = vmatpush.bf16.msra.mxu0 %v477
      %491 = vmatpush.bf16.msra.mxu0 %v476
      %492 = vmatpush.bf16.msra.mxu0 %v475
      %493 = vmatpush.bf16.msra.mxu0 %v474
      %494 = vmatpush.bf16.msra.mxu0 %v473
      %495 = vmatpush.bf16.msra.mxu0 %v472
      %496 = vmatmul.bf16.gmra.mxu0 %v411
      %v497 = vpop.f32.mrf.mxu0
      %v498 = vadd.f32 0.0, %v497
      %v499 = vpop.f32.mrf.mxu0
      %v500 = vadd.f32 0.0, %v499
      %501 = vmatmul.bf16.gmra.mxu0 %v419
      %v502 = vpop.f32.mrf.mxu0
      %v503 = vadd.f32 0.0, %v502
      %v504 = vpop.f32.mrf.mxu0
      %v505 = vadd.f32 0.0, %v504
      %506 = vmatmul.bf16.gmra.mxu0 %v427
      %v507 = vpop.f32.mrf.mxu0
      %v508 = vadd.f32 0.0, %v507
      %v509 = vpop.f32.mrf.mxu0
      %v510 = vadd.f32 0.0, %v509
      %511 = vmatmul.bf16.gmra.mxu0 %v435
      %v512 = vpop.f32.mrf.mxu0
      %v513 = vadd.f32 0.0, %v512
      %v514 = vpop.f32.mrf.mxu0
      %v515 = vadd.f32 0.0, %v514
      %516 = vdwg.mxu0
      %v533 = vunpack.c.l.b16 %v361
      %v534 = vunpack.c.l.b16 %v362
      %v535 = vunpack.c.l.b16 %v363
      %v536 = vunpack.c.l.b16 %v364
      %v537 = vunpack.c.l.b16 %v365
      %v538 = vunpack.c.l.b16 %v366
      %v539 = vunpack.c.l.b16 %v367
      %v540 = vunpack.c.l.b16 %v368
      %v541 = vunpack.c.l.b16 %v369
      %v542 = vunpack.c.l.b16 %v370
      %v543 = vunpack.c.l.b16 %v371
      %v544 = vunpack.c.l.b16 %v372
      %v545 = vunpack.c.l.b16 %v373
      %v546 = vunpack.c.l.b16 %v374
      %v547 = vunpack.c.l.b16 %v375
      %v548 = vunpack.c.l.b16 %v376
      %v549 = vpack.c.b16 %v534, %v533
      %v550 = vpack.c.b16 %v536, %v535
      %v551 = vpack.c.b16 %v538, %v537
      %v552 = vpack.c.b16 %v540, %v539
      %v553 = vpack.c.b16 %v542, %v541
      %v554 = vpack.c.b16 %v544, %v543
      %v555 = vpack.c.b16 %v546, %v545
      %v556 = vpack.c.b16 %v548, %v547
      %565 = vmatpush.bf16.msra.mxu0 %v556
      %566 = vmatpush.bf16.msra.mxu0 %v555
      %567 = vmatpush.bf16.msra.mxu0 %v554
      %568 = vmatpush.bf16.msra.mxu0 %v553
      %569 = vmatpush.bf16.msra.mxu0 %v552
      %570 = vmatpush.bf16.msra.mxu0 %v551
      %571 = vmatpush.bf16.msra.mxu0 %v550
      %572 = vmatpush.bf16.msra.mxu0 %v549
      %573 = vmatmul.bf16.gmra.mxu0 %v357
      %v574 = vpop.f32.mrf.mxu0
      %v575 = vadd.f32 %v498, %v574
      %v576 = vpop.f32.mrf.mxu0
      %v577 = vadd.f32 %v500, %v576
      %578 = vmatmul.bf16.gmra.mxu0 %v358
      %v579 = vpop.f32.mrf.mxu0
      %v580 = vadd.f32 %v503, %v579
      %v581 = vpop.f32.mrf.mxu0
      %v582 = vadd.f32 %v505, %v581
      %583 = vmatmul.bf16.gmra.mxu0 %v359
      %v584 = vpop.f32.mrf.mxu0
      %v585 = vadd.f32 %v508, %v584
      %v586 = vpop.f32.mrf.mxu0
      %v587 = vadd.f32 %v510, %v586
      %588 = vmatmul.bf16.gmra.mxu0 %v360
      %v589 = vpop.f32.mrf.mxu0
      %v590 = vadd.f32 %v513, %v589
      %v591 = vpop.f32.mrf.mxu0
      %v592 = vadd.f32 %v515, %v591
      %593 = vdwg.mxu0
      %vm594 = vcmp.le.s32.totalorder %v317, 6
      %vm595 = vcmp.le.s32.totalorder %v318, 6
      %vm596 = vcmp.le.s32.totalorder %v319, 6
      %vm597 = vcmp.le.s32.totalorder %v320, 6
      %vm598 = vcmp.le.s32.totalorder %v321, 6
      %vm599 = vcmp.le.s32.totalorder %v322, 6
      %vm600 = vcmp.le.s32.totalorder %v323, 6
      %vm601 = vcmp.le.s32.totalorder %v324, 6
      %v602 = vsel %vm594, 1, 0
      %v603 = vsel %vm595, 1, 0
      %v604 = vsel %vm596, 1, 0
      %v605 = vsel %vm597, 1, 0
      %v606 = vsel %vm598, 1, 0
      %v607 = vsel %vm599, 1, 0
      %v608 = vsel %vm600, 1, 0
      %v609 = vsel %vm601, 1, 0
      %vm610 = vcmp.eq.s32.totalorder %v602, 1
      %vm611 = vcmp.eq.s32.totalorder %v603, 1
      %vm612 = vcmp.eq.s32.totalorder %v604, 1
      %vm613 = vcmp.eq.s32.totalorder %v605, 1
      %vm614 = vcmp.eq.s32.totalorder %v606, 1
      %vm615 = vcmp.eq.s32.totalorder %v607, 1
      %vm616 = vcmp.eq.s32.totalorder %v608, 1
      %vm617 = vcmp.eq.s32.totalorder %v609, 1
      %vm627 = vcmask 1045504
      %v628 = vrot.slane %v209, 2
      %v629 = vrot.slane %v210, 2
      %v630 = vsel %vm627, %v628, %v629
      %v631 = vrot.slane %v211, 2
      %v632 = vsel %vm627, %v629, %v631
      %v633 = vrot.slane %v212, 2
      %v634 = vsel %vm627, %v631, %v633
      %v635 = vrot.slane %v213, 2
      %v636 = vsel %vm627, %v633, %v635
      %v637 = vrot.slane %v214, 2
      %v638 = vsel %vm627, %v635, %v637
      %v639 = vrot.slane %v215, 2
      %v640 = vsel %vm627, %v637, %v639
      %v641 = vrot.slane %v216, 2
      %v642 = vsel %vm627, %v639, %v641
      %v643 = vrot.slane %v217, 2
      %v644 = vsel %vm627, %v641, %v643
      %v653 = vsel %vm610, %v630, 0.0
      %v654 = vsel %vm611, %v632, 0.0
      %v655 = vsel %vm612, %v634, 0.0
      %v656 = vsel %vm613, %v636, 0.0
      %v657 = vsel %vm614, %v638, 0.0
      %v658 = vsel %vm615, %v640, 0.0
      %v659 = vsel %vm616, %v642, 0.0
      %v660 = vsel %vm617, %v644, 0.0
      %v661 = vpack.c.bf16 %v654, %v653
      %v662 = vpack.c.bf16 %v656, %v655
      %v663 = vpack.c.bf16 %v658, %v657
      %v664 = vpack.c.bf16 %v660, %v659
      %s665 = scalar_lea.vmem %s1, 128
      %v666 = vld [vmem:[%s665] sm:$0xf]
      %v667 = vld [vmem:[%s665 + $0x4] sm:$0xf]
      %v668 = vld [vmem:[%s665 + $0x8] sm:$0xf]
      %v669 = vld [vmem:[%s665 + $0xc] sm:$0xf]
      %v670 = vld [vmem:[%s665 + $0x10] sm:$0xf]
      %v671 = vld [vmem:[%s665 + $0x14] sm:$0xf]
      %v672 = vld [vmem:[%s665 + $0x18] sm:$0xf]
      %v673 = vld [vmem:[%s665 + $0x1c] sm:$0xf]
      %v674 = vld [vmem:[%s665 + $0x20] sm:$0xf]
      %v675 = vld [vmem:[%s665 + $0x24] sm:$0xf]
      %v676 = vld [vmem:[%s665 + $0x28] sm:$0xf]
      %v677 = vld [vmem:[%s665 + $0x2c] sm:$0xf]
      %v678 = vld [vmem:[%s665 + $0x30] sm:$0xf]
      %v679 = vld [vmem:[%s665 + $0x34] sm:$0xf]
      %v680 = vld [vmem:[%s665 + $0x38] sm:$0xf]
      %v681 = vld [vmem:[%s665 + $0x3c] sm:$0xf]
      %v698 = vunpack.c.l.b16 %v666
      %v699 = vunpack.c.l.b16 %v667
      %v700 = vunpack.c.l.b16 %v668
      %v701 = vunpack.c.l.b16 %v669
      %v702 = vunpack.c.l.b16 %v670
      %v703 = vunpack.c.l.b16 %v671
      %v704 = vunpack.c.l.b16 %v672
      %v705 = vunpack.c.l.b16 %v673
      %v706 = vunpack.c.l.b16 %v674
      %v707 = vunpack.c.l.b16 %v675
      %v708 = vunpack.c.l.b16 %v676
      %v709 = vunpack.c.l.b16 %v677
      %v710 = vunpack.c.l.b16 %v678
      %v711 = vunpack.c.l.b16 %v679
      %v712 = vunpack.c.l.b16 %v680
      %v713 = vunpack.c.l.b16 %v681
      %v714 = vpack.c.b16 %v699, %v698
      %v715 = vpack.c.b16 %v701, %v700
      %v716 = vpack.c.b16 %v703, %v702
      %v717 = vpack.c.b16 %v705, %v704
      %v718 = vpack.c.b16 %v707, %v706
      %v719 = vpack.c.b16 %v709, %v708
      %v720 = vpack.c.b16 %v711, %v710
      %v721 = vpack.c.b16 %v713, %v712
      %730 = vmatpush.bf16.msra.mxu0 %v721
      %731 = vmatpush.bf16.msra.mxu0 %v720
      %732 = vmatpush.bf16.msra.mxu0 %v719
      %733 = vmatpush.bf16.msra.mxu0 %v718
      %734 = vmatpush.bf16.msra.mxu0 %v717
      %735 = vmatpush.bf16.msra.mxu0 %v716
      %736 = vmatpush.bf16.msra.mxu0 %v715
      %737 = vmatpush.bf16.msra.mxu0 %v714
      %738 = vmatmul.bf16.gmra.mxu0 %v661
      %v739 = vpop.f32.mrf.mxu0
      %v740 = vadd.f32 0.0, %v739
      %v741 = vpop.f32.mrf.mxu0
      %v742 = vadd.f32 0.0, %v741
      %743 = vmatmul.bf16.gmra.mxu0 %v662
      %v744 = vpop.f32.mrf.mxu0
      %v745 = vadd.f32 0.0, %v744
      %v746 = vpop.f32.mrf.mxu0
      %v747 = vadd.f32 0.0, %v746
      %748 = vmatmul.bf16.gmra.mxu0 %v663
      %v749 = vpop.f32.mrf.mxu0
      %v750 = vadd.f32 0.0, %v749
      %v751 = vpop.f32.mrf.mxu0
      %v752 = vadd.f32 0.0, %v751
      %753 = vmatmul.bf16.gmra.mxu0 %v664
      %v754 = vpop.f32.mrf.mxu0
      %v755 = vadd.f32 0.0, %v754
      %v756 = vpop.f32.mrf.mxu0
      %v757 = vadd.f32 0.0, %v756
      %758 = vdwg.mxu0
      %v759 = vadd.f32 %v575, %v740
      %v760 = vadd.f32 %v577, %v742
      %v761 = vadd.f32 %v580, %v745
      %v762 = vadd.f32 %v582, %v747
      %v763 = vadd.f32 %v585, %v750
      %v764 = vadd.f32 %v587, %v752
      %v765 = vadd.f32 %v590, %v755
      %v766 = vadd.f32 %v592, %v757
      %v767 = vsel %vm341, %v210, 0.0
      %v768 = vsel %vm342, %v211, 0.0
      %v769 = vsel %vm343, %v212, 0.0
      %v770 = vsel %vm344, %v213, 0.0
      %v771 = vsel %vm345, %v214, 0.0
      %v772 = vsel %vm346, %v215, 0.0
      %v773 = vsel %vm347, %v216, 0.0
      %v774 = vsel %vm348, %v217, 0.0
      %v775 = vpack.c.bf16 %v768, %v767
      %v776 = vpack.c.bf16 %v770, %v769
      %v777 = vpack.c.bf16 %v772, %v771
      %v778 = vpack.c.bf16 %v774, %v773
      %s779 = scalar_lea.vmem %s1, 192
      %v780 = vld [vmem:[%s779] sm:$0xf]
      %v781 = vld [vmem:[%s779 + $0x4] sm:$0xf]
      %v782 = vld [vmem:[%s779 + $0x8] sm:$0xf]
      %v783 = vld [vmem:[%s779 + $0xc] sm:$0xf]
      %v784 = vld [vmem:[%s779 + $0x10] sm:$0xf]
      %v785 = vld [vmem:[%s779 + $0x14] sm:$0xf]
      %v786 = vld [vmem:[%s779 + $0x18] sm:$0xf]
      %v787 = vld [vmem:[%s779 + $0x1c] sm:$0xf]
      %v788 = vld [vmem:[%s779 + $0x20] sm:$0xf]
      %v789 = vld [vmem:[%s779 + $0x24] sm:$0xf]
      %v790 = vld [vmem:[%s779 + $0x28] sm:$0xf]
      %v791 = vld [vmem:[%s779 + $0x2c] sm:$0xf]
      %v792 = vld [vmem:[%s779 + $0x30] sm:$0xf]
      %v793 = vld [vmem:[%s779 + $0x34] sm:$0xf]
      %v794 = vld [vmem:[%s779 + $0x38] sm:$0xf]
      %v795 = vld [vmem:[%s779 + $0x3c] sm:$0xf]
      %v812 = vunpack.c.l.b16 %v780
      %v813 = vunpack.c.l.b16 %v781
      %v814 = vunpack.c.l.b16 %v782
      %v815 = vunpack.c.l.b16 %v783
      %v816 = vunpack.c.l.b16 %v784
      %v817 = vunpack.c.l.b16 %v785
      %v818 = vunpack.c.l.b16 %v786
      %v819 = vunpack.c.l.b16 %v787
      %v820 = vunpack.c.l.b16 %v788
      %v821 = vunpack.c.l.b16 %v789
      %v822 = vunpack.c.l.b16 %v790
      %v823 = vunpack.c.l.b16 %v791
      %v824 = vunpack.c.l.b16 %v792
      %v825 = vunpack.c.l.b16 %v793
      %v826 = vunpack.c.l.b16 %v794
      %v827 = vunpack.c.l.b16 %v795
      %v828 = vpack.c.b16 %v813, %v812
      %v829 = vpack.c.b16 %v815, %v814
      %v830 = vpack.c.b16 %v817, %v816
      %v831 = vpack.c.b16 %v819, %v818
      %v832 = vpack.c.b16 %v821, %v820
      %v833 = vpack.c.b16 %v823, %v822
      %v834 = vpack.c.b16 %v825, %v824
      %v835 = vpack.c.b16 %v827, %v826
      %844 = vmatpush.bf16.msra.mxu0 %v835
      %845 = vmatpush.bf16.msra.mxu0 %v834
      %846 = vmatpush.bf16.msra.mxu0 %v833
      %847 = vmatpush.bf16.msra.mxu0 %v832
      %848 = vmatpush.bf16.msra.mxu0 %v831
      %849 = vmatpush.bf16.msra.mxu0 %v830
      %850 = vmatpush.bf16.msra.mxu0 %v829
      %851 = vmatpush.bf16.msra.mxu0 %v828
      %852 = vmatmul.bf16.gmra.mxu0 %v775
      %v853 = vpop.f32.mrf.mxu0
      %v854 = vadd.f32 0.0, %v853
      %v855 = vpop.f32.mrf.mxu0
      %v856 = vadd.f32 0.0, %v855
      %857 = vmatmul.bf16.gmra.mxu0 %v776
      %v858 = vpop.f32.mrf.mxu0
      %v859 = vadd.f32 0.0, %v858
      %v860 = vpop.f32.mrf.mxu0
      %v861 = vadd.f32 0.0, %v860
      %862 = vmatmul.bf16.gmra.mxu0 %v777
      %v863 = vpop.f32.mrf.mxu0
      %v864 = vadd.f32 0.0, %v863
      %v865 = vpop.f32.mrf.mxu0
      %v866 = vadd.f32 0.0, %v865
      %867 = vmatmul.bf16.gmra.mxu0 %v778
      %v868 = vpop.f32.mrf.mxu0
      %v869 = vadd.f32 0.0, %v868
      %v870 = vpop.f32.mrf.mxu0
      %v871 = vadd.f32 0.0, %v870
      %872 = vdwg.mxu0
      %v873 = vadd.f32 %v759, %v854
      %v874 = vadd.f32 %v760, %v856
      %v875 = vadd.f32 %v761, %v859
      %v876 = vadd.f32 %v762, %v861
      %v877 = vadd.f32 %v763, %v864
      %v878 = vadd.f32 %v764, %v866
      %v879 = vadd.f32 %v765, %v869
      %v880 = vadd.f32 %v766, %v871
      %v881 = vpack.c.bf16 %v211, %v210
      %v882 = vpack.c.bf16 %v213, %v212
      %v883 = vpack.c.bf16 %v215, %v214
      %v884 = vpack.c.bf16 %v217, %v216
      %v885 = vpack.c.bf16 %v218, %v218
      %s886 = scalar_lea.vmem %s1, 256
      %v887 = vld [vmem:[%s886] sm:$0xf]
      %v888 = vld [vmem:[%s886 + $0x4] sm:$0xf]
      %v889 = vld [vmem:[%s886 + $0x8] sm:$0xf]
      %v890 = vld [vmem:[%s886 + $0xc] sm:$0xf]
      %v891 = vld [vmem:[%s886 + $0x10] sm:$0xf]
      %v892 = vld [vmem:[%s886 + $0x14] sm:$0xf]
      %v893 = vld [vmem:[%s886 + $0x18] sm:$0xf]
      %v894 = vld [vmem:[%s886 + $0x1c] sm:$0xf]
      %v895 = vld [vmem:[%s886 + $0x20] sm:$0xf]
      %v896 = vld [vmem:[%s886 + $0x24] sm:$0xf]
      %v897 = vld [vmem:[%s886 + $0x28] sm:$0xf]
      %v898 = vld [vmem:[%s886 + $0x2c] sm:$0xf]
      %v899 = vld [vmem:[%s886 + $0x30] sm:$0xf]
      %v900 = vld [vmem:[%s886 + $0x34] sm:$0xf]
      %v901 = vld [vmem:[%s886 + $0x38] sm:$0xf]
      %v902 = vld [vmem:[%s886 + $0x3c] sm:$0xf]
      %v904 = vshrl.u32 %v881, 16
      %v906 = vshll.u32 %v881, 16
      %v908 = vrot.slane %v906, 1
      %v909 = vor.u32 %v904, %v908
      %v911 = vshll.u32 %v882, 16
      %v913 = vrot.slane %v911, 1
      %v914 = vsel %vm399, %v909, %v913
      %v915 = vshrl.u32 %v882, 16
      %v917 = vor.u32 %v915, %v913
      %v919 = vshll.u32 %v883, 16
      %v921 = vrot.slane %v919, 1
      %v922 = vsel %vm399, %v917, %v921
      %v923 = vshrl.u32 %v883, 16
      %v925 = vor.u32 %v923, %v921
      %v927 = vshll.u32 %v884, 16
      %v929 = vrot.slane %v927, 1
      %v930 = vsel %vm399, %v925, %v929
      %v931 = vshrl.u32 %v884, 16
      %v933 = vor.u32 %v931, %v929
      %v935 = vshll.u32 %v885, 16
      %v937 = vrot.slane %v935, 1
      %v938 = vsel %vm399, %v933, %v937
      %v959 = vunpack.c.l.b16 %v887
      %v960 = vunpack.c.l.b16 %v888
      %v961 = vunpack.c.l.b16 %v889
      %v962 = vunpack.c.l.b16 %v890
      %v963 = vunpack.c.l.b16 %v891
      %v964 = vunpack.c.l.b16 %v892
      %v965 = vunpack.c.l.b16 %v893
      %v966 = vunpack.c.l.b16 %v894
      %v967 = vunpack.c.l.b16 %v895
      %v968 = vunpack.c.l.b16 %v896
      %v969 = vunpack.c.l.b16 %v897
      %v970 = vunpack.c.l.b16 %v898
      %v971 = vunpack.c.l.b16 %v899
      %v972 = vunpack.c.l.b16 %v900
      %v973 = vunpack.c.l.b16 %v901
      %v974 = vunpack.c.l.b16 %v902
      %v975 = vpack.c.b16 %v960, %v959
      %v976 = vpack.c.b16 %v962, %v961
      %v977 = vpack.c.b16 %v964, %v963
      %v978 = vpack.c.b16 %v966, %v965
      %v979 = vpack.c.b16 %v968, %v967
      %v980 = vpack.c.b16 %v970, %v969
      %v981 = vpack.c.b16 %v972, %v971
      %v982 = vpack.c.b16 %v974, %v973
      %991 = vmatpush.bf16.msra.mxu0 %v982
      %992 = vmatpush.bf16.msra.mxu0 %v981
      %993 = vmatpush.bf16.msra.mxu0 %v980
      %994 = vmatpush.bf16.msra.mxu0 %v979
      %995 = vmatpush.bf16.msra.mxu0 %v978
      %996 = vmatpush.bf16.msra.mxu0 %v977
      %997 = vmatpush.bf16.msra.mxu0 %v976
      %998 = vmatpush.bf16.msra.mxu0 %v975
      %999 = vmatmul.bf16.gmra.mxu0 %v914
      %v1000 = vpop.f32.mrf.mxu0
      %v1001 = vadd.f32 0.0, %v1000
      %v1002 = vpop.f32.mrf.mxu0
      %v1003 = vadd.f32 0.0, %v1002
      %1004 = vmatmul.bf16.gmra.mxu0 %v922
      %v1005 = vpop.f32.mrf.mxu0
      %v1006 = vadd.f32 0.0, %v1005
      %v1007 = vpop.f32.mrf.mxu0
      %v1008 = vadd.f32 0.0, %v1007
      %1009 = vmatmul.bf16.gmra.mxu0 %v930
      %v1010 = vpop.f32.mrf.mxu0
      %v1011 = vadd.f32 0.0, %v1010
      %v1012 = vpop.f32.mrf.mxu0
      %v1013 = vadd.f32 0.0, %v1012
      %1014 = vmatmul.bf16.gmra.mxu0 %v938
      %v1015 = vpop.f32.mrf.mxu0
      %v1016 = vadd.f32 0.0, %v1015
      %v1017 = vpop.f32.mrf.mxu0
      %v1018 = vadd.f32 0.0, %v1017
      %1019 = vdwg.mxu0
      %v1020 = vadd.f32 %v873, %v1001
      %v1021 = vadd.f32 %v874, %v1003
      %v1022 = vadd.f32 %v875, %v1006
      %v1023 = vadd.f32 %v876, %v1008
      %v1024 = vadd.f32 %v877, %v1011
      %v1025 = vadd.f32 %v878, %v1013
      %v1026 = vadd.f32 %v879, %v1016
      %v1027 = vadd.f32 %v880, %v1018
      %v1029 = vrot.slane %v218, 2
      %v1030 = vsel %vm627, %v643, %v1029
      %v1032 = vsel %vm610, %v632, 0.0
      %v1033 = vsel %vm611, %v634, 0.0
      %v1034 = vsel %vm612, %v636, 0.0
      %v1035 = vsel %vm613, %v638, 0.0
      %v1036 = vsel %vm614, %v640, 0.0
      %v1037 = vsel %vm615, %v642, 0.0
      %v1038 = vsel %vm616, %v644, 0.0
      %v1039 = vsel %vm617, %v1030, 0.0
      %v1040 = vpack.c.bf16 %v1033, %v1032
      %v1041 = vpack.c.bf16 %v1035, %v1034
      %v1042 = vpack.c.bf16 %v1037, %v1036
      %v1043 = vpack.c.bf16 %v1039, %v1038
      %s1044 = scalar_lea.vmem %s1, 320
      %v1045 = vld [vmem:[%s1044] sm:$0xf]
      %v1046 = vld [vmem:[%s1044 + $0x4] sm:$0xf]
      %v1047 = vld [vmem:[%s1044 + $0x8] sm:$0xf]
      %v1048 = vld [vmem:[%s1044 + $0xc] sm:$0xf]
      %v1049 = vld [vmem:[%s1044 + $0x10] sm:$0xf]
      %v1050 = vld [vmem:[%s1044 + $0x14] sm:$0xf]
      %v1051 = vld [vmem:[%s1044 + $0x18] sm:$0xf]
      %v1052 = vld [vmem:[%s1044 + $0x1c] sm:$0xf]
      %v1053 = vld [vmem:[%s1044 + $0x20] sm:$0xf]
      %v1054 = vld [vmem:[%s1044 + $0x24] sm:$0xf]
      %v1055 = vld [vmem:[%s1044 + $0x28] sm:$0xf]
      %v1056 = vld [vmem:[%s1044 + $0x2c] sm:$0xf]
      %v1057 = vld [vmem:[%s1044 + $0x30] sm:$0xf]
      %v1058 = vld [vmem:[%s1044 + $0x34] sm:$0xf]
      %v1059 = vld [vmem:[%s1044 + $0x38] sm:$0xf]
      %v1060 = vld [vmem:[%s1044 + $0x3c] sm:$0xf]
      %v1077 = vunpack.c.l.b16 %v1045
      %v1078 = vunpack.c.l.b16 %v1046
      %v1079 = vunpack.c.l.b16 %v1047
      %v1080 = vunpack.c.l.b16 %v1048
      %v1081 = vunpack.c.l.b16 %v1049
      %v1082 = vunpack.c.l.b16 %v1050
      %v1083 = vunpack.c.l.b16 %v1051
      %v1084 = vunpack.c.l.b16 %v1052
      %v1085 = vunpack.c.l.b16 %v1053
      %v1086 = vunpack.c.l.b16 %v1054
      %v1087 = vunpack.c.l.b16 %v1055
      %v1088 = vunpack.c.l.b16 %v1056
      %v1089 = vunpack.c.l.b16 %v1057
      %v1090 = vunpack.c.l.b16 %v1058
      %v1091 = vunpack.c.l.b16 %v1059
      %v1092 = vunpack.c.l.b16 %v1060
      %v1093 = vpack.c.b16 %v1078, %v1077
      %v1094 = vpack.c.b16 %v1080, %v1079
      %v1095 = vpack.c.b16 %v1082, %v1081
      %v1096 = vpack.c.b16 %v1084, %v1083
      %v1097 = vpack.c.b16 %v1086, %v1085
      %v1098 = vpack.c.b16 %v1088, %v1087
      %v1099 = vpack.c.b16 %v1090, %v1089
      %v1100 = vpack.c.b16 %v1092, %v1091
      %1109 = vmatpush.bf16.msra.mxu0 %v1100
      %1110 = vmatpush.bf16.msra.mxu0 %v1099
      %1111 = vmatpush.bf16.msra.mxu0 %v1098
      %1112 = vmatpush.bf16.msra.mxu0 %v1097
      %1113 = vmatpush.bf16.msra.mxu0 %v1096
      %1114 = vmatpush.bf16.msra.mxu0 %v1095
      %1115 = vmatpush.bf16.msra.mxu0 %v1094
      %1116 = vmatpush.bf16.msra.mxu0 %v1093
      %1117 = vmatmul.bf16.gmra.mxu0 %v1040
      %v1118 = vpop.f32.mrf.mxu0
      %v1119 = vadd.f32 0.0, %v1118
      %v1120 = vpop.f32.mrf.mxu0
      %v1121 = vadd.f32 0.0, %v1120
      %1122 = vmatmul.bf16.gmra.mxu0 %v1041
      %v1123 = vpop.f32.mrf.mxu0
      %v1124 = vadd.f32 0.0, %v1123
      %v1125 = vpop.f32.mrf.mxu0
      %v1126 = vadd.f32 0.0, %v1125
      %1127 = vmatmul.bf16.gmra.mxu0 %v1042
      %v1128 = vpop.f32.mrf.mxu0
      %v1129 = vadd.f32 0.0, %v1128
      %v1130 = vpop.f32.mrf.mxu0
      %v1131 = vadd.f32 0.0, %v1130
      %1132 = vmatmul.bf16.gmra.mxu0 %v1043
      %v1133 = vpop.f32.mrf.mxu0
      %v1134 = vadd.f32 0.0, %v1133
      %v1135 = vpop.f32.mrf.mxu0
      %v1136 = vadd.f32 0.0, %v1135
      %1137 = vdwg.mxu0
      %v1138 = vadd.f32 %v1020, %v1119
      %v1139 = vadd.f32 %v1021, %v1121
      %v1140 = vadd.f32 %v1022, %v1124
      %v1141 = vadd.f32 %v1023, %v1126
      %v1142 = vadd.f32 %v1024, %v1129
      %v1143 = vadd.f32 %v1025, %v1131
      %v1144 = vadd.f32 %v1026, %v1134
      %v1145 = vadd.f32 %v1027, %v1136
      %v1146 = vsel %vm341, %v211, 0.0
      %v1147 = vsel %vm342, %v212, 0.0
      %v1148 = vsel %vm343, %v213, 0.0
      %v1149 = vsel %vm344, %v214, 0.0
      %v1150 = vsel %vm345, %v215, 0.0
      %v1151 = vsel %vm346, %v216, 0.0
      %v1152 = vsel %vm347, %v217, 0.0
      %v1153 = vsel %vm348, %v218, 0.0
      %v1154 = vpack.c.bf16 %v1147, %v1146
      %v1155 = vpack.c.bf16 %v1149, %v1148
      %v1156 = vpack.c.bf16 %v1151, %v1150
      %v1157 = vpack.c.bf16 %v1153, %v1152
      %s1158 = scalar_lea.vmem %s1, 384
      %v1159 = vld [vmem:[%s1158] sm:$0xf]
      %v1160 = vld [vmem:[%s1158 + $0x4] sm:$0xf]
      %v1161 = vld [vmem:[%s1158 + $0x8] sm:$0xf]
      %v1162 = vld [vmem:[%s1158 + $0xc] sm:$0xf]
      %v1163 = vld [vmem:[%s1158 + $0x10] sm:$0xf]
      %v1164 = vld [vmem:[%s1158 + $0x14] sm:$0xf]
      %v1165 = vld [vmem:[%s1158 + $0x18] sm:$0xf]
      %v1166 = vld [vmem:[%s1158 + $0x1c] sm:$0xf]
      %v1167 = vld [vmem:[%s1158 + $0x20] sm:$0xf]
      %v1168 = vld [vmem:[%s1158 + $0x24] sm:$0xf]
      %v1169 = vld [vmem:[%s1158 + $0x28] sm:$0xf]
      %v1170 = vld [vmem:[%s1158 + $0x2c] sm:$0xf]
      %v1171 = vld [vmem:[%s1158 + $0x30] sm:$0xf]
      %v1172 = vld [vmem:[%s1158 + $0x34] sm:$0xf]
      %v1173 = vld [vmem:[%s1158 + $0x38] sm:$0xf]
      %v1174 = vld [vmem:[%s1158 + $0x3c] sm:$0xf]
      %v1191 = vunpack.c.l.b16 %v1159
      %v1192 = vunpack.c.l.b16 %v1160
      %v1193 = vunpack.c.l.b16 %v1161
      %v1194 = vunpack.c.l.b16 %v1162
      %v1195 = vunpack.c.l.b16 %v1163
      %v1196 = vunpack.c.l.b16 %v1164
      %v1197 = vunpack.c.l.b16 %v1165
      %v1198 = vunpack.c.l.b16 %v1166
      %v1199 = vunpack.c.l.b16 %v1167
      %v1200 = vunpack.c.l.b16 %v1168
      %v1201 = vunpack.c.l.b16 %v1169
      %v1202 = vunpack.c.l.b16 %v1170
      %v1203 = vunpack.c.l.b16 %v1171
      %v1204 = vunpack.c.l.b16 %v1172
      %v1205 = vunpack.c.l.b16 %v1173
      %v1206 = vunpack.c.l.b16 %v1174
      %v1207 = vpack.c.b16 %v1192, %v1191
      %v1208 = vpack.c.b16 %v1194, %v1193
      %v1209 = vpack.c.b16 %v1196, %v1195
      %v1210 = vpack.c.b16 %v1198, %v1197
      %v1211 = vpack.c.b16 %v1200, %v1199
      %v1212 = vpack.c.b16 %v1202, %v1201
      %v1213 = vpack.c.b16 %v1204, %v1203
      %v1214 = vpack.c.b16 %v1206, %v1205
      %1223 = vmatpush.bf16.msra.mxu0 %v1214
      %1224 = vmatpush.bf16.msra.mxu0 %v1213
      %1225 = vmatpush.bf16.msra.mxu0 %v1212
      %1226 = vmatpush.bf16.msra.mxu0 %v1211
      %1227 = vmatpush.bf16.msra.mxu0 %v1210
      %1228 = vmatpush.bf16.msra.mxu0 %v1209
      %1229 = vmatpush.bf16.msra.mxu0 %v1208
      %1230 = vmatpush.bf16.msra.mxu0 %v1207
      %1231 = vmatmul.bf16.gmra.mxu0 %v1154
      %v1232 = vpop.f32.mrf.mxu0
      %v1233 = vadd.f32 0.0, %v1232
      %v1234 = vpop.f32.mrf.mxu0
      %v1235 = vadd.f32 0.0, %v1234
      %1236 = vmatmul.bf16.gmra.mxu0 %v1155
      %v1237 = vpop.f32.mrf.mxu0
      %v1238 = vadd.f32 0.0, %v1237
      %v1239 = vpop.f32.mrf.mxu0
      %v1240 = vadd.f32 0.0, %v1239
      %1241 = vmatmul.bf16.gmra.mxu0 %v1156
      %v1242 = vpop.f32.mrf.mxu0
      %v1243 = vadd.f32 0.0, %v1242
      %v1244 = vpop.f32.mrf.mxu0
      %v1245 = vadd.f32 0.0, %v1244
      %1246 = vmatmul.bf16.gmra.mxu0 %v1157
      %v1247 = vpop.f32.mrf.mxu0
      %v1248 = vadd.f32 0.0, %v1247
      %v1249 = vpop.f32.mrf.mxu0
      %v1250 = vadd.f32 0.0, %v1249
      %1251 = vdwg.mxu0
      %v1252 = vadd.f32 %v1138, %v1233
      %v1253 = vadd.f32 %v1139, %v1235
      %v1254 = vadd.f32 %v1140, %v1238
      %v1255 = vadd.f32 %v1141, %v1240
      %v1256 = vadd.f32 %v1142, %v1243
      %v1257 = vadd.f32 %v1143, %v1245
      %v1258 = vadd.f32 %v1144, %v1248
      %v1259 = vadd.f32 %v1145, %v1250
      %v1260 = vpack.c.bf16 %v218, %v217
      %v1261 = vpack.c.bf16 %v219, %v219
      %s1262 = scalar_lea.vmem %s1, 448
      %v1263 = vld [vmem:[%s1262] sm:$0xf]
      %v1264 = vld [vmem:[%s1262 + $0x4] sm:$0xf]
      %v1265 = vld [vmem:[%s1262 + $0x8] sm:$0xf]
      %v1266 = vld [vmem:[%s1262 + $0xc] sm:$0xf]
      %v1267 = vld [vmem:[%s1262 + $0x10] sm:$0xf]
      %v1268 = vld [vmem:[%s1262 + $0x14] sm:$0xf]
      %v1269 = vld [vmem:[%s1262 + $0x18] sm:$0xf]
      %v1270 = vld [vmem:[%s1262 + $0x1c] sm:$0xf]
      %v1271 = vld [vmem:[%s1262 + $0x20] sm:$0xf]
      %v1272 = vld [vmem:[%s1262 + $0x24] sm:$0xf]
      %v1273 = vld [vmem:[%s1262 + $0x28] sm:$0xf]
      %v1274 = vld [vmem:[%s1262 + $0x2c] sm:$0xf]
      %v1275 = vld [vmem:[%s1262 + $0x30] sm:$0xf]
      %v1276 = vld [vmem:[%s1262 + $0x34] sm:$0xf]
      %v1277 = vld [vmem:[%s1262 + $0x38] sm:$0xf]
      %v1278 = vld [vmem:[%s1262 + $0x3c] sm:$0xf]
      %v1280 = vshll.u32 %v1260, 16
      %v1282 = vrot.slane %v1280, 1
      %v1283 = vsel %vm399, %v430, %v1282
      %v1284 = vshrl.u32 %v1260, 16
      %v1286 = vor.u32 %v1284, %v1282
      %v1288 = vshll.u32 %v1261, 16
      %v1290 = vrot.slane %v1288, 1
      %v1291 = vsel %vm399, %v1286, %v1290
      %v1310 = vunpack.c.l.b16 %v1263
      %v1311 = vunpack.c.l.b16 %v1264
      %v1312 = vunpack.c.l.b16 %v1265
      %v1313 = vunpack.c.l.b16 %v1266
      %v1314 = vunpack.c.l.b16 %v1267
      %v1315 = vunpack.c.l.b16 %v1268
      %v1316 = vunpack.c.l.b16 %v1269
      %v1317 = vunpack.c.l.b16 %v1270
      %v1318 = vunpack.c.l.b16 %v1271
      %v1319 = vunpack.c.l.b16 %v1272
      %v1320 = vunpack.c.l.b16 %v1273
      %v1321 = vunpack.c.l.b16 %v1274
      %v1322 = vunpack.c.l.b16 %v1275
      %v1323 = vunpack.c.l.b16 %v1276
      %v1324 = vunpack.c.l.b16 %v1277
      %v1325 = vunpack.c.l.b16 %v1278
      %v1326 = vpack.c.b16 %v1311, %v1310
      %v1327 = vpack.c.b16 %v1313, %v1312
      %v1328 = vpack.c.b16 %v1315, %v1314
      %v1329 = vpack.c.b16 %v1317, %v1316
      %v1330 = vpack.c.b16 %v1319, %v1318
      %v1331 = vpack.c.b16 %v1321, %v1320
      %v1332 = vpack.c.b16 %v1323, %v1322
      %v1333 = vpack.c.b16 %v1325, %v1324
      %1342 = vmatpush.bf16.msra.mxu0 %v1333
      %1343 = vmatpush.bf16.msra.mxu0 %v1332
      %1344 = vmatpush.bf16.msra.mxu0 %v1331
      %1345 = vmatpush.bf16.msra.mxu0 %v1330
      %1346 = vmatpush.bf16.msra.mxu0 %v1329
      %1347 = vmatpush.bf16.msra.mxu0 %v1328
      %1348 = vmatpush.bf16.msra.mxu0 %v1327
      %1349 = vmatpush.bf16.msra.mxu0 %v1326
      %1350 = vmatmul.bf16.gmra.mxu0 %v419
      %v1351 = vpop.f32.mrf.mxu0
      %v1352 = vadd.f32 0.0, %v1351
      %v1353 = vpop.f32.mrf.mxu0
      %v1354 = vadd.f32 0.0, %v1353
      %1355 = vmatmul.bf16.gmra.mxu0 %v427
      %v1356 = vpop.f32.mrf.mxu0
      %v1357 = vadd.f32 0.0, %v1356
      %v1358 = vpop.f32.mrf.mxu0
      %v1359 = vadd.f32 0.0, %v1358
      %1360 = vmatmul.bf16.gmra.mxu0 %v1283
      %v1361 = vpop.f32.mrf.mxu0
      %v1362 = vadd.f32 0.0, %v1361
      %v1363 = vpop.f32.mrf.mxu0
      %v1364 = vadd.f32 0.0, %v1363
      %1365 = vmatmul.bf16.gmra.mxu0 %v1291
      %v1366 = vpop.f32.mrf.mxu0
      %v1367 = vadd.f32 0.0, %v1366
      %v1368 = vpop.f32.mrf.mxu0
      %v1369 = vadd.f32 0.0, %v1368
      %1370 = vdwg.mxu0
      %v1371 = vadd.f32 %v1252, %v1352
      %v1372 = vadd.f32 %v1253, %v1354
      %v1373 = vadd.f32 %v1254, %v1357
      %v1374 = vadd.f32 %v1255, %v1359
      %v1375 = vadd.f32 %v1256, %v1362
      %v1376 = vadd.f32 %v1257, %v1364
      %v1377 = vadd.f32 %v1258, %v1367
      %v1378 = vadd.f32 %v1259, %v1369
      %v1380 = vrot.slane %v219, 2
      %v1381 = vsel %vm627, %v1029, %v1380
      %v1383 = vsel %vm610, %v634, 0.0
      %v1384 = vsel %vm611, %v636, 0.0
      %v1385 = vsel %vm612, %v638, 0.0
      %v1386 = vsel %vm613, %v640, 0.0
      %v1387 = vsel %vm614, %v642, 0.0
      %v1388 = vsel %vm615, %v644, 0.0
      %v1389 = vsel %vm616, %v1030, 0.0
      %v1390 = vsel %vm617, %v1381, 0.0
      %v1391 = vpack.c.bf16 %v1384, %v1383
      %v1392 = vpack.c.bf16 %v1386, %v1385
      %v1393 = vpack.c.bf16 %v1388, %v1387
      %v1394 = vpack.c.bf16 %v1390, %v1389
      %s1395 = scalar_lea.vmem %s1, 512
      %v1396 = vld [vmem:[%s1395] sm:$0xf]
      %v1397 = vld [vmem:[%s1395 + $0x4] sm:$0xf]
      %v1398 = vld [vmem:[%s1395 + $0x8] sm:$0xf]
      %v1399 = vld [vmem:[%s1395 + $0xc] sm:$0xf]
      %v1400 = vld [vmem:[%s1395 + $0x10] sm:$0xf]
      %v1401 = vld [vmem:[%s1395 + $0x14] sm:$0xf]
      %v1402 = vld [vmem:[%s1395 + $0x18] sm:$0xf]
      %v1403 = vld [vmem:[%s1395 + $0x1c] sm:$0xf]
      %v1404 = vld [vmem:[%s1395 + $0x20] sm:$0xf]
      %v1405 = vld [vmem:[%s1395 + $0x24] sm:$0xf]
      %v1406 = vld [vmem:[%s1395 + $0x28] sm:$0xf]
      %v1407 = vld [vmem:[%s1395 + $0x2c] sm:$0xf]
      %v1408 = vld [vmem:[%s1395 + $0x30] sm:$0xf]
      %v1409 = vld [vmem:[%s1395 + $0x34] sm:$0xf]
      %v1410 = vld [vmem:[%s1395 + $0x38] sm:$0xf]
      %v1411 = vld [vmem:[%s1395 + $0x3c] sm:$0xf]
      %v1428 = vunpack.c.l.b16 %v1396
      %v1429 = vunpack.c.l.b16 %v1397
      %v1430 = vunpack.c.l.b16 %v1398
      %v1431 = vunpack.c.l.b16 %v1399
      %v1432 = vunpack.c.l.b16 %v1400
      %v1433 = vunpack.c.l.b16 %v1401
      %v1434 = vunpack.c.l.b16 %v1402
      %v1435 = vunpack.c.l.b16 %v1403
      %v1436 = vunpack.c.l.b16 %v1404
      %v1437 = vunpack.c.l.b16 %v1405
      %v1438 = vunpack.c.l.b16 %v1406
      %v1439 = vunpack.c.l.b16 %v1407
      %v1440 = vunpack.c.l.b16 %v1408
      %v1441 = vunpack.c.l.b16 %v1409
      %v1442 = vunpack.c.l.b16 %v1410
      %v1443 = vunpack.c.l.b16 %v1411
      %v1444 = vpack.c.b16 %v1429, %v1428
      %v1445 = vpack.c.b16 %v1431, %v1430
      %v1446 = vpack.c.b16 %v1433, %v1432
      %v1447 = vpack.c.b16 %v1435, %v1434
      %v1448 = vpack.c.b16 %v1437, %v1436
      %v1449 = vpack.c.b16 %v1439, %v1438
      %v1450 = vpack.c.b16 %v1441, %v1440
      %v1451 = vpack.c.b16 %v1443, %v1442
      %1460 = vmatpush.bf16.msra.mxu0 %v1451
      %1461 = vmatpush.bf16.msra.mxu0 %v1450
      %1462 = vmatpush.bf16.msra.mxu0 %v1449
      %1463 = vmatpush.bf16.msra.mxu0 %v1448
      %1464 = vmatpush.bf16.msra.mxu0 %v1447
      %1465 = vmatpush.bf16.msra.mxu0 %v1446
      %1466 = vmatpush.bf16.msra.mxu0 %v1445
      %1467 = vmatpush.bf16.msra.mxu0 %v1444
      %1468 = vmatmul.bf16.gmra.mxu0 %v1391
      %v1469 = vpop.f32.mrf.mxu0
      %v1470 = vadd.f32 0.0, %v1469
      %v1471 = vpop.f32.mrf.mxu0
      %v1472 = vadd.f32 0.0, %v1471
      %1473 = vmatmul.bf16.gmra.mxu0 %v1392
      %v1474 = vpop.f32.mrf.mxu0
      %v1475 = vadd.f32 0.0, %v1474
      %v1476 = vpop.f32.mrf.mxu0
      %v1477 = vadd.f32 0.0, %v1476
      %1478 = vmatmul.bf16.gmra.mxu0 %v1393
      %v1479 = vpop.f32.mrf.mxu0
      %v1480 = vadd.f32 0.0, %v1479
      %v1481 = vpop.f32.mrf.mxu0
      %v1482 = vadd.f32 0.0, %v1481
      %1483 = vmatmul.bf16.gmra.mxu0 %v1394
      %v1484 = vpop.f32.mrf.mxu0
      %v1485 = vadd.f32 0.0, %v1484
      %v1486 = vpop.f32.mrf.mxu0
      %v1487 = vadd.f32 0.0, %v1486
      %1488 = vdwg.mxu0
      %v1489 = vadd.f32 %v1371, %v1470
      %v1490 = vadd.f32 %v1372, %v1472
      %v1491 = vadd.f32 %v1373, %v1475
      %v1492 = vadd.f32 %v1374, %v1477
      %v1493 = vadd.f32 %v1375, %v1480
      %v1494 = vadd.f32 %v1376, %v1482
      %v1495 = vadd.f32 %v1377, %v1485
      %v1496 = vadd.f32 %v1378, %v1487
      %v1497 = vld [vmem:[%s2] sm:$0x1]
      %v1499 = vperm.slane %v1497, 0
      %v1501 = vmul.f32 %v1489, %v1499
      %v1502 = vmul.f32 %v1490, %v1499
      %v1503 = vmul.f32 %v1491, %v1499
      %v1504 = vmul.f32 %v1492, %v1499
      %v1505 = vmul.f32 %v1493, %v1499
      %v1506 = vmul.f32 %v1494, %v1499
      %v1507 = vmul.f32 %v1495, %v1499
      %v1508 = vmul.f32 %v1496, %v1499
      %v1509 = vld [vmem:[%s3] sm:$0x1]
      %v1511 = vperm.slane %v1509, 0
      %v1513 = vadd.f32 %v1501, %v1511
      %v1514 = vadd.f32 %v1502, %v1511
      %v1515 = vadd.f32 %v1503, %v1511
      %v1516 = vadd.f32 %v1504, %v1511
      %v1517 = vadd.f32 %v1505, %v1511
      %v1518 = vadd.f32 %v1506, %v1511
      %v1519 = vadd.f32 %v1507, %v1511
      %v1520 = vadd.f32 %v1508, %v1511
      %v1521 = vmax.f32 %v1513, 0.0
      %v1522 = vmax.f32 %v1514, 0.0
      %v1523 = vmax.f32 %v1515, 0.0
      %v1524 = vmax.f32 %v1516, 0.0
      %v1525 = vmax.f32 %v1517, 0.0
      %v1526 = vmax.f32 %v1518, 0.0
      %v1527 = vmax.f32 %v1519, 0.0
      %v1528 = vmax.f32 %v1520, 0.0
      %1529 = vst [vmem:[%s197] sm:$0xff] %v1521
      %1530 = vst [vmem:[%s197 + $0x8] sm:$0xff] %v1522
      %1531 = vst [vmem:[%s197 + $0x10] sm:$0xff] %v1523
      %1532 = vst [vmem:[%s197 + $0x18] sm:$0xff] %v1524
      %1533 = vst [vmem:[%s197 + $0x20] sm:$0xff] %v1525
      %1534 = vst [vmem:[%s197 + $0x28] sm:$0xff] %v1526
      %1535 = vst [vmem:[%s197 + $0x30] sm:$0xff] %v1527
      %1536 = vst [vmem:[%s197 + $0x38] sm:$0xff] %v1528
      %p1537 = scmp.lt.s32.totalorder %s15, 1
      %s1538 = scalar_select %p1537, %s15, 1
      %s1539 = smul.addr %s1538, 8
      %s1540 = smul.addr %s1539, 8
      %s1541 = scalar_lea.vmem %s4, %s1540
      // Predicated region
      $region37: #{rt_layer_forward.7} parent=35 // pred_check
        %p1542 = pneg %p122
      $region38: #{rt_layer_forward.7} parent=35 // pred_check_branch
        %1544 = sbr.rel (%p1542) target = $region40
      $region39: #{rt_layer_forward.7} parent=35 // pred_region
        _
      $region40: #{rt_layer_forward.7} parent=35 // pred_fallthru
        _
    $region36: #{rt_layer_forward.7} parent=5 // pred_fallthru
      _
    %p1545 = scmp.le.s32.totalorder 2, %s10
    // Predicated region
    $region41: #{rt_layer_forward.7} parent=5 // pred_check
      %p1546 = pneg %p1545
    $region42: #{rt_layer_forward.7} parent=5 // pred_check_branch
      %1548 = sbr.rel (%p1546) target = $region44
    $region43: #{rt_layer_forward.7} parent=5 // pred_region
      %s1549 = ssub.s32 %s10, 2
      // Predicated region
      $region45: #{rt_layer_forward.7} parent=43 // pred_check
        %p1550 = pneg %p128
      $region46: #{rt_layer_forward.7} parent=43 // pred_check_branch
        %1552 = sbr.rel (%p1550) target = $region48
      $region47: #{rt_layer_forward.7} parent=43 // pred_region
        %p1553 = scmp.lt.s32.totalorder %s16, 1
        %s1554 = scalar_select %p1553, %s16, 1
        %s1555 = smul.addr %s1554, 8
        %s1556 = smul.addr %s1555, 8
        %s1557 = scalar_lea.vmem %s4, %s1556
      $region48: #{rt_layer_forward.7} parent=43 // pred_fallthru
        _
    $region44: #{rt_layer_forward.7} parent=5 // pred_fallthru
      _
  $region6: #{rt_layer_forward.7} parent=0 // loop_footer
    %s14 = sadd.s32 1, %s10
  $region7: #{rt_layer_forward.7} parent=0 // loop_footer_branch
    %9 = sbr.rel target = $region3
  $region8: #{rt_layer_forward.7} parent=0 // loop_exit
    _

// kernel: rt_layer_forward.6
$region0: #{rt_layer_forward.6}
  #allocation0 [shape = 'u32[]', space=smem, size = 0x4, offset = 0x4, fixed_abs, tag = 'smem constant byte address 0x4 - core index']
  #allocation1 [shape = 'u32[72,128]{1,0:T(1,128)}', space=vmem, size = 0x9000, scoped, tag = 'internal scratch']
  %s0 = inlined_call_operand.vmem [shape: bf16[2,82,128], index: 0, kind: input, shape index: {}]
  %s1 = inlined_call_operand.vmem [shape: bf16[9,128,128], index: 1, kind: input, shape index: {}]
  %s2 = inlined_call_operand.vmem [shape: f32[1,128], index: 2, kind: input, shape index: {}]
  %s3 = inlined_call_operand.vmem [shape: f32[1,128], index: 3, kind: input, shape index: {}]
  %s4 = inlined_call_operand.vmem [shape: bf16[2,64,128], index: 4, kind: output, shape index: {}]
  %s5 = sld [smem:[#allocation0]]
  $region49: #{rt_layer_forward.6} parent=0
    _
  %s7 = ssub.s32 1, %s5
  %s8 = scalar_select 0, %s7, %s5
  loop: start=0, step=1, limit=4
  $region2: #{rt_layer_forward.6} parent=0 // loop_pre_header
    _
  $region3: #{rt_layer_forward.6} parent=0 // loop_header
    %s10 = sphi 0, %s14
    %p11 = scmp.ge.s32.totalorder %s10, 4
    %s20 = sphi 0, %s22
    %s23 = sphi 0, %s20
    %s24 = sphi 0, %s23
    %s40 = sphi 0, %s24
    %s44 = sphi 0, %s44
    %s46 = sphi 0, %s44
    %s47 = sphi 0, %s46
    %s61 = sphi 0, %s47
    %s65 = sphi 0, %s65
    %s67 = sphi 0, %s65
    %s68 = sphi 0, %s67
    %s82 = sphi 0, %s68
    %s86 = sphi 0, %s86
    %s88 = sphi 0, %s86
    %s89 = sphi 0, %s88
    %s103 = sphi 0, %s89
    %s109 = sphi 0, %s111
    %s112 = sphi 0, %s109
    %s113 = sphi 0, %s112
    %s129 = sphi 0, %s113
  $region4: #{rt_layer_forward.6} parent=0 // loop_header_branch
    %13 = sbr.rel (%p11) target = $region8
  $region5: #{rt_layer_forward.6} parent=0 // loop_body
    %s15 = ssub.s32 %s10, 1
    %s16 = ssub.s32 %s10, 2
    %s17 = sadd.s32 %s10, 1
    %s18 = ssub.s32 %s10, %s17
    %p19 = scmp.eq.s32.totalorder %s18, 0
    %s21 = sadd.s32 %s20, 1
    %s22 = scalar_select %p19, %s20, %s21
    %p25 = pneg %p19
    %p26 = scmp.eq.s32.totalorder %s10, 1
    %p27 = por %p25, %p26
    %p28 = scmp.ne.s32.totalorder %s20, %s23
    %p29 = scmp.eq.s32.totalorder %s10, 0
    %p30 = por %p28, %p29
    %p31 = scmp.ne.s32.totalorder %s20, %s23
    %p32 = scmp.eq.s32.totalorder %s15, 1
    %p33 = por %p31, %p32
    %p34 = scmp.ne.s32.totalorder %s23, %s24
    %p35 = scmp.eq.s32.totalorder %s15, 0
    %p36 = por %p34, %p35
    %p37 = scmp.ne.s32.totalorder %s23, %s24
    %p38 = scmp.eq.s32.totalorder %s16, 1
    %p39 = por %p37, %p38
    %p41 = scmp.ne.s32.totalorder %s24, %s40
    %p42 = scmp.eq.s32.totalorder %s16, 0
    %p43 = por %p41, %p42
    %s45 = sadd.s32 %s44, 1
    %p48 = scmp.eq.s32.totalorder %s10, 1
    %p49 = scmp.ne.s32.totalorder %s44, %s46
    %p50 = scmp.eq.s32.totalorder %s10, 0
    %p51 = por %p49, %p50
    %p52 = scmp.ne.s32.totalorder %s44, %s46
    %p53 = scmp.eq.s32.totalorder %s15, 1
    %p54 = por %p52, %p53
    %p55 = scmp.ne.s32.totalorder %s46, %s47
    %p56 = scmp.eq.s32.totalorder %s15, 0
    %p57 = por %p55, %p56
    %p58 = scmp.ne.s32.totalorder %s46, %s47
    %p59 = scmp.eq.s32.totalorder %s16, 1
    %p60 = por %p58, %p59
    %p62 = scmp.ne.s32.totalorder %s47, %s61
    %p63 = scmp.eq.s32.totalorder %s16, 0
    %p64 = por %p62, %p63
    %s66 = sadd.s32 %s65, 1
    %p69 = scmp.eq.s32.totalorder %s10, 1
    %p70 = scmp.ne.s32.totalorder %s65, %s67
    %p71 = scmp.eq.s32.totalorder %s10, 0
    %p72 = por %p70, %p71
    %p73 = scmp.ne.s32.totalorder %s65, %s67
    %p74 = scmp.eq.s32.totalorder %s15, 1
    %p75 = por %p73, %p74
    %p76 = scmp.ne.s32.totalorder %s67, %s68
    %p77 = scmp.eq.s32.totalorder %s15, 0
    %p78 = por %p76, %p77
    %p79 = scmp.ne.s32.totalorder %s67, %s68
    %p80 = scmp.eq.s32.totalorder %s16, 1
    %p81 = por %p79, %p80
    %p83 = scmp.ne.s32.totalorder %s68, %s82
    %p84 = scmp.eq.s32.totalorder %s16, 0
    %p85 = por %p83, %p84
    %s87 = sadd.s32 %s86, 1
    %p90 = scmp.eq.s32.totalorder %s10, 1
    %p91 = scmp.ne.s32.totalorder %s86, %s88
    %p92 = scmp.eq.s32.totalorder %s10, 0
    %p93 = por %p91, %p92
    %p94 = scmp.ne.s32.totalorder %s86, %s88
    %p95 = scmp.eq.s32.totalorder %s15, 1
    %p96 = por %p94, %p95
    %p97 = scmp.ne.s32.totalorder %s88, %s89
    %p98 = scmp.eq.s32.totalorder %s15, 0
    %p99 = por %p97, %p98
    %p100 = scmp.ne.s32.totalorder %s88, %s89
    %p101 = scmp.eq.s32.totalorder %s16, 1
    %p102 = por %p100, %p101
    %p104 = scmp.ne.s32.totalorder %s89, %s103
    %p105 = scmp.eq.s32.totalorder %s16, 0
    %p106 = por %p104, %p105
    %s107 = ssub.s32 %s10, %s17
    %p108 = scmp.eq.s32.totalorder %s107, 0
    %s110 = sadd.s32 %s109, 1
    %s111 = scalar_select %p108, %s109, %s110
    %p114 = pneg %p108
    %p115 = scmp.eq.s32.totalorder %s10, 1
    %p116 = por %p114, %p115
    %p117 = scmp.ne.s32.totalorder %s109, %s112
    %p118 = scmp.eq.s32.totalorder %s10, 0
    %p119 = por %p117, %p118
    %p120 = scmp.ne.s32.totalorder %s109, %s112
    %p121 = scmp.eq.s32.totalorder %s15, 1
    %p122 = por %p120, %p121
    %p123 = scmp.ne.s32.totalorder %s112, %s113
    %p124 = scmp.eq.s32.totalorder %s15, 0
    %p125 = por %p123, %p124
    %p126 = scmp.ne.s32.totalorder %s112, %s113
    %p127 = scmp.eq.s32.totalorder %s16, 1
    %p128 = por %p126, %p127
    %p130 = scmp.ne.s32.totalorder %s113, %s129
    %p131 = scmp.eq.s32.totalorder %s16, 0
    %p132 = por %p130, %p131
    %p133 = scmp.le.s32.totalorder 1, %s10
    %p134 = scmp.lt.s32.totalorder %s10, 3
    %p135 = pnand %p133, %p134
    %p136 = pneg %p135
    // Predicated region
    $region9: #{rt_layer_forward.6} parent=5 // pred_check
      _
    $region10: #{rt_layer_forward.6} parent=5 // pred_check_branch
      %138 = sbr.rel (%p135) target = $region12
    $region11: #{rt_layer_forward.6} parent=5 // pred_region
      %s139 = ssub.s32 %s10, 1
      // Predicated region
      $region13: #{rt_layer_forward.6} parent=11 // pred_check
        %p140 = pneg %p57
      $region14: #{rt_layer_forward.6} parent=11 // pred_check_branch
        %142 = sbr.rel (%p140) target = $region16
      $region15: #{rt_layer_forward.6} parent=11 // pred_region
        _
      $region16: #{rt_layer_forward.6} parent=11 // pred_fallthru
        _
      // Predicated region
      $region17: #{rt_layer_forward.6} parent=11 // pred_check
        %p143 = pneg %p78
      $region18: #{rt_layer_forward.6} parent=11 // pred_check_branch
        %145 = sbr.rel (%p143) target = $region20
      $region19: #{rt_layer_forward.6} parent=11 // pred_region
        _
      $region20: #{rt_layer_forward.6} parent=11 // pred_fallthru
        _
      // Predicated region
      $region21: #{rt_layer_forward.6} parent=11 // pred_check
        %p146 = pneg %p99
      $region22: #{rt_layer_forward.6} parent=11 // pred_check_branch
        %148 = sbr.rel (%p146) target = $region24
      $region23: #{rt_layer_forward.6} parent=11 // pred_region
        _
      $region24: #{rt_layer_forward.6} parent=11 // pred_fallthru
        _
    $region12: #{rt_layer_forward.6} parent=5 // pred_fallthru
      _
    %p149 = scmp.lt.s32.totalorder %s10, 2
    // Predicated region
    $region25: #{rt_layer_forward.6} parent=5 // pred_check
      %p150 = pneg %p149
    $region26: #{rt_layer_forward.6} parent=5 // pred_check_branch
      %152 = sbr.rel (%p150) target = $region28
    $region27: #{rt_layer_forward.6} parent=5 // pred_region
      // Predicated region
      $region29: #{rt_layer_forward.6} parent=27 // pred_check
        %p153 = pneg %p30
      $region30: #{rt_layer_forward.6} parent=27 // pred_check_branch
        %155 = sbr.rel (%p153) target = $region32
      $region31: #{rt_layer_forward.6} parent=27 // pred_region
        %p156 = scmp.lt.s32.totalorder %s10, 1
        %s157 = scalar_select %p156, %s10, 1
        %s158 = smul.addr %s157, 11
        %s159 = smul.addr %s158, 4
        %s160 = scalar_lea.vmem %s0, %s159
      $region32: #{rt_layer_forward.6} parent=27 // pred_fallthru
        _
    $region28: #{rt_layer_forward.6} parent=5 // pred_fallthru
      _
    %p161 = scmp.le.s32.totalorder 1, %s10
    %p162 = scmp.lt.s32.totalorder %s10, 3
    %p163 = pnand %p161, %p162
    %p164 = pneg %p163
    // Predicated region
    $region33: #{rt_layer_forward.6} parent=5 // pred_check
      _
    $region34: #{rt_layer_forward.6} parent=5 // pred_check_branch
      %166 = sbr.rel (%p163) target = $region36
    $region35: #{rt_layer_forward.6} parent=5 // pred_region
      %s167 = ssub.s32 %s10, 1
      %p168 = scmp.lt.s32.totalorder %s15, 1
      %s169 = scalar_select %p168, %s15, 1
      %s170 = smul.addr %s169, 11
      %s171 = smul.addr %s170, 4
      %s172 = scalar_lea.vmem %s0, %s171
      %p173 = pneg %p36
      %p174 = pneg %p33
      %p175 = pneg %p57
      %p176 = pneg %p54
      %p177 = pneg %p78
      %p178 = pneg %p75
      %p179 = pneg %p99
      %p180 = pneg %p96
      %p181 = pneg %p125
      %p182 = pneg %p122
      %p183 = scmp.lt.s32.totalorder %s15, 1
      %s184 = scalar_select %p183, %s15, 1
      %s185 = smul.addr %s184, 8
      %s186 = smul.addr %s185, 4
      %s187 = scalar_lea.vmem %s4, %s186
      %p188 = scmp.lt.s32.totalorder %s15, 1
      %s189 = scalar_select %p188, %s15, 1
      %s190 = smul.addr %s189, 11
      %s191 = smul.addr %s190, 4
      %s192 = scalar_lea.vmem %s0, %s191
      %p193 = scmp.lt.s32.totalorder %s15, 1
      %s194 = scalar_select %p193, %s15, 1
      %s195 = smul.addr %s194, 8
      %s196 = smul.addr %s195, 4
      %s197 = scalar_lea.vmem %s4, %s196
      %v198 = vld [vmem:[%s192] sm:$0xf]
      %v199 = vld [vmem:[%s192 + $0x4] sm:$0xf]
      %v200 = vld [vmem:[%s192 + $0x8] sm:$0xf]
      %v201 = vld [vmem:[%s192 + $0xc] sm:$0xf]
      %v202 = vld [vmem:[%s192 + $0x10] sm:$0xf]
      %v203 = vld [vmem:[%s192 + $0x14] sm:$0xf]
      %v204 = vld [vmem:[%s192 + $0x18] sm:$0xf]
      %v205 = vld [vmem:[%s192 + $0x1c] sm:$0xf]
      %v206 = vld [vmem:[%s192 + $0x20] sm:$0xf]
      %v207 = vld [vmem:[%s192 + $0x24] sm:$0xf]
      %v208 = vld [vmem:[%s192 + $0x28] sm:$0x1]
      %v209 = vunpack.c.l.bf16 %v198
      %v210 = vunpack.c.l.bf16 %v199
      %v211 = vunpack.c.l.bf16 %v200
      %v212 = vunpack.c.l.bf16 %v201
      %v213 = vunpack.c.l.bf16 %v202
      %v214 = vunpack.c.l.bf16 %v203
      %v215 = vunpack.c.l.bf16 %v204
      %v216 = vunpack.c.l.bf16 %v205
      %v217 = vunpack.c.l.bf16 %v206
      %v218 = vunpack.c.l.bf16 %v207
      %v219 = vunpack.c.l.bf16 %v208
      %v220 = vlaneseq
      %v221 = vshrl.u32 %v220, 7
      %v222 = vadd.s32 %v221, 8
      %v223 = vadd.s32 %v221, 16
      %v224 = vadd.s32 %v221, 24
      %v225 = vadd.s32 %v221, 32
      %v226 = vadd.s32 %v221, 40
      %v227 = vadd.s32 %v221, 48
      %v228 = vadd.s32 %v221, 56
      %vm229 = vcmp.lt.s32.totalorder %v221, 0
      %v230 = vsub.s32 0, %v221
      %v231 = vsel %vm229, %v230, %v221
      %v232 = vshrl.u32 %v231, 3
      %v233 = vand.u32 %v231, 7
      %v234 = vsub.s32 0, %v233
      %v235 = vsel %vm229, %v234, %v233
      %vm236 = vcmp.lt.s32.totalorder %v222, 0
      %v237 = vsub.s32 0, %v222
      %v238 = vsel %vm236, %v237, %v222
      %v239 = vshrl.u32 %v238, 3
      %v240 = vand.u32 %v238, 7
      %v241 = vsub.s32 0, %v240
      %v242 = vsel %vm236, %v241, %v240
      %vm243 = vcmp.lt.s32.totalorder %v223, 0
      %v244 = vsub.s32 0, %v223
      %v245 = vsel %vm243, %v244, %v223
      %v246 = vshrl.u32 %v245, 3
      %v247 = vand.u32 %v245, 7
      %v248 = vsub.s32 0, %v247
      %v249 = vsel %vm243, %v248, %v247
      %vm250 = vcmp.lt.s32.totalorder %v224, 0
      %v251 = vsub.s32 0, %v224
      %v252 = vsel %vm250, %v251, %v224
      %v253 = vshrl.u32 %v252, 3
      %v254 = vand.u32 %v252, 7
      %v255 = vsub.s32 0, %v254
      %v256 = vsel %vm250, %v255, %v254
      %vm257 = vcmp.lt.s32.totalorder %v225, 0
      %v258 = vsub.s32 0, %v225
      %v259 = vsel %vm257, %v258, %v225
      %v260 = vshrl.u32 %v259, 3
      %v261 = vand.u32 %v259, 7
      %v262 = vsub.s32 0, %v261
      %v263 = vsel %vm257, %v262, %v261
      %vm264 = vcmp.lt.s32.totalorder %v226, 0
      %v265 = vsub.s32 0, %v226
      %v266 = vsel %vm264, %v265, %v226
      %v267 = vshrl.u32 %v266, 3
      %v268 = vand.u32 %v266, 7
      %v269 = vsub.s32 0, %v268
      %v270 = vsel %vm264, %v269, %v268
      %vm271 = vcmp.lt.s32.totalorder %v227, 0
      %v272 = vsub.s32 0, %v227
      %v273 = vsel %vm271, %v272, %v227
      %v274 = vshrl.u32 %v273, 3
      %v275 = vand.u32 %v273, 7
      %v276 = vsub.s32 0, %v275
      %v277 = vsel %vm271, %v276, %v275
      %vm278 = vcmp.lt.s32.totalorder %v228, 0
      %v279 = vsub.s32 0, %v228
      %v280 = vsel %vm278, %v279, %v228
      %v281 = vshrl.u32 %v280, 3
      %v282 = vand.u32 %v280, 7
      %v283 = vsub.s32 0, %v282
      %v284 = vsel %vm278, %v283, %v282
      %vm285 = vcmp.ne.s32.totalorder %v235, 0
      %vm286 = vcmp.ne.s32.totalorder %v242, 0
      %vm287 = vcmp.ne.s32.totalorder %v249, 0
      %vm288 = vcmp.ne.s32.totalorder %v256, 0
      %vm289 = vcmp.ne.s32.totalorder %v263, 0
      %vm290 = vcmp.ne.s32.totalorder %v270, 0
      %vm291 = vcmp.ne.s32.totalorder %v277, 0
      %vm292 = vcmp.ne.s32.totalorder %v284, 0
      %vm293 = vcmp.lt.s32.totalorder %v235, 0
      %vm294 = vcmp.lt.s32.totalorder %v242, 0
      %vm295 = vcmp.lt.s32.totalorder %v249, 0
      %vm296 = vcmp.lt.s32.totalorder %v256, 0
      %vm297 = vcmp.lt.s32.totalorder %v263, 0
      %vm298 = vcmp.lt.s32.totalorder %v270, 0
      %vm299 = vcmp.lt.s32.totalorder %v277, 0
      %vm300 = vcmp.lt.s32.totalorder %v284, 0
      %vm301 = vmand %vm293, %vm285
      %vm302 = vmand %vm294, %vm286
      %vm303 = vmand %vm295, %vm287
      %vm304 = vmand %vm296, %vm288
      %vm305 = vmand %vm297, %vm289
      %vm306 = vmand %vm298, %vm290
      %vm307 = vmand %vm299, %vm291
      %vm308 = vmand %vm300, %vm292
      %v309 = vadd.s32 %v235, 8
      %v310 = vadd.s32 %v242, 8
      %v311 = vadd.s32 %v249, 8
      %v312 = vadd.s32 %v256, 8
      %v313 = vadd.s32 %v263, 8
      %v314 = vadd.s32 %v270, 8
      %v315 = vadd.s32 %v277, 8
      %v316 = vadd.s32 %v284, 8
      %v317 = vsel %vm301, %v309, %v235
      %v318 = vsel %vm302, %v310, %v242
      %v319 = vsel %vm303, %v311, %v249
      %v320 = vsel %vm304, %v312, %v256
      %v321 = vsel %vm305, %v313, %v263
      %v322 = vsel %vm306, %v314, %v270
      %v323 = vsel %vm307, %v315, %v277
      %v324 = vsel %vm308, %v316, %v284
      %vm325 = vcmp.ge.s32.totalorder %v317, 1
      %vm326 = vcmp.ge.s32.totalorder %v318, 1
      %vm327 = vcmp.ge.s32.totalorder %v319, 1
      %vm328 = vcmp.ge.s32.totalorder %v320, 1
      %vm329 = vcmp.ge.s32.totalorder %v321, 1
      %vm330 = vcmp.ge.s32.totalorder %v322, 1
      %vm331 = vcmp.ge.s32.totalorder %v323, 1
      %vm332 = vcmp.ge.s32.totalorder %v324, 1
      %v333 = vsel %vm325, 1, 0
      %v334 = vsel %vm326, 1, 0
      %v335 = vsel %vm327, 1, 0
      %v336 = vsel %vm328, 1, 0
      %v337 = vsel %vm329, 1, 0
      %v338 = vsel %vm330, 1, 0
      %v339 = vsel %vm331, 1, 0
      %v340 = vsel %vm332, 1, 0
      %vm341 = vcmp.eq.s32.totalorder %v333, 1
      %vm342 = vcmp.eq.s32.totalorder %v334, 1
      %vm343 = vcmp.eq.s32.totalorder %v335, 1
      %vm344 = vcmp.eq.s32.totalorder %v336, 1
      %vm345 = vcmp.eq.s32.totalorder %v337, 1
      %vm346 = vcmp.eq.s32.totalorder %v338, 1
      %vm347 = vcmp.eq.s32.totalorder %v339, 1
      %vm348 = vcmp.eq.s32.totalorder %v340, 1
      %v349 = vsel %vm341, %v209, 0.0
      %v350 = vsel %vm342, %v210, 0.0
      %v351 = vsel %vm343, %v211, 0.0
      %v352 = vsel %vm344, %v212, 0.0
      %v353 = vsel %vm345, %v213, 0.0
      %v354 = vsel %vm346, %v214, 0.0
      %v355 = vsel %vm347, %v215, 0.0
      %v356 = vsel %vm348, %v216, 0.0
      %v357 = vpack.c.bf16 %v350, %v349
      %v358 = vpack.c.bf16 %v352, %v351
      %v359 = vpack.c.bf16 %v354, %v353
      %v360 = vpack.c.bf16 %v356, %v355
      %v361 = vld [vmem:[%s1] sm:$0xf]
      %v362 = vld [vmem:[%s1 + $0x4] sm:$0xf]
      %v363 = vld [vmem:[%s1 + $0x8] sm:$0xf]
      %v364 = vld [vmem:[%s1 + $0xc] sm:$0xf]
      %v365 = vld [vmem:[%s1 + $0x10] sm:$0xf]
      %v366 = vld [vmem:[%s1 + $0x14] sm:$0xf]
      %v367 = vld [vmem:[%s1 + $0x18] sm:$0xf]
      %v368 = vld [vmem:[%s1 + $0x1c] sm:$0xf]
      %v369 = vld [vmem:[%s1 + $0x20] sm:$0xf]
      %v370 = vld [vmem:[%s1 + $0x24] sm:$0xf]
      %v371 = vld [vmem:[%s1 + $0x28] sm:$0xf]
      %v372 = vld [vmem:[%s1 + $0x2c] sm:$0xf]
      %v373 = vld [vmem:[%s1 + $0x30] sm:$0xf]
      %v374 = vld [vmem:[%s1 + $0x34] sm:$0xf]
      %v375 = vld [vmem:[%s1 + $0x38] sm:$0xf]
      %v376 = vld [vmem:[%s1 + $0x3c] sm:$0xf]
      %v377 = vpack.c.bf16 %v210, %v209
      %v378 = vpack.c.bf16 %v212, %v211
      %v379 = vpack.c.bf16 %v214, %v213
      %v380 = vpack.c.bf16 %v216, %v215
      %v381 = vpack.c.bf16 %v217, %v217
      %s382 = scalar_lea.vmem %s1, 64
      %v383 = vld [vmem:[%s382] sm:$0xf]
      %v384 = vld [vmem:[%s382 + $0x4] sm:$0xf]
      %v385 = vld [vmem:[%s382 + $0x8] sm:$0xf]
      %v386 = vld [vmem:[%s382 + $0xc] sm:$0xf]
      %v387 = vld [vmem:[%s382 + $0x10] sm:$0xf]
      %v388 = vld [vmem:[%s382 + $0x14] sm:$0xf]
      %v389 = vld [vmem:[%s382 + $0x18] sm:$0xf]
      %v390 = vld [vmem:[%s382 + $0x1c] sm:$0xf]
      %v391 = vld [vmem:[%s382 + $0x20] sm:$0xf]
      %v392 = vld [vmem:[%s382 + $0x24] sm:$0xf]
      %v393 = vld [vmem:[%s382 + $0x28] sm:$0xf]
      %v394 = vld [vmem:[%s382 + $0x2c] sm:$0xf]
      %v395 = vld [vmem:[%s382 + $0x30] sm:$0xf]
      %v396 = vld [vmem:[%s382 + $0x34] sm:$0xf]
      %v397 = vld [vmem:[%s382 + $0x38] sm:$0xf]
      %v398 = vld [vmem:[%s382 + $0x3c] sm:$0xf]
      %vm399 = vsmask.f32 7424
      %v401 = vshrl.u32 %v377, 16
      %v403 = vshll.u32 %v377, 16
      %v405 = vrot.slane %v403, 1
      %v406 = vor.u32 %v401, %v405
      %v408 = vshll.u32 %v378, 16
      %v410 = vrot.slane %v408, 1
      %v411 = vsel %vm399, %v406, %v410
      %v412 = vshrl.u32 %v378, 16
      %v414 = vor.u32 %v412, %v410
      %v416 = vshll.u32 %v379, 16
      %v418 = vrot.slane %v416, 1
      %v419 = vsel %vm399, %v414, %v418
      %v420 = vshrl.u32 %v379, 16
      %v422 = vor.u32 %v420, %v418
      %v424 = vshll.u32 %v380, 16
      %v426 = vrot.slane %v424, 1
      %v427 = vsel %vm399, %v422, %v426
      %v428 = vshrl.u32 %v380, 16
      %v430 = vor.u32 %v428, %v426
      %v432 = vshll.u32 %v381, 16
      %v434 = vrot.slane %v432, 1
      %v435 = vsel %vm399, %v430, %v434
      %v456 = vunpack.c.l.b16 %v383
      %v457 = vunpack.c.l.b16 %v384
      %v458 = vunpack.c.l.b16 %v385
      %v459 = vunpack.c.l.b16 %v386
      %v460 = vunpack.c.l.b16 %v387
      %v461 = vunpack.c.l.b16 %v388
      %v462 = vunpack.c.l.b16 %v389
      %v463 = vunpack.c.l.b16 %v390
      %v464 = vunpack.c.l.b16 %v391
      %v465 = vunpack.c.l.b16 %v392
      %v466 = vunpack.c.l.b16 %v393
      %v467 = vunpack.c.l.b16 %v394
      %v468 = vunpack.c.l.b16 %v395
      %v469 = vunpack.c.l.b16 %v396
      %v470 = vunpack.c.l.b16 %v397
      %v471 = vunpack.c.l.b16 %v398
      %v472 = vpack.c.b16 %v457, %v456
      %v473 = vpack.c.b16 %v459, %v458
      %v474 = vpack.c.b16 %v461, %v460
      %v475 = vpack.c.b16 %v463, %v462
      %v476 = vpack.c.b16 %v465, %v464
      %v477 = vpack.c.b16 %v467, %v466
      %v478 = vpack.c.b16 %v469, %v468
      %v479 = vpack.c.b16 %v471, %v470
      %488 = vmatpush.bf16.msra.mxu0 %v479
      %489 = vmatpush.bf16.msra.mxu0 %v478
      %490 = vmatpush.bf16.msra.mxu0 %v477
      %491 = vmatpush.bf16.msra.mxu0 %v476
      %492 = vmatpush.bf16.msra.mxu0 %v475
      %493 = vmatpush.bf16.msra.mxu0 %v474
      %494 = vmatpush.bf16.msra.mxu0 %v473
      %495 = vmatpush.bf16.msra.mxu0 %v472
      %496 = vmatmul.bf16.gmra.mxu0 %v411
      %v497 = vpop.f32.mrf.mxu0
      %v498 = vadd.f32 0.0, %v497
      %v499 = vpop.f32.mrf.mxu0
      %v500 = vadd.f32 0.0, %v499
      %501 = vmatmul.bf16.gmra.mxu0 %v419
      %v502 = vpop.f32.mrf.mxu0
      %v503 = vadd.f32 0.0, %v502
      %v504 = vpop.f32.mrf.mxu0
      %v505 = vadd.f32 0.0, %v504
      %506 = vmatmul.bf16.gmra.mxu0 %v427
      %v507 = vpop.f32.mrf.mxu0
      %v508 = vadd.f32 0.0, %v507
      %v509 = vpop.f32.mrf.mxu0
      %v510 = vadd.f32 0.0, %v509
      %511 = vmatmul.bf16.gmra.mxu0 %v435
      %v512 = vpop.f32.mrf.mxu0
      %v513 = vadd.f32 0.0, %v512
      %v514 = vpop.f32.mrf.mxu0
      %v515 = vadd.f32 0.0, %v514
      %516 = vdwg.mxu0
      %v533 = vunpack.c.l.b16 %v361
      %v534 = vunpack.c.l.b16 %v362
      %v535 = vunpack.c.l.b16 %v363
      %v536 = vunpack.c.l.b16 %v364
      %v537 = vunpack.c.l.b16 %v365
      %v538 = vunpack.c.l.b16 %v366
      %v539 = vunpack.c.l.b16 %v367
      %v540 = vunpack.c.l.b16 %v368
      %v541 = vunpack.c.l.b16 %v369
      %v542 = vunpack.c.l.b16 %v370
      %v543 = vunpack.c.l.b16 %v371
      %v544 = vunpack.c.l.b16 %v372
      %v545 = vunpack.c.l.b16 %v373
      %v546 = vunpack.c.l.b16 %v374
      %v547 = vunpack.c.l.b16 %v375
      %v548 = vunpack.c.l.b16 %v376
      %v549 = vpack.c.b16 %v534, %v533
      %v550 = vpack.c.b16 %v536, %v535
      %v551 = vpack.c.b16 %v538, %v537
      %v552 = vpack.c.b16 %v540, %v539
      %v553 = vpack.c.b16 %v542, %v541
      %v554 = vpack.c.b16 %v544, %v543
      %v555 = vpack.c.b16 %v546, %v545
      %v556 = vpack.c.b16 %v548, %v547
      %565 = vmatpush.bf16.msra.mxu0 %v556
      %566 = vmatpush.bf16.msra.mxu0 %v555
      %567 = vmatpush.bf16.msra.mxu0 %v554
      %568 = vmatpush.bf16.msra.mxu0 %v553
      %569 = vmatpush.bf16.msra.mxu0 %v552
      %570 = vmatpush.bf16.msra.mxu0 %v551
      %571 = vmatpush.bf16.msra.mxu0 %v550
      %572 = vmatpush.bf16.msra.mxu0 %v549
      %573 = vmatmul.bf16.gmra.mxu0 %v357
      %v574 = vpop.f32.mrf.mxu0
      %v575 = vadd.f32 %v498, %v574
      %v576 = vpop.f32.mrf.mxu0
      %v577 = vadd.f32 %v500, %v576
      %578 = vmatmul.bf16.gmra.mxu0 %v358
      %v579 = vpop.f32.mrf.mxu0
      %v580 = vadd.f32 %v503, %v579
      %v581 = vpop.f32.mrf.mxu0
      %v582 = vadd.f32 %v505, %v581
      %583 = vmatmul.bf16.gmra.mxu0 %v359
      %v584 = vpop.f32.mrf.mxu0
      %v585 = vadd.f32 %v508, %v584
      %v586 = vpop.f32.mrf.mxu0
      %v587 = vadd.f32 %v510, %v586
      %588 = vmatmul.bf16.gmra.mxu0 %v360
      %v589 = vpop.f32.mrf.mxu0
      %v590 = vadd.f32 %v513, %v589
      %v591 = vpop.f32.mrf.mxu0
      %v592 = vadd.f32 %v515, %v591
      %593 = vdwg.mxu0
      %vm594 = vcmp.le.s32.totalorder %v317, 6
      %vm595 = vcmp.le.s32.totalorder %v318, 6
      %vm596 = vcmp.le.s32.totalorder %v319, 6
      %vm597 = vcmp.le.s32.totalorder %v320, 6
      %vm598 = vcmp.le.s32.totalorder %v321, 6
      %vm599 = vcmp.le.s32.totalorder %v322, 6
      %vm600 = vcmp.le.s32.totalorder %v323, 6
      %vm601 = vcmp.le.s32.totalorder %v324, 6
      %v602 = vsel %vm594, 1, 0
      %v603 = vsel %vm595, 1, 0
      %v604 = vsel %vm596, 1, 0
      %v605 = vsel %vm597, 1, 0
      %v606 = vsel %vm598, 1, 0
      %v607 = vsel %vm599, 1, 0
      %v608 = vsel %vm600, 1, 0
      %v609 = vsel %vm601, 1, 0
      %vm610 = vcmp.eq.s32.totalorder %v602, 1
      %vm611 = vcmp.eq.s32.totalorder %v603, 1
      %vm612 = vcmp.eq.s32.totalorder %v604, 1
      %vm613 = vcmp.eq.s32.totalorder %v605, 1
      %vm614 = vcmp.eq.s32.totalorder %v606, 1
      %vm615 = vcmp.eq.s32.totalorder %v607, 1
      %vm616 = vcmp.eq.s32.totalorder %v608, 1
      %vm617 = vcmp.eq.s32.totalorder %v609, 1
      %vm627 = vcmask 1045504
      %v628 = vrot.slane %v209, 2
      %v629 = vrot.slane %v210, 2
      %v630 = vsel %vm627, %v628, %v629
      %v631 = vrot.slane %v211, 2
      %v632 = vsel %vm627, %v629, %v631
      %v633 = vrot.slane %v212, 2
      %v634 = vsel %vm627, %v631, %v633
      %v635 = vrot.slane %v213, 2
      %v636 = vsel %vm627, %v633, %v635
      %v637 = vrot.slane %v214, 2
      %v638 = vsel %vm627, %v635, %v637
      %v639 = vrot.slane %v215, 2
      %v640 = vsel %vm627, %v637, %v639
      %v641 = vrot.slane %v216, 2
      %v642 = vsel %vm627, %v639, %v641
      %v643 = vrot.slane %v217, 2
      %v644 = vsel %vm627, %v641, %v643
      %v653 = vsel %vm610, %v630, 0.0
      %v654 = vsel %vm611, %v632, 0.0
      %v655 = vsel %vm612, %v634, 0.0
      %v656 = vsel %vm613, %v636, 0.0
      %v657 = vsel %vm614, %v638, 0.0
      %v658 = vsel %vm615, %v640, 0.0
      %v659 = vsel %vm616, %v642, 0.0
      %v660 = vsel %vm617, %v644, 0.0
      %v661 = vpack.c.bf16 %v654, %v653
      %v662 = vpack.c.bf16 %v656, %v655
      %v663 = vpack.c.bf16 %v658, %v657
      %v664 = vpack.c.bf16 %v660, %v659
      %s665 = scalar_lea.vmem %s1, 128
      %v666 = vld [vmem:[%s665] sm:$0xf]
      %v667 = vld [vmem:[%s665 + $0x4] sm:$0xf]
      %v668 = vld [vmem:[%s665 + $0x8] sm:$0xf]
      %v669 = vld [vmem:[%s665 + $0xc] sm:$0xf]
      %v670 = vld [vmem:[%s665 + $0x10] sm:$0xf]
      %v671 = vld [vmem:[%s665 + $0x14] sm:$0xf]
      %v672 = vld [vmem:[%s665 + $0x18] sm:$0xf]
      %v673 = vld [vmem:[%s665 + $0x1c] sm:$0xf]
      %v674 = vld [vmem:[%s665 + $0x20] sm:$0xf]
      %v675 = vld [vmem:[%s665 + $0x24] sm:$0xf]
      %v676 = vld [vmem:[%s665 + $0x28] sm:$0xf]
      %v677 = vld [vmem:[%s665 + $0x2c] sm:$0xf]
      %v678 = vld [vmem:[%s665 + $0x30] sm:$0xf]
      %v679 = vld [vmem:[%s665 + $0x34] sm:$0xf]
      %v680 = vld [vmem:[%s665 + $0x38] sm:$0xf]
      %v681 = vld [vmem:[%s665 + $0x3c] sm:$0xf]
      %v698 = vunpack.c.l.b16 %v666
      %v699 = vunpack.c.l.b16 %v667
      %v700 = vunpack.c.l.b16 %v668
      %v701 = vunpack.c.l.b16 %v669
      %v702 = vunpack.c.l.b16 %v670
      %v703 = vunpack.c.l.b16 %v671
      %v704 = vunpack.c.l.b16 %v672
      %v705 = vunpack.c.l.b16 %v673
      %v706 = vunpack.c.l.b16 %v674
      %v707 = vunpack.c.l.b16 %v675
      %v708 = vunpack.c.l.b16 %v676
      %v709 = vunpack.c.l.b16 %v677
      %v710 = vunpack.c.l.b16 %v678
      %v711 = vunpack.c.l.b16 %v679
      %v712 = vunpack.c.l.b16 %v680
      %v713 = vunpack.c.l.b16 %v681
      %v714 = vpack.c.b16 %v699, %v698
      %v715 = vpack.c.b16 %v701, %v700
      %v716 = vpack.c.b16 %v703, %v702
      %v717 = vpack.c.b16 %v705, %v704
      %v718 = vpack.c.b16 %v707, %v706
      %v719 = vpack.c.b16 %v709, %v708
      %v720 = vpack.c.b16 %v711, %v710
      %v721 = vpack.c.b16 %v713, %v712
      %730 = vmatpush.bf16.msra.mxu0 %v721
      %731 = vmatpush.bf16.msra.mxu0 %v720
      %732 = vmatpush.bf16.msra.mxu0 %v719
      %733 = vmatpush.bf16.msra.mxu0 %v718
      %734 = vmatpush.bf16.msra.mxu0 %v717
      %735 = vmatpush.bf16.msra.mxu0 %v716
      %736 = vmatpush.bf16.msra.mxu0 %v715
      %737 = vmatpush.bf16.msra.mxu0 %v714
      %738 = vmatmul.bf16.gmra.mxu0 %v661
      %v739 = vpop.f32.mrf.mxu0
      %v740 = vadd.f32 0.0, %v739
      %v741 = vpop.f32.mrf.mxu0
      %v742 = vadd.f32 0.0, %v741
      %743 = vmatmul.bf16.gmra.mxu0 %v662
      %v744 = vpop.f32.mrf.mxu0
      %v745 = vadd.f32 0.0, %v744
      %v746 = vpop.f32.mrf.mxu0
      %v747 = vadd.f32 0.0, %v746
      %748 = vmatmul.bf16.gmra.mxu0 %v663
      %v749 = vpop.f32.mrf.mxu0
      %v750 = vadd.f32 0.0, %v749
      %v751 = vpop.f32.mrf.mxu0
      %v752 = vadd.f32 0.0, %v751
      %753 = vmatmul.bf16.gmra.mxu0 %v664
      %v754 = vpop.f32.mrf.mxu0
      %v755 = vadd.f32 0.0, %v754
      %v756 = vpop.f32.mrf.mxu0
      %v757 = vadd.f32 0.0, %v756
      %758 = vdwg.mxu0
      %v759 = vadd.f32 %v575, %v740
      %v760 = vadd.f32 %v577, %v742
      %v761 = vadd.f32 %v580, %v745
      %v762 = vadd.f32 %v582, %v747
      %v763 = vadd.f32 %v585, %v750
      %v764 = vadd.f32 %v587, %v752
      %v765 = vadd.f32 %v590, %v755
      %v766 = vadd.f32 %v592, %v757
      %v767 = vsel %vm341, %v210, 0.0
      %v768 = vsel %vm342, %v211, 0.0
      %v769 = vsel %vm343, %v212, 0.0
      %v770 = vsel %vm344, %v213, 0.0
      %v771 = vsel %vm345, %v214, 0.0
      %v772 = vsel %vm346, %v215, 0.0
      %v773 = vsel %vm347, %v216, 0.0
      %v774 = vsel %vm348, %v217, 0.0
      %v775 = vpack.c.bf16 %v768, %v767
      %v776 = vpack.c.bf16 %v770, %v769
      %v777 = vpack.c.bf16 %v772, %v771
      %v778 = vpack.c.bf16 %v774, %v773
      %s779 = scalar_lea.vmem %s1, 192
      %v780 = vld [vmem:[%s779] sm:$0xf]
      %v781 = vld [vmem:[%s779 + $0x4] sm:$0xf]
      %v782 = vld [vmem:[%s779 + $0x8] sm:$0xf]
      %v783 = vld [vmem:[%s779 + $0xc] sm:$0xf]
      %v784 = vld [vmem:[%s779 + $0x10] sm:$0xf]
      %v785 = vld [vmem:[%s779 + $0x14] sm:$0xf]
      %v786 = vld [vmem:[%s779 + $0x18] sm:$0xf]
      %v787 = vld [vmem:[%s779 + $0x1c] sm:$0xf]
      %v788 = vld [vmem:[%s779 + $0x20] sm:$0xf]
      %v789 = vld [vmem:[%s779 + $0x24] sm:$0xf]
      %v790 = vld [vmem:[%s779 + $0x28] sm:$0xf]
      %v791 = vld [vmem:[%s779 + $0x2c] sm:$0xf]
      %v792 = vld [vmem:[%s779 + $0x30] sm:$0xf]
      %v793 = vld [vmem:[%s779 + $0x34] sm:$0xf]
      %v794 = vld [vmem:[%s779 + $0x38] sm:$0xf]
      %v795 = vld [vmem:[%s779 + $0x3c] sm:$0xf]
      %v812 = vunpack.c.l.b16 %v780
      %v813 = vunpack.c.l.b16 %v781
      %v814 = vunpack.c.l.b16 %v782
      %v815 = vunpack.c.l.b16 %v783
      %v816 = vunpack.c.l.b16 %v784
      %v817 = vunpack.c.l.b16 %v785
      %v818 = vunpack.c.l.b16 %v786
      %v819 = vunpack.c.l.b16 %v787
      %v820 = vunpack.c.l.b16 %v788
      %v821 = vunpack.c.l.b16 %v789
      %v822 = vunpack.c.l.b16 %v790
      %v823 = vunpack.c.l.b16 %v791
      %v824 = vunpack.c.l.b16 %v792
      %v825 = vunpack.c.l.b16 %v793
      %v826 = vunpack.c.l.b16 %v794
      %v827 = vunpack.c.l.b16 %v795
      %v828 = vpack.c.b16 %v813, %v812
      %v829 = vpack.c.b16 %v815, %v814
      %v830 = vpack.c.b16 %v817, %v816
      %v831 = vpack.c.b16 %v819, %v818
      %v832 = vpack.c.b16 %v821, %v820
      %v833 = vpack.c.b16 %v823, %v822
      %v834 = vpack.c.b16 %v825, %v824
      %v835 = vpack.c.b16 %v827, %v826
      %844 = vmatpush.bf16.msra.mxu0 %v835
      %845 = vmatpush.bf16.msra.mxu0 %v834
      %846 = vmatpush.bf16.msra.mxu0 %v833
      %847 = vmatpush.bf16.msra.mxu0 %v832
      %848 = vmatpush.bf16.msra.mxu0 %v831
      %849 = vmatpush.bf16.msra.mxu0 %v830
      %850 = vmatpush.bf16.msra.mxu0 %v829
      %851 = vmatpush.bf16.msra.mxu0 %v828
      %852 = vmatmul.bf16.gmra.mxu0 %v775
      %v853 = vpop.f32.mrf.mxu0
      %v854 = vadd.f32 0.0, %v853
      %v855 = vpop.f32.mrf.mxu0
      %v856 = vadd.f32 0.0, %v855
      %857 = vmatmul.bf16.gmra.mxu0 %v776
      %v858 = vpop.f32.mrf.mxu0
      %v859 = vadd.f32 0.0, %v858
      %v860 = vpop.f32.mrf.mxu0
      %v861 = vadd.f32 0.0, %v860
      %862 = vmatmul.bf16.gmra.mxu0 %v777
      %v863 = vpop.f32.mrf.mxu0
      %v864 = vadd.f32 0.0, %v863
      %v865 = vpop.f32.mrf.mxu0
      %v866 = vadd.f32 0.0, %v865
      %867 = vmatmul.bf16.gmra.mxu0 %v778
      %v868 = vpop.f32.mrf.mxu0
      %v869 = vadd.f32 0.0, %v868
      %v870 = vpop.f32.mrf.mxu0
      %v871 = vadd.f32 0.0, %v870
      %872 = vdwg.mxu0
      %v873 = vadd.f32 %v759, %v854
      %v874 = vadd.f32 %v760, %v856
      %v875 = vadd.f32 %v761, %v859
      %v876 = vadd.f32 %v762, %v861
      %v877 = vadd.f32 %v763, %v864
      %v878 = vadd.f32 %v764, %v866
      %v879 = vadd.f32 %v765, %v869
      %v880 = vadd.f32 %v766, %v871
      %v881 = vpack.c.bf16 %v211, %v210
      %v882 = vpack.c.bf16 %v213, %v212
      %v883 = vpack.c.bf16 %v215, %v214
      %v884 = vpack.c.bf16 %v217, %v216
      %v885 = vpack.c.bf16 %v218, %v218
      %s886 = scalar_lea.vmem %s1, 256
      %v887 = vld [vmem:[%s886] sm:$0xf]
      %v888 = vld [vmem:[%s886 + $0x4] sm:$0xf]
      %v889 = vld [vmem:[%s886 + $0x8] sm:$0xf]
      %v890 = vld [vmem:[%s886 + $0xc] sm:$0xf]
      %v891 = vld [vmem:[%s886 + $0x10] sm:$0xf]
      %v892 = vld [vmem:[%s886 + $0x14] sm:$0xf]
      %v893 = vld [vmem:[%s886 + $0x18] sm:$0xf]
      %v894 = vld [vmem:[%s886 + $0x1c] sm:$0xf]
      %v895 = vld [vmem:[%s886 + $0x20] sm:$0xf]
      %v896 = vld [vmem:[%s886 + $0x24] sm:$0xf]
      %v897 = vld [vmem:[%s886 + $0x28] sm:$0xf]
      %v898 = vld [vmem:[%s886 + $0x2c] sm:$0xf]
      %v899 = vld [vmem:[%s886 + $0x30] sm:$0xf]
      %v900 = vld [vmem:[%s886 + $0x34] sm:$0xf]
      %v901 = vld [vmem:[%s886 + $0x38] sm:$0xf]
      %v902 = vld [vmem:[%s886 + $0x3c] sm:$0xf]
      %v904 = vshrl.u32 %v881, 16
      %v906 = vshll.u32 %v881, 16
      %v908 = vrot.slane %v906, 1
      %v909 = vor.u32 %v904, %v908
      %v911 = vshll.u32 %v882, 16
      %v913 = vrot.slane %v911, 1
      %v914 = vsel %vm399, %v909, %v913
      %v915 = vshrl.u32 %v882, 16
      %v917 = vor.u32 %v915, %v913
      %v919 = vshll.u32 %v883, 16
      %v921 = vrot.slane %v919, 1
      %v922 = vsel %vm399, %v917, %v921
      %v923 = vshrl.u32 %v883, 16
      %v925 = vor.u32 %v923, %v921
      %v927 = vshll.u32 %v884, 16
      %v929 = vrot.slane %v927, 1
      %v930 = vsel %vm399, %v925, %v929
      %v931 = vshrl.u32 %v884, 16
      %v933 = vor.u32 %v931, %v929
      %v935 = vshll.u32 %v885, 16
      %v937 = vrot.slane %v935, 1
      %v938 = vsel %vm399, %v933, %v937
      %v959 = vunpack.c.l.b16 %v887
      %v960 = vunpack.c.l.b16 %v888
      %v961 = vunpack.c.l.b16 %v889
      %v962 = vunpack.c.l.b16 %v890
      %v963 = vunpack.c.l.b16 %v891
      %v964 = vunpack.c.l.b16 %v892
      %v965 = vunpack.c.l.b16 %v893
      %v966 = vunpack.c.l.b16 %v894
      %v967 = vunpack.c.l.b16 %v895
      %v968 = vunpack.c.l.b16 %v896
      %v969 = vunpack.c.l.b16 %v897
      %v970 = vunpack.c.l.b16 %v898
      %v971 = vunpack.c.l.b16 %v899
      %v972 = vunpack.c.l.b16 %v900
      %v973 = vunpack.c.l.b16 %v901
      %v974 = vunpack.c.l.b16 %v902
      %v975 = vpack.c.b16 %v960, %v959
      %v976 = vpack.c.b16 %v962, %v961
      %v977 = vpack.c.b16 %v964, %v963
      %v978 = vpack.c.b16 %v966, %v965
      %v979 = vpack.c.b16 %v968, %v967
      %v980 = vpack.c.b16 %v970, %v969
      %v981 = vpack.c.b16 %v972, %v971
      %v982 = vpack.c.b16 %v974, %v973
      %991 = vmatpush.bf16.msra.mxu0 %v982
      %992 = vmatpush.bf16.msra.mxu0 %v981
      %993 = vmatpush.bf16.msra.mxu0 %v980
      %994 = vmatpush.bf16.msra.mxu0 %v979
      %995 = vmatpush.bf16.msra.mxu0 %v978
      %996 = vmatpush.bf16.msra.mxu0 %v977
      %997 = vmatpush.bf16.msra.mxu0 %v976
      %998 = vmatpush.bf16.msra.mxu0 %v975
      %999 = vmatmul.bf16.gmra.mxu0 %v914
      %v1000 = vpop.f32.mrf.mxu0
      %v1001 = vadd.f32 0.0, %v1000
      %v1002 = vpop.f32.mrf.mxu0
      %v1003 = vadd.f32 0.0, %v1002
      %1004 = vmatmul.bf16.gmra.mxu0 %v922
      %v1005 = vpop.f32.mrf.mxu0
      %v1006 = vadd.f32 0.0, %v1005
      %v1007 = vpop.f32.mrf.mxu0
      %v1008 = vadd.f32 0.0, %v1007
      %1009 = vmatmul.bf16.gmra.mxu0 %v930
      %v1010 = vpop.f32.mrf.mxu0
      %v1011 = vadd.f32 0.0, %v1010
      %v1012 = vpop.f32.mrf.mxu0
      %v1013 = vadd.f32 0.0, %v1012
      %1014 = vmatmul.bf16.gmra.mxu0 %v938
      %v1015 = vpop.f32.mrf.mxu0
      %v1016 = vadd.f32 0.0, %v1015
      %v1017 = vpop.f32.mrf.mxu0
      %v1018 = vadd.f32 0.0, %v1017
      %1019 = vdwg.mxu0
      %v1020 = vadd.f32 %v873, %v1001
      %v1021 = vadd.f32 %v874, %v1003
      %v1022 = vadd.f32 %v875, %v1006
      %v1023 = vadd.f32 %v876, %v1008
      %v1024 = vadd.f32 %v877, %v1011
      %v1025 = vadd.f32 %v878, %v1013
      %v1026 = vadd.f32 %v879, %v1016
      %v1027 = vadd.f32 %v880, %v1018
      %v1029 = vrot.slane %v218, 2
      %v1030 = vsel %vm627, %v643, %v1029
      %v1032 = vsel %vm610, %v632, 0.0
      %v1033 = vsel %vm611, %v634, 0.0
      %v1034 = vsel %vm612, %v636, 0.0
      %v1035 = vsel %vm613, %v638, 0.0
      %v1036 = vsel %vm614, %v640, 0.0
      %v1037 = vsel %vm615, %v642, 0.0
      %v1038 = vsel %vm616, %v644, 0.0
      %v1039 = vsel %vm617, %v1030, 0.0
      %v1040 = vpack.c.bf16 %v1033, %v1032
      %v1041 = vpack.c.bf16 %v1035, %v1034
      %v1042 = vpack.c.bf16 %v1037, %v1036
      %v1043 = vpack.c.bf16 %v1039, %v1038
      %s1044 = scalar_lea.vmem %s1, 320
      %v1045 = vld [vmem:[%s1044] sm:$0xf]
      %v1046 = vld [vmem:[%s1044 + $0x4] sm:$0xf]
      %v1047 = vld [vmem:[%s1044 + $0x8] sm:$0xf]
      %v1048 = vld [vmem:[%s1044 + $0xc] sm:$0xf]
      %v1049 = vld [vmem:[%s1044 + $0x10] sm:$0xf]
      %v1050 = vld [vmem:[%s1044 + $0x14] sm:$0xf]
      %v1051 = vld [vmem:[%s1044 + $0x18] sm:$0xf]
      %v1052 = vld [vmem:[%s1044 + $0x1c] sm:$0xf]
      %v1053 = vld [vmem:[%s1044 + $0x20] sm:$0xf]
      %v1054 = vld [vmem:[%s1044 + $0x24] sm:$0xf]
      %v1055 = vld [vmem:[%s1044 + $0x28] sm:$0xf]
      %v1056 = vld [vmem:[%s1044 + $0x2c] sm:$0xf]
      %v1057 = vld [vmem:[%s1044 + $0x30] sm:$0xf]
      %v1058 = vld [vmem:[%s1044 + $0x34] sm:$0xf]
      %v1059 = vld [vmem:[%s1044 + $0x38] sm:$0xf]
      %v1060 = vld [vmem:[%s1044 + $0x3c] sm:$0xf]
      %v1077 = vunpack.c.l.b16 %v1045
      %v1078 = vunpack.c.l.b16 %v1046
      %v1079 = vunpack.c.l.b16 %v1047
      %v1080 = vunpack.c.l.b16 %v1048
      %v1081 = vunpack.c.l.b16 %v1049
      %v1082 = vunpack.c.l.b16 %v1050
      %v1083 = vunpack.c.l.b16 %v1051
      %v1084 = vunpack.c.l.b16 %v1052
      %v1085 = vunpack.c.l.b16 %v1053
      %v1086 = vunpack.c.l.b16 %v1054
      %v1087 = vunpack.c.l.b16 %v1055
      %v1088 = vunpack.c.l.b16 %v1056
      %v1089 = vunpack.c.l.b16 %v1057
      %v1090 = vunpack.c.l.b16 %v1058
      %v1091 = vunpack.c.l.b16 %v1059
      %v1092 = vunpack.c.l.b16 %v1060
      %v1093 = vpack.c.b16 %v1078, %v1077
      %v1094 = vpack.c.b16 %v1080, %v1079
      %v1095 = vpack.c.b16 %v1082, %v1081
      %v1096 = vpack.c.b16 %v1084, %v1083
      %v1097 = vpack.c.b16 %v1086, %v1085
      %v1098 = vpack.c.b16 %v1088, %v1087
      %v1099 = vpack.c.b16 %v1090, %v1089
      %v1100 = vpack.c.b16 %v1092, %v1091
      %1109 = vmatpush.bf16.msra.mxu0 %v1100
      %1110 = vmatpush.bf16.msra.mxu0 %v1099
      %1111 = vmatpush.bf16.msra.mxu0 %v1098
      %1112 = vmatpush.bf16.msra.mxu0 %v1097
      %1113 = vmatpush.bf16.msra.mxu0 %v1096
      %1114 = vmatpush.bf16.msra.mxu0 %v1095
      %1115 = vmatpush.bf16.msra.mxu0 %v1094
      %1116 = vmatpush.bf16.msra.mxu0 %v1093
      %1117 = vmatmul.bf16.gmra.mxu0 %v1040
      %v1118 = vpop.f32.mrf.mxu0
      %v1119 = vadd.f32 0.0, %v1118
      %v1120 = vpop.f32.mrf.mxu0
      %v1121 = vadd.f32 0.0, %v1120
      %1122 = vmatmul.bf16.gmra.mxu0 %v1041
      %v1123 = vpop.f32.mrf.mxu0
      %v1124 = vadd.f32 0.0, %v1123
      %v1125 = vpop.f32.mrf.mxu0
      %v1126 = vadd.f32 0.0, %v1125
      %1127 = vmatmul.bf16.gmra.mxu0 %v1042
      %v1128 = vpop.f32.mrf.mxu0
      %v1129 = vadd.f32 0.0, %v1128
      %v1130 = vpop.f32.mrf.mxu0
      %v1131 = vadd.f32 0.0, %v1130
      %1132 = vmatmul.bf16.gmra.mxu0 %v1043
      %v1133 = vpop.f32.mrf.mxu0
      %v1134 = vadd.f32 0.0, %v1133
      %v1135 = vpop.f32.mrf.mxu0
      %v1136 = vadd.f32 0.0, %v1135
      %1137 = vdwg.mxu0
      %v1138 = vadd.f32 %v1020, %v1119
      %v1139 = vadd.f32 %v1021, %v1121
      %v1140 = vadd.f32 %v1022, %v1124
      %v1141 = vadd.f32 %v1023, %v1126
      %v1142 = vadd.f32 %v1024, %v1129
      %v1143 = vadd.f32 %v1025, %v1131
      %v1144 = vadd.f32 %v1026, %v1134
      %v1145 = vadd.f32 %v1027, %v1136
      %v1146 = vsel %vm341, %v211, 0.0
      %v1147 = vsel %vm342, %v212, 0.0
      %v1148 = vsel %vm343, %v213, 0.0
      %v1149 = vsel %vm344, %v214, 0.0
      %v1150 = vsel %vm345, %v215, 0.0
      %v1151 = vsel %vm346, %v216, 0.0
      %v1152 = vsel %vm347, %v217, 0.0
      %v1153 = vsel %vm348, %v218, 0.0
      %v1154 = vpack.c.bf16 %v1147, %v1146
      %v1155 = vpack.c.bf16 %v1149, %v1148
      %v1156 = vpack.c.bf16 %v1151, %v1150
      %v1157 = vpack.c.bf16 %v1153, %v1152
      %s1158 = scalar_lea.vmem %s1, 384
      %v1159 = vld [vmem:[%s1158] sm:$0xf]
      %v1160 = vld [vmem:[%s1158 + $0x4] sm:$0xf]
      %v1161 = vld [vmem:[%s1158 + $0x8] sm:$0xf]
      %v1162 = vld [vmem:[%s1158 + $0xc] sm:$0xf]
      %v1163 = vld [vmem:[%s1158 + $0x10] sm:$0xf]
      %v1164 = vld [vmem:[%s1158 + $0x14] sm:$0xf]
      %v1165 = vld [vmem:[%s1158 + $0x18] sm:$0xf]
      %v1166 = vld [vmem:[%s1158 + $0x1c] sm:$0xf]
      %v1167 = vld [vmem:[%s1158 + $0x20] sm:$0xf]
      %v1168 = vld [vmem:[%s1158 + $0x24] sm:$0xf]
      %v1169 = vld [vmem:[%s1158 + $0x28] sm:$0xf]
      %v1170 = vld [vmem:[%s1158 + $0x2c] sm:$0xf]
      %v1171 = vld [vmem:[%s1158 + $0x30] sm:$0xf]
      %v1172 = vld [vmem:[%s1158 + $0x34] sm:$0xf]
      %v1173 = vld [vmem:[%s1158 + $0x38] sm:$0xf]
      %v1174 = vld [vmem:[%s1158 + $0x3c] sm:$0xf]
      %v1191 = vunpack.c.l.b16 %v1159
      %v1192 = vunpack.c.l.b16 %v1160
      %v1193 = vunpack.c.l.b16 %v1161
      %v1194 = vunpack.c.l.b16 %v1162
      %v1195 = vunpack.c.l.b16 %v1163
      %v1196 = vunpack.c.l.b16 %v1164
      %v1197 = vunpack.c.l.b16 %v1165
      %v1198 = vunpack.c.l.b16 %v1166
      %v1199 = vunpack.c.l.b16 %v1167
      %v1200 = vunpack.c.l.b16 %v1168
      %v1201 = vunpack.c.l.b16 %v1169
      %v1202 = vunpack.c.l.b16 %v1170
      %v1203 = vunpack.c.l.b16 %v1171
      %v1204 = vunpack.c.l.b16 %v1172
      %v1205 = vunpack.c.l.b16 %v1173
      %v1206 = vunpack.c.l.b16 %v1174
      %v1207 = vpack.c.b16 %v1192, %v1191
      %v1208 = vpack.c.b16 %v1194, %v1193
      %v1209 = vpack.c.b16 %v1196, %v1195
      %v1210 = vpack.c.b16 %v1198, %v1197
      %v1211 = vpack.c.b16 %v1200, %v1199
      %v1212 = vpack.c.b16 %v1202, %v1201
      %v1213 = vpack.c.b16 %v1204, %v1203
      %v1214 = vpack.c.b16 %v1206, %v1205
      %1223 = vmatpush.bf16.msra.mxu0 %v1214
      %1224 = vmatpush.bf16.msra.mxu0 %v1213
      %1225 = vmatpush.bf16.msra.mxu0 %v1212
      %1226 = vmatpush.bf16.msra.mxu0 %v1211
      %1227 = vmatpush.bf16.msra.mxu0 %v1210
      %1228 = vmatpush.bf16.msra.mxu0 %v1209
      %1229 = vmatpush.bf16.msra.mxu0 %v1208
      %1230 = vmatpush.bf16.msra.mxu0 %v1207
      %1231 = vmatmul.bf16.gmra.mxu0 %v1154
      %v1232 = vpop.f32.mrf.mxu0
      %v1233 = vadd.f32 0.0, %v1232
      %v1234 = vpop.f32.mrf.mxu0
      %v1235 = vadd.f32 0.0, %v1234
      %1236 = vmatmul.bf16.gmra.mxu0 %v1155
      %v1237 = vpop.f32.mrf.mxu0
      %v1238 = vadd.f32 0.0, %v1237
      %v1239 = vpop.f32.mrf.mxu0
      %v1240 = vadd.f32 0.0, %v1239
      %1241 = vmatmul.bf16.gmra.mxu0 %v1156
      %v1242 = vpop.f32.mrf.mxu0
      %v1243 = vadd.f32 0.0, %v1242
      %v1244 = vpop.f32.mrf.mxu0
      %v1245 = vadd.f32 0.0, %v1244
      %1246 = vmatmul.bf16.gmra.mxu0 %v1157
      %v1247 = vpop.f32.mrf.mxu0
      %v1248 = vadd.f32 0.0, %v1247
      %v1249 = vpop.f32.mrf.mxu0
      %v1250 = vadd.f32 0.0, %v1249
      %1251 = vdwg.mxu0
      %v1252 = vadd.f32 %v1138, %v1233
      %v1253 = vadd.f32 %v1139, %v1235
      %v1254 = vadd.f32 %v1140, %v1238
      %v1255 = vadd.f32 %v1141, %v1240
      %v1256 = vadd.f32 %v1142, %v1243
      %v1257 = vadd.f32 %v1143, %v1245
      %v1258 = vadd.f32 %v1144, %v1248
      %v1259 = vadd.f32 %v1145, %v1250
      %v1260 = vpack.c.bf16 %v218, %v217
      %v1261 = vpack.c.bf16 %v219, %v219
      %s1262 = scalar_lea.vmem %s1, 448
      %v1263 = vld [vmem:[%s1262] sm:$0xf]
      %v1264 = vld [vmem:[%s1262 + $0x4] sm:$0xf]
      %v1265 = vld [vmem:[%s1262 + $0x8] sm:$0xf]
      %v1266 = vld [vmem:[%s1262 + $0xc] sm:$0xf]
      %v1267 = vld [vmem:[%s1262 + $0x10] sm:$0xf]
      %v1268 = vld [vmem:[%s1262 + $0x14] sm:$0xf]
      %v1269 = vld [vmem:[%s1262 + $0x18] sm:$0xf]
      %v1270 = vld [vmem:[%s1262 + $0x1c] sm:$0xf]
      %v1271 = vld [vmem:[%s1262 + $0x20] sm:$0xf]
      %v1272 = vld [vmem:[%s1262 + $0x24] sm:$0xf]
      %v1273 = vld [vmem:[%s1262 + $0x28] sm:$0xf]
      %v1274 = vld [vmem:[%s1262 + $0x2c] sm:$0xf]
      %v1275 = vld [vmem:[%s1262 + $0x30] sm:$0xf]
      %v1276 = vld [vmem:[%s1262 + $0x34] sm:$0xf]
      %v1277 = vld [vmem:[%s1262 + $0x38] sm:$0xf]
      %v1278 = vld [vmem:[%s1262 + $0x3c] sm:$0xf]
      %v1280 = vshll.u32 %v1260, 16
      %v1282 = vrot.slane %v1280, 1
      %v1283 = vsel %vm399, %v430, %v1282
      %v1284 = vshrl.u32 %v1260, 16
      %v1286 = vor.u32 %v1284, %v1282
      %v1288 = vshll.u32 %v1261, 16
      %v1290 = vrot.slane %v1288, 1
      %v1291 = vsel %vm399, %v1286, %v1290
      %v1310 = vunpack.c.l.b16 %v1263
      %v1311 = vunpack.c.l.b16 %v1264
      %v1312 = vunpack.c.l.b16 %v1265
      %v1313 = vunpack.c.l.b16 %v1266
      %v1314 = vunpack.c.l.b16 %v1267
      %v1315 = vunpack.c.l.b16 %v1268
      %v1316 = vunpack.c.l.b16 %v1269
      %v1317 = vunpack.c.l.b16 %v1270
      %v1318 = vunpack.c.l.b16 %v1271
      %v1319 = vunpack.c.l.b16 %v1272
      %v1320 = vunpack.c.l.b16 %v1273
      %v1321 = vunpack.c.l.b16 %v1274
      %v1322 = vunpack.c.l.b16 %v1275
      %v1323 = vunpack.c.l.b16 %v1276
      %v1324 = vunpack.c.l.b16 %v1277
      %v1325 = vunpack.c.l.b16 %v1278
      %v1326 = vpack.c.b16 %v1311, %v1310
      %v1327 = vpack.c.b16 %v1313, %v1312
      %v1328 = vpack.c.b16 %v1315, %v1314
      %v1329 = vpack.c.b16 %v1317, %v1316
      %v1330 = vpack.c.b16 %v1319, %v1318
      %v1331 = vpack.c.b16 %v1321, %v1320
      %v1332 = vpack.c.b16 %v1323, %v1322
      %v1333 = vpack.c.b16 %v1325, %v1324
      %1342 = vmatpush.bf16.msra.mxu0 %v1333
      %1343 = vmatpush.bf16.msra.mxu0 %v1332
      %1344 = vmatpush.bf16.msra.mxu0 %v1331
      %1345 = vmatpush.bf16.msra.mxu0 %v1330
      %1346 = vmatpush.bf16.msra.mxu0 %v1329
      %1347 = vmatpush.bf16.msra.mxu0 %v1328
      %1348 = vmatpush.bf16.msra.mxu0 %v1327
      %1349 = vmatpush.bf16.msra.mxu0 %v1326
      %1350 = vmatmul.bf16.gmra.mxu0 %v419
      %v1351 = vpop.f32.mrf.mxu0
      %v1352 = vadd.f32 0.0, %v1351
      %v1353 = vpop.f32.mrf.mxu0
      %v1354 = vadd.f32 0.0, %v1353
      %1355 = vmatmul.bf16.gmra.mxu0 %v427
      %v1356 = vpop.f32.mrf.mxu0
      %v1357 = vadd.f32 0.0, %v1356
      %v1358 = vpop.f32.mrf.mxu0
      %v1359 = vadd.f32 0.0, %v1358
      %1360 = vmatmul.bf16.gmra.mxu0 %v1283
      %v1361 = vpop.f32.mrf.mxu0
      %v1362 = vadd.f32 0.0, %v1361
      %v1363 = vpop.f32.mrf.mxu0
      %v1364 = vadd.f32 0.0, %v1363
      %1365 = vmatmul.bf16.gmra.mxu0 %v1291
      %v1366 = vpop.f32.mrf.mxu0
      %v1367 = vadd.f32 0.0, %v1366
      %v1368 = vpop.f32.mrf.mxu0
      %v1369 = vadd.f32 0.0, %v1368
      %1370 = vdwg.mxu0
      %v1371 = vadd.f32 %v1252, %v1352
      %v1372 = vadd.f32 %v1253, %v1354
      %v1373 = vadd.f32 %v1254, %v1357
      %v1374 = vadd.f32 %v1255, %v1359
      %v1375 = vadd.f32 %v1256, %v1362
      %v1376 = vadd.f32 %v1257, %v1364
      %v1377 = vadd.f32 %v1258, %v1367
      %v1378 = vadd.f32 %v1259, %v1369
      %v1380 = vrot.slane %v219, 2
      %v1381 = vsel %vm627, %v1029, %v1380
      %v1383 = vsel %vm610, %v634, 0.0
      %v1384 = vsel %vm611, %v636, 0.0
      %v1385 = vsel %vm612, %v638, 0.0
      %v1386 = vsel %vm613, %v640, 0.0
      %v1387 = vsel %vm614, %v642, 0.0
      %v1388 = vsel %vm615, %v644, 0.0
      %v1389 = vsel %vm616, %v1030, 0.0
      %v1390 = vsel %vm617, %v1381, 0.0
      %v1391 = vpack.c.bf16 %v1384, %v1383
      %v1392 = vpack.c.bf16 %v1386, %v1385
      %v1393 = vpack.c.bf16 %v1388, %v1387
      %v1394 = vpack.c.bf16 %v1390, %v1389
      %s1395 = scalar_lea.vmem %s1, 512
      %v1396 = vld [vmem:[%s1395] sm:$0xf]
      %v1397 = vld [vmem:[%s1395 + $0x4] sm:$0xf]
      %v1398 = vld [vmem:[%s1395 + $0x8] sm:$0xf]
      %v1399 = vld [vmem:[%s1395 + $0xc] sm:$0xf]
      %v1400 = vld [vmem:[%s1395 + $0x10] sm:$0xf]
      %v1401 = vld [vmem:[%s1395 + $0x14] sm:$0xf]
      %v1402 = vld [vmem:[%s1395 + $0x18] sm:$0xf]
      %v1403 = vld [vmem:[%s1395 + $0x1c] sm:$0xf]
      %v1404 = vld [vmem:[%s1395 + $0x20] sm:$0xf]
      %v1405 = vld [vmem:[%s1395 + $0x24] sm:$0xf]
      %v1406 = vld [vmem:[%s1395 + $0x28] sm:$0xf]
      %v1407 = vld [vmem:[%s1395 + $0x2c] sm:$0xf]
      %v1408 = vld [vmem:[%s1395 + $0x30] sm:$0xf]
      %v1409 = vld [vmem:[%s1395 + $0x34] sm:$0xf]
      %v1410 = vld [vmem:[%s1395 + $0x38] sm:$0xf]
      %v1411 = vld [vmem:[%s1395 + $0x3c] sm:$0xf]
      %v1428 = vunpack.c.l.b16 %v1396
      %v1429 = vunpack.c.l.b16 %v1397
      %v1430 = vunpack.c.l.b16 %v1398
      %v1431 = vunpack.c.l.b16 %v1399
      %v1432 = vunpack.c.l.b16 %v1400
      %v1433 = vunpack.c.l.b16 %v1401
      %v1434 = vunpack.c.l.b16 %v1402
      %v1435 = vunpack.c.l.b16 %v1403
      %v1436 = vunpack.c.l.b16 %v1404
      %v1437 = vunpack.c.l.b16 %v1405
      %v1438 = vunpack.c.l.b16 %v1406
      %v1439 = vunpack.c.l.b16 %v1407
      %v1440 = vunpack.c.l.b16 %v1408
      %v1441 = vunpack.c.l.b16 %v1409
      %v1442 = vunpack.c.l.b16 %v1410
      %v1443 = vunpack.c.l.b16 %v1411
      %v1444 = vpack.c.b16 %v1429, %v1428
      %v1445 = vpack.c.b16 %v1431, %v1430
      %v1446 = vpack.c.b16 %v1433, %v1432
      %v1447 = vpack.c.b16 %v1435, %v1434
      %v1448 = vpack.c.b16 %v1437, %v1436
      %v1449 = vpack.c.b16 %v1439, %v1438
      %v1450 = vpack.c.b16 %v1441, %v1440
      %v1451 = vpack.c.b16 %v1443, %v1442
      %1460 = vmatpush.bf16.msra.mxu0 %v1451
      %1461 = vmatpush.bf16.msra.mxu0 %v1450
      %1462 = vmatpush.bf16.msra.mxu0 %v1449
      %1463 = vmatpush.bf16.msra.mxu0 %v1448
      %1464 = vmatpush.bf16.msra.mxu0 %v1447
      %1465 = vmatpush.bf16.msra.mxu0 %v1446
      %1466 = vmatpush.bf16.msra.mxu0 %v1445
      %1467 = vmatpush.bf16.msra.mxu0 %v1444
      %1468 = vmatmul.bf16.gmra.mxu0 %v1391
      %v1469 = vpop.f32.mrf.mxu0
      %v1470 = vadd.f32 0.0, %v1469
      %v1471 = vpop.f32.mrf.mxu0
      %v1472 = vadd.f32 0.0, %v1471
      %1473 = vmatmul.bf16.gmra.mxu0 %v1392
      %v1474 = vpop.f32.mrf.mxu0
      %v1475 = vadd.f32 0.0, %v1474
      %v1476 = vpop.f32.mrf.mxu0
      %v1477 = vadd.f32 0.0, %v1476
      %1478 = vmatmul.bf16.gmra.mxu0 %v1393
      %v1479 = vpop.f32.mrf.mxu0
      %v1480 = vadd.f32 0.0, %v1479
      %v1481 = vpop.f32.mrf.mxu0
      %v1482 = vadd.f32 0.0, %v1481
      %1483 = vmatmul.bf16.gmra.mxu0 %v1394
      %v1484 = vpop.f32.mrf.mxu0
      %v1485 = vadd.f32 0.0, %v1484
      %v1486 = vpop.f32.mrf.mxu0
      %v1487 = vadd.f32 0.0, %v1486
      %1488 = vdwg.mxu0
      %v1489 = vadd.f32 %v1371, %v1470
      %v1490 = vadd.f32 %v1372, %v1472
      %v1491 = vadd.f32 %v1373, %v1475
      %v1492 = vadd.f32 %v1374, %v1477
      %v1493 = vadd.f32 %v1375, %v1480
      %v1494 = vadd.f32 %v1376, %v1482
      %v1495 = vadd.f32 %v1377, %v1485
      %v1496 = vadd.f32 %v1378, %v1487
      %v1497 = vld [vmem:[%s2] sm:$0x1]
      %v1499 = vperm.slane %v1497, 0
      %v1501 = vmul.f32 %v1489, %v1499
      %v1502 = vmul.f32 %v1490, %v1499
      %v1503 = vmul.f32 %v1491, %v1499
      %v1504 = vmul.f32 %v1492, %v1499
      %v1505 = vmul.f32 %v1493, %v1499
      %v1506 = vmul.f32 %v1494, %v1499
      %v1507 = vmul.f32 %v1495, %v1499
      %v1508 = vmul.f32 %v1496, %v1499
      %v1509 = vld [vmem:[%s3] sm:$0x1]
      %v1511 = vperm.slane %v1509, 0
      %v1513 = vadd.f32 %v1501, %v1511
      %v1514 = vadd.f32 %v1502, %v1511
      %v1515 = vadd.f32 %v1503, %v1511
      %v1516 = vadd.f32 %v1504, %v1511
      %v1517 = vadd.f32 %v1505, %v1511
      %v1518 = vadd.f32 %v1506, %v1511
      %v1519 = vadd.f32 %v1507, %v1511
      %v1520 = vadd.f32 %v1508, %v1511
      %v1521 = vmax.f32 %v1513, 0.0
      %v1522 = vmax.f32 %v1514, 0.0
      %v1523 = vmax.f32 %v1515, 0.0
      %v1524 = vmax.f32 %v1516, 0.0
      %v1525 = vmax.f32 %v1517, 0.0
      %v1526 = vmax.f32 %v1518, 0.0
      %v1527 = vmax.f32 %v1519, 0.0
      %v1528 = vmax.f32 %v1520, 0.0
      %v1529 = vpack.c.bf16 %v1521, %v1521
      %v1530 = vpack.c.bf16 %v1522, %v1522
      %v1531 = vpack.c.bf16 %v1523, %v1523
      %v1532 = vpack.c.bf16 %v1524, %v1524
      %v1533 = vpack.c.bf16 %v1525, %v1525
      %v1534 = vpack.c.bf16 %v1526, %v1526
      %v1535 = vpack.c.bf16 %v1527, %v1527
      %v1536 = vpack.c.bf16 %v1528, %v1528
      %1537 = vst [vmem:[%s197] sm:$0xf] %v1529
      %1538 = vst [vmem:[%s197 + $0x4] sm:$0xf] %v1530
      %1539 = vst [vmem:[%s197 + $0x8] sm:$0xf] %v1531
      %1540 = vst [vmem:[%s197 + $0xc] sm:$0xf] %v1532
      %1541 = vst [vmem:[%s197 + $0x10] sm:$0xf] %v1533
      %1542 = vst [vmem:[%s197 + $0x14] sm:$0xf] %v1534
      %1543 = vst [vmem:[%s197 + $0x18] sm:$0xf] %v1535
      %1544 = vst [vmem:[%s197 + $0x1c] sm:$0xf] %v1536
      %p1545 = scmp.lt.s32.totalorder %s15, 1
      %s1546 = scalar_select %p1545, %s15, 1
      %s1547 = smul.addr %s1546, 8
      %s1548 = smul.addr %s1547, 4
      %s1549 = scalar_lea.vmem %s4, %s1548
      // Predicated region
      $region37: #{rt_layer_forward.6} parent=35 // pred_check
        %p1550 = pneg %p122
      $region38: #{rt_layer_forward.6} parent=35 // pred_check_branch
        %1552 = sbr.rel (%p1550) target = $region40
      $region39: #{rt_layer_forward.6} parent=35 // pred_region
        _
      $region40: #{rt_layer_forward.6} parent=35 // pred_fallthru
        _
    $region36: #{rt_layer_forward.6} parent=5 // pred_fallthru
      _
    %p1553 = scmp.le.s32.totalorder 2, %s10
    // Predicated region
    $region41: #{rt_layer_forward.6} parent=5 // pred_check
      %p1554 = pneg %p1553
    $region42: #{rt_layer_forward.6} parent=5 // pred_check_branch
      %1556 = sbr.rel (%p1554) target = $region44
    $region43: #{rt_layer_forward.6} parent=5 // pred_region
      %s1557 = ssub.s32 %s10, 2
      // Predicated region
      $region45: #{rt_layer_forward.6} parent=43 // pred_check
        %p1558 = pneg %p128
      $region46: #{rt_layer_forward.6} parent=43 // pred_check_branch
        %1560 = sbr.rel (%p1558) target = $region48
      $region47: #{rt_layer_forward.6} parent=43 // pred_region
        %p1561 = scmp.lt.s32.totalorder %s16, 1
        %s1562 = scalar_select %p1561, %s16, 1
        %s1563 = smul.addr %s1562, 8
        %s1564 = smul.addr %s1563, 4
        %s1565 = scalar_lea.vmem %s4, %s1564
      $region48: #{rt_layer_forward.6} parent=43 // pred_fallthru
        _
    $region44: #{rt_layer_forward.6} parent=5 // pred_fallthru
      _
  $region6: #{rt_layer_forward.6} parent=0 // loop_footer
    %s14 = sadd.s32 1, %s10
  $region7: #{rt_layer_forward.6} parent=0 // loop_footer_branch
    %9 = sbr.rel target = $region3
  $region8: #{rt_layer_forward.6} parent=0 // loop_exit
    _

</llo_original>
